<compile_context>
chip_gen: v6e
topology: v6e:2x2x1
jax: 0.10.0
libtpu: 0.0.40
codegen_flags: <defaults>
</compile_context>

<pallas_src>
import jax
import jax.numpy as jnp
from jax.experimental import pallas as pl
from jax.experimental.pallas import tpu as pltpu

FEAT_DIM = 2048   # resnet50 final channel count
HIDDEN = 512      # self.liner hidden size
MAX_BATCH_TILE = 256


def _siamese_head_kernel(f1_ref, f2_ref, w1_ref, b1_ref, w2_ref, b2_ref, o_ref):
    # f1_ref, f2_ref : (tb, 2048)   bf16  pooled trunk features (per branch)
    # w1_ref         : (2048, 512)  bf16  liner weight, stored input-major
    # b1_ref         : (1, 512)     f32
    # w2_ref         : (1, 512)     f32   out weight as a row
    # b2_ref         : (1, 1)       f32   (SMEM scalar)
    # o_ref          : (tb, 1)      f32
    tb = f1_ref.shape[0]

    # Fuse both branches into a single MXU pass over w1 (one weight-push stream).
    f = jnp.concatenate([f1_ref[...], f2_ref[...]], axis=0)            # (2*tb, 2048) bf16
    pre = jnp.dot(f, w1_ref[...], preferred_element_type=jnp.float32)  # (2*tb, 512) f32
    h = jax.nn.sigmoid(pre + b1_ref[...])                              # (2*tb, 512) f32

    dis = jnp.abs(h[:tb, :] - h[tb:, :])                               # (tb, 512) f32

    # Linear(512, 1): VPU multiply + XLU lane reduction (avoid an N=1 MXU matmul).
    logit = jnp.sum(dis * w2_ref[...], axis=-1, keepdims=True) + b2_ref[0, 0]
    o_ref[...] = jax.nn.sigmoid(logit)                                 # (tb, 1)


def siamese_forward(x1_nchw, x2_nchw, kernel_params):
    """x1_nchw, x2_nchw: (B, C=2048, H, W) trunk feature maps (NCHW, like PyTorch)."""
    w1_bf16, b1, w2_row, b2 = kernel_params
    B, C, H, W = x1_nchw.shape
    assert C == FEAT_DIM

    # Trunk's AdaptiveAvgPool2d((1,1)) + flatten as a single fused XLA reduction
    # (no transpose pass over HBM); cast to bf16 for the MXU.
    f1 = jnp.mean(x1_nchw, axis=(2, 3)).astype(jnp.bfloat16)   # (B, 2048)
    f2 = jnp.mean(x2_nchw, axis=(2, 3)).astype(jnp.bfloat16)   # (B, 2048)

    # Batch tiling: whole batch in one step when small; otherwise 256-row tiles
    # sharded across TensorCores via the parallel grid axis.  cdiv + Pallas edge
    # blocks handle batches that are not a multiple of the tile.
    tb = B if B <= MAX_BATCH_TILE else MAX_BATCH_TILE
    grid = (pl.cdiv(B, tb),)

    cost = pl.CostEstimate(
        flops=2 * (2 * B) * FEAT_DIM * HIDDEN + 4 * B * HIDDEN,
        transcendentals=2 * B * HIDDEN + B,
        bytes_accessed=(2 * B * FEAT_DIM * 2            # bf16 features
                        + FEAT_DIM * HIDDEN * 2         # bf16 w1
                        + 2 * HIDDEN * 4 + 4            # b1, w2 row, b2
                        + B * 4),                       # output
    )

    out = pl.pallas_call(
        _siamese_head_kernel,
        out_shape=jax.ShapeDtypeStruct((B, 1), jnp.float32),
        grid=grid,
        in_specs=[
            pl.BlockSpec((tb, FEAT_DIM), lambda i: (i, 0)),          # f1 tile
            pl.BlockSpec((tb, FEAT_DIM), lambda i: (i, 0)),          # f2 tile
            pl.BlockSpec((FEAT_DIM, HIDDEN), lambda i: (0, 0)),      # w1 (resident)
            pl.BlockSpec((1, HIDDEN), lambda i: (0, 0)),             # b1 (resident)
            pl.BlockSpec((1, HIDDEN), lambda i: (0, 0)),             # w2 row (resident)
            pl.BlockSpec(memory_space=pltpu.MemorySpace.SMEM),       # b2 scalar
        ],
        out_specs=pl.BlockSpec((tb, 1), lambda i: (i, 0)),
        compiler_params=pltpu.CompilerParams(
            dimension_semantics=("parallel",),
            vmem_limit_bytes=32 * 1024 * 1024),
        cost_estimate=cost,
    )(f1, f2, w1_bf16, b1, w2_row, b2)
    return out


def init_params(key):
    """Deterministic f32 init matching nn.Linear defaults (uniform +-1/sqrt(fan_in))."""
    k1, k2, k3, k4 = jax.random.split(key, 4)
    lim1 = 1.0 / (FEAT_DIM ** 0.5)
    lim2 = 1.0 / (HIDDEN ** 0.5)
    # Stored input-major (in, out) so f @ W matches PyTorch's x @ weight.T.
    w1 = jax.random.uniform(k1, (FEAT_DIM, HIDDEN), jnp.float32, -lim1, lim1)
    b1 = jax.random.uniform(k2, (1, HIDDEN), jnp.float32, -lim1, lim1)
    w2 = jax.random.uniform(k3, (HIDDEN, 1), jnp.float32, -lim2, lim2)
    b2 = jax.random.uniform(k4, (1, 1), jnp.float32, -lim2, lim2)
    return w1, b1, w2, b2


def prepare_kernel_params(params_f32):
    """One-time param prep: bf16 GEMM weight, row-layout out weight."""
    w1, b1, w2, b2 = params_f32
    return (w1.astype(jnp.bfloat16),   # (2048, 512) bf16 for the MXU
            b1,                        # (1, 512) f32
            w2.T,                      # (1, 512) f32 row for the lane reduction
            b2)                        # (1, 1) f32 SMEM scalar


def _reference(x1_nchw, x2_nchw, params_f32):
    """Plain-JAX f32 reference of the same head, for a correctness check."""
    w1, b1, w2, b2 = params_f32

    def branch(x):
        f = jnp.mean(x, axis=(2, 3))                 # global avg pool -> (B, C)
        return jax.nn.sigmoid(f @ w1 + b1)           # (B, HIDDEN)

    dis = jnp.abs(branch(x1_nchw) - branch(x2_nchw))
    return jax.nn.sigmoid(dis @ w2 + b2)             # (B, 1)


if __name__ == "__main__":
    key = jax.random.PRNGKey(0)
    kp, kx1, kx2 = jax.random.split(key, 3)

    params_f32 = init_params(kp)
    kernel_params = prepare_kernel_params(params_f32)

    # Small-shape trunk features: batch=2, channels=2048 (resnet50), spatial=4x4.
    B, H, W = 2, 4, 4
    x1 = jax.random.normal(kx1, (B, FEAT_DIM, H, W), jnp.float32)
    x2 = jax.random.normal(kx2, (B, FEAT_DIM, H, W), jnp.float32)

    out = siamese_forward(x1, x2, kernel_params)
    out = jax.block_until_ready(out)

    ref = _reference(x1, x2, params_f32)
    assert out.shape == (B, 1)
    # Tolerance loosened for the bf16 GEMM operands (f32 accumulation kept).
    assert jnp.allclose(out, ref, atol=5e-3, rtol=5e-3), (out, ref)

    print("KERNEL_OK")
</pallas_src>

<mosaic_0001>
module attributes {stable_mosaic.version = 11 : i64} {
  func.func @_siamese_head_kernel(%arg0: i32, %arg1: memref<2x2048xbf16, #tpu.memory_space<vmem>>, %arg2: memref<2x2048xbf16, #tpu.memory_space<vmem>>, %arg3: memref<2048x512xbf16, #tpu.memory_space<vmem>>, %arg4: memref<1x512xf32, #tpu.memory_space<vmem>>, %arg5: memref<1x512xf32, #tpu.memory_space<vmem>>, %arg6: memref<1x1xf32, #tpu.memory_space<smem>>, %arg7: memref<2x1xf32, #tpu.memory_space<vmem>>) attributes {dimension_semantics = [#tpu.dimension_semantics<parallel>], iteration_bounds = array<i64: 1>, scalar_prefetch = 0 : i64, scratch_operands = 0 : i64, tpu.core_type = #tpu.core_type<tc>, window_params = [{transform_indices = @transform_0, window_bounds = array<i64: 2, 2048>}, {transform_indices = @transform_1, window_bounds = array<i64: 2, 2048>}, {pipeline_mode = #tpu.pipeline_mode<synchronous>, transform_indices = @transform_2, window_bounds = array<i64: 2048, 512>}, {pipeline_mode = #tpu.pipeline_mode<synchronous>, transform_indices = @transform_3, window_bounds = array<i64: 1, 512>}, {pipeline_mode = #tpu.pipeline_mode<synchronous>, transform_indices = @transform_4, window_bounds = array<i64: 1, 512>}, {transform_indices = @transform_5, window_bounds = array<i64: 1, 1>}, {transform_indices = @transform_6, window_bounds = array<i64: 2, 1>}]} {
    %c0 = arith.constant 0 : index
    %c0_0 = arith.constant 0 : index
    %0 = vector.load %arg1[%c0, %c0_0] : memref<2x2048xbf16, #tpu.memory_space<vmem>>, vector<2x2048xbf16>
    %c0_1 = arith.constant 0 : index
    %c0_2 = arith.constant 0 : index
    %1 = vector.load %arg2[%c0_1, %c0_2] : memref<2x2048xbf16, #tpu.memory_space<vmem>>, vector<2x2048xbf16>
    %2 = tpu.concatenate %0, %1 in 0 : vector<2x2048xbf16>, vector<2x2048xbf16> -> vector<4x2048xbf16>
    %c0_3 = arith.constant 0 : index
    %c0_4 = arith.constant 0 : index
    %3 = vector.load %arg3[%c0_3, %c0_4] : memref<2048x512xbf16, #tpu.memory_space<vmem>>, vector<2048x512xbf16>
    %cst = arith.constant dense<0.000000e+00> : vector<4x512xf32>
    %4 = tpu.matmul %2, %3, %cst {dimension_numbers = #tpu.dot_dimension_numbers<[1], [0], [0], [1], [0, 0, 1, 1], [], []>} : vector<4x2048xbf16>, vector<2048x512xbf16>, vector<4x512xf32> -> vector<4x512xf32>
    %c0_5 = arith.constant 0 : index
    %c0_6 = arith.constant 0 : index
    %5 = vector.load %arg4[%c0_5, %c0_6] : memref<1x512xf32, #tpu.memory_space<vmem>>, vector<1x512xf32>
    %6 = vector.broadcast %5 : vector<1x512xf32> to vector<4x512xf32>
    %7 = arith.addf %4, %6 : vector<4x512xf32>
    %8 = arith.negf %7 : vector<4x512xf32>
    %9 = math.exp %8 : vector<4x512xf32>
    %cst_7 = arith.constant 1.000000e+00 : f32
    %10 = vector.broadcast %cst_7 : f32 to vector<4x512xf32>
    %11 = arith.addf %10, %9 : vector<4x512xf32>
    %12 = arith.divf %10, %11 : vector<4x512xf32>
    %13 = vector.extract_strided_slice %12 {offsets = [0, 0], sizes = [2, 512], strides = [1, 1]} : vector<4x512xf32> to vector<2x512xf32>
    %14 = vector.extract_strided_slice %12 {offsets = [2, 0], sizes = [2, 512], strides = [1, 1]} : vector<4x512xf32> to vector<2x512xf32>
    %15 = arith.subf %13, %14 : vector<2x512xf32>
    %16 = math.absf %15 : vector<2x512xf32>
    %c0_8 = arith.constant 0 : index
    %c0_9 = arith.constant 0 : index
    %17 = vector.load %arg5[%c0_8, %c0_9] : memref<1x512xf32, #tpu.memory_space<vmem>>, vector<1x512xf32>
    %18 = vector.broadcast %17 : vector<1x512xf32> to vector<2x512xf32>
    %19 = arith.mulf %16, %18 : vector<2x512xf32>
    %cst_10 = arith.constant dense<0.000000e+00> : vector<2xf32>
    %20 = vector.multi_reduction <add>, %19, %cst_10 [1] : vector<2x512xf32> to vector<2xf32>
    %21 = vector.shape_cast %20 : vector<2xf32> to vector<2x1xf32>
    %c0_11 = arith.constant 0 : index
    %c0_12 = arith.constant 0 : index
    %22 = memref.load %arg6[%c0_11, %c0_12] : memref<1x1xf32, #tpu.memory_space<smem>>
    %23 = vector.broadcast %22 : f32 to vector<2x1xf32>
    %24 = arith.addf %21, %23 : vector<2x1xf32>
    %25 = arith.negf %24 : vector<2x1xf32>
    %26 = math.exp %25 : vector<2x1xf32>
    %cst_13 = arith.constant 1.000000e+00 : f32
    %27 = vector.broadcast %cst_13 : f32 to vector<2x1xf32>
    %28 = arith.addf %27, %26 : vector<2x1xf32>
    %29 = arith.divf %27, %28 : vector<2x1xf32>
    %c0_14 = arith.constant 0 : index
    %c0_15 = arith.constant 0 : index
    %30 = vector.load %arg7[%c0_14, %c0_15] : memref<2x1xf32, #tpu.memory_space<vmem>>, vector<2x1xf32>
    tpu.vector_store %arg7[%c0_14, %c0_15], %29 {strides = array<i32>} : memref<2x1xf32, #tpu.memory_space<vmem>>, vector<2x1xf32>,
    return
  }
  func.func @transform_0(%arg0: i32) -> (i32, i32) {
    %c0_i32 = arith.constant 0 : i32
    %c0_i32_0 = arith.constant 0 : i32
    return %arg0, %c0_i32 : i32, i32
  }
  func.func @transform_1(%arg0: i32) -> (i32, i32) {
    %c0_i32 = arith.constant 0 : i32
    %c0_i32_0 = arith.constant 0 : i32
    return %arg0, %c0_i32 : i32, i32
  }
  func.func @transform_2(%arg0: i32) -> (i32, i32) {
    %c0_i32 = arith.constant 0 : i32
    %c0_i32_0 = arith.constant 0 : i32
    %c0_i32_1 = arith.constant 0 : i32
    return %c0_i32, %c0_i32_0 : i32, i32
  }
  func.func @transform_3(%arg0: i32) -> (i32, i32) {
    %c0_i32 = arith.constant 0 : i32
    %c0_i32_0 = arith.constant 0 : i32
    %c0_i32_1 = arith.constant 0 : i32
    return %c0_i32, %c0_i32_0 : i32, i32
  }
  func.func @transform_4(%arg0: i32) -> (i32, i32) {
    %c0_i32 = arith.constant 0 : i32
    %c0_i32_0 = arith.constant 0 : i32
    %c0_i32_1 = arith.constant 0 : i32
    return %c0_i32, %c0_i32_0 : i32, i32
  }
  func.func @transform_5(%arg0: i32) -> (i32, i32) {
    %c0_i32 = arith.constant 0 : i32
    %c0_i32_0 = arith.constant 0 : i32
    %c0_i32_1 = arith.constant 0 : i32
    return %c0_i32, %c0_i32_0 : i32, i32
  }
  func.func @transform_6(%arg0: i32) -> (i32, i32) {
    %c0_i32 = arith.constant 0 : i32
    %c0_i32_0 = arith.constant 0 : i32
    return %arg0, %c0_i32 : i32, i32
  }
}

</mosaic_0001>

<llo_original>
// kernel: tpu_custom_call.1
$region0: #{tpu_custom_call.1}
  #allocation0 [shape = 'u32[]', space=smem, size = 0x4, offset = 0x4, fixed_abs, tag = 'smem constant byte address 0x4 - core index']
  #allocation1 [shape = 'u32[144,128]{1,0:T(1,128)}', space=vmem, size = 0x12000, scoped, tag = 'internal scratch']
  #allocation2 [shape = 'f32[1,1]{1,0:T(1,128)S(6)}', space=smem, size = 0x200, scoped, tag = 'scoped memory for tpu_custom_call.1']
  %s0 = inlined_call_operand.hbm [shape: bf16[2,2048], index: 0, kind: input, shape index: {}]
  %s1 = inlined_call_operand.hbm [shape: bf16[2,2048], index: 1, kind: input, shape index: {}]
  %s2 = inlined_call_operand.hbm [shape: bf16[2048,512], index: 2, kind: input, shape index: {}]
  %s3 = inlined_call_operand.hbm [shape: f32[1,512], index: 3, kind: input, shape index: {}]
  %s4 = inlined_call_operand.hbm [shape: f32[1,512], index: 4, kind: input, shape index: {}]
  %s5 = inlined_call_operand.<no memory space> [shape: f32[1,1], index: 5, kind: input, shape index: {}]
  %s6 = inlined_call_operand.vmem [shape: f32[2,1], index: 6, kind: output, shape index: {}]
  %s7 = sld [smem:[#allocation0]]
  $region54: #{tpu_custom_call.1} parent=0
    _
  %s9 = ssub.s32 1, %s7
  %s10 = scalar_select 0, %s9, %s7
  %11 = sst [smem:[#allocation2]] %s5
  $region1: #{tpu_custom_call.1} parent=0
    #allocation3 [shape = 'u8[8192]{0}', space=vmem, size = 0x2000, scoped, tag = 'input window, operand 0, single buffered']
    #allocation4 [shape = 's32[1]{0}', space=sflag, size = 0x4, scoped, tag = 'scoped memory for tpu_custom_call.1']
    #allocation5 [shape = 'u8[8192]{0}', space=vmem, size = 0x2000, scoped, tag = 'input window, operand 1, single buffered']
    #allocation6 [shape = 's32[1]{0}', space=sflag, size = 0x4, scoped, tag = 'scoped memory for tpu_custom_call.1']
    #allocation7 [shape = 'u8[2097152]{0}', space=vmem, size = 0x200000, scoped, tag = 'input window, operand 2, single buffered']
    #allocation8 [shape = 'u8[2048]{0}', space=vmem, size = 0x800, scoped, tag = 'input window, operand 3, single buffered']
    #allocation9 [shape = 's32[1]{0}', space=sflag, size = 0x4, scoped, tag = 'scoped memory for tpu_custom_call.1']
    #allocation10 [shape = 'u8[2048]{0}', space=vmem, size = 0x800, scoped, tag = 'input window, operand 4, single buffered']
    %12 = vsyncpa [#allocation4], 0
    %13 = vsyncpa [#allocation6], 0
    %14 = vsyncpa [#allocation9], 0
    // Predicated region
    $region2: #{tpu_custom_call.1} parent=1 // pred_check
      _
    $region3: #{tpu_custom_call.1} parent=1 // pred_check_branch
      %16 = sbr.rel (0) target = $region5
    $region4: #{tpu_custom_call.1} parent=1 // pred_region
      %s18 = ssub.s32 256, 256
      %19 = vsyncadd [#allocation4], %s18
      %s21 = sshll.u32 [#allocation3], 4
      %s22 = int_to_ptr.vmem [resolvable:$true] %s21
      %24 = dma.hbm_to_vmem [thread:$0]  %s0, 256, %s22, [#allocation4]
    $region5: #{tpu_custom_call.1} parent=1 // pred_fallthru
      _
    // Predicated region
    $region6: #{tpu_custom_call.1} parent=1 // pred_check
      _
    $region7: #{tpu_custom_call.1} parent=1 // pred_check_branch
      %26 = sbr.rel (0) target = $region9
    $region8: #{tpu_custom_call.1} parent=1 // pred_region
      %s28 = ssub.s32 256, 256
      %29 = vsyncadd [#allocation6], %s28
      %s31 = sshll.u32 [#allocation5], 4
      %s32 = int_to_ptr.vmem [resolvable:$true] %s31
      %34 = dma.hbm_to_vmem [thread:$0]  %s1, 256, %s32, [#allocation6]
    $region9: #{tpu_custom_call.1} parent=1 // pred_fallthru
      _
    // Predicated region
    $region10: #{tpu_custom_call.1} parent=1 // pred_check
      _
    $region11: #{tpu_custom_call.1} parent=1 // pred_check_branch
      %36 = sbr.rel (0) target = $region13
    $region12: #{tpu_custom_call.1} parent=1 // pred_region
      %s38 = ssub.s32 65536, 65536
      %39 = vsyncadd [#allocation6], %s38
      %s40 = sshll.u32 [#allocation7], 4
      %s41 = int_to_ptr.vmem [resolvable:$true] %s40
      %46 = dma.hbm_to_vmem [thread:$0]  %s2, 65536, %s41, [#allocation6], 256, 256, 16
    $region13: #{tpu_custom_call.1} parent=1 // pred_fallthru
      _
    // Predicated region
    $region14: #{tpu_custom_call.1} parent=1 // pred_check
      _
    $region15: #{tpu_custom_call.1} parent=1 // pred_check_branch
      %48 = sbr.rel (0) target = $region17
    $region16: #{tpu_custom_call.1} parent=1 // pred_region
      %s50 = ssub.s32 64, 64
      %51 = vsyncadd [#allocation9], %s50
      %s53 = sshll.u32 [#allocation8], 4
      %s54 = int_to_ptr.vmem [resolvable:$true] %s53
      %56 = dma.hbm_to_vmem [thread:$0]  %s3, 64, %s54, [#allocation9]
    $region17: #{tpu_custom_call.1} parent=1 // pred_fallthru
      _
    // Predicated region
    $region18: #{tpu_custom_call.1} parent=1 // pred_check
      _
    $region19: #{tpu_custom_call.1} parent=1 // pred_check_branch
      %58 = sbr.rel (0) target = $region21
    $region20: #{tpu_custom_call.1} parent=1 // pred_region
      %s60 = ssub.s32 64, 64
      %61 = vsyncadd [#allocation9], %s60
      %s63 = sshll.u32 [#allocation10], 4
      %s64 = int_to_ptr.vmem [resolvable:$true] %s63
      %66 = dma.hbm_to_vmem [thread:$0]  %s4, 64, %s64, [#allocation9]
    $region21: #{tpu_custom_call.1} parent=1 // pred_fallthru
      _
    // Predicated region
    $region22: #{tpu_custom_call.1} parent=1 // pred_check
      _
    $region23: #{tpu_custom_call.1} parent=1 // pred_check_branch
      %68 = sbr.rel (0) target = $region25
    $region24: #{tpu_custom_call.1} parent=1 // pred_region
      _
    $region25: #{tpu_custom_call.1} parent=1 // pred_fallthru
      _
    // Predicated region
    $region26: #{tpu_custom_call.1} parent=1 // pred_check
      _
    $region27: #{tpu_custom_call.1} parent=1 // pred_check_branch
      %70 = sbr.rel (0) target = $region29
    $region28: #{tpu_custom_call.1} parent=1 // pred_region
      %71 = dma.done [#allocation4], 256
    $region29: #{tpu_custom_call.1} parent=1 // pred_fallthru
      _
    // Predicated region
    $region30: #{tpu_custom_call.1} parent=1 // pred_check
      _
    $region31: #{tpu_custom_call.1} parent=1 // pred_check_branch
      %73 = sbr.rel (0) target = $region33
    $region32: #{tpu_custom_call.1} parent=1 // pred_region
      %74 = dma.done [#allocation6], 256
    $region33: #{tpu_custom_call.1} parent=1 // pred_fallthru
      _
    // Predicated region
    $region34: #{tpu_custom_call.1} parent=1 // pred_check
      _
    $region35: #{tpu_custom_call.1} parent=1 // pred_check_branch
      %76 = sbr.rel (0) target = $region37
    $region36: #{tpu_custom_call.1} parent=1 // pred_region
      %77 = dma.done [#allocation6], 65536
    $region37: #{tpu_custom_call.1} parent=1 // pred_fallthru
      _
    // Predicated region
    $region38: #{tpu_custom_call.1} parent=1 // pred_check
      _
    $region39: #{tpu_custom_call.1} parent=1 // pred_check_branch
      %79 = sbr.rel (0) target = $region41
    $region40: #{tpu_custom_call.1} parent=1 // pred_region
      %80 = dma.done [#allocation9], 64
    $region41: #{tpu_custom_call.1} parent=1 // pred_fallthru
      _
    // Predicated region
    $region42: #{tpu_custom_call.1} parent=1 // pred_check
      _
    $region43: #{tpu_custom_call.1} parent=1 // pred_check_branch
      %82 = sbr.rel (0) target = $region45
    $region44: #{tpu_custom_call.1} parent=1 // pred_region
      %83 = dma.done [#allocation9], 64
    $region45: #{tpu_custom_call.1} parent=1 // pred_fallthru
      _
    %v84 = vld [vmem:[#allocation3] sm:$0xff]
    %v85 = vld [vmem:[#allocation3 + $0x8] sm:$0xff]
    %v86 = vld [vmem:[#allocation5] sm:$0xff]
    %v87 = vld [vmem:[#allocation5 + $0x8] sm:$0xff]
    %v90 = vcombine.high %v84, %v84
    %v92 = vunpack.c.l.s4 1966171168
    %v93 = vunpack.c.0.s8 %v92
    %v94 = vlaneseq
    %v95 = vshrl.u32 %v94, 7
    %v96 = vsub.s32 %v93, %v95
    %v97 = vrot.slane %v84, %v96
    %v99 = vunpack.c.l.s4 1966171168
    %v100 = vunpack.c.0.s8 %v99
    %v101 = vlaneseq
    %v102 = vshrl.u32 %v101, 7
    %v103 = vsub.s32 %v100, %v102
    %v104 = vrot.slane %v90, %v103
    %v105 = vcombine.high %v97, %v97
    %v106 = vcombine.high %v104, %v104
    %v108 = vunpack.c.l.s4 1966171168
    %v109 = vunpack.c.0.s8 %v108
    %v110 = vlaneseq
    %v111 = vshrl.u32 %v110, 7
    %v112 = vsub.s32 %v109, %v111
    %v113 = vrot.slane %v97, %v112
    %v115 = vunpack.c.l.s4 1966171168
    %v116 = vunpack.c.0.s8 %v115
    %v117 = vlaneseq
    %v118 = vshrl.u32 %v117, 7
    %v119 = vsub.s32 %v116, %v118
    %v120 = vrot.slane %v104, %v119
    %v122 = vunpack.c.l.s4 1966171168
    %v123 = vunpack.c.0.s8 %v122
    %v124 = vlaneseq
    %v125 = vshrl.u32 %v124, 7
    %v126 = vsub.s32 %v123, %v125
    %v127 = vrot.slane %v105, %v126
    %v129 = vunpack.c.l.s4 1966171168
    %v130 = vunpack.c.0.s8 %v129
    %v131 = vlaneseq
    %v132 = vshrl.u32 %v131, 7
    %v133 = vsub.s32 %v130, %v132
    %v134 = vrot.slane %v106, %v133
    %v135 = vcombine.high %v113, %v113
    %v136 = vcombine.high %v120, %v120
    %v137 = vcombine.high %v127, %v127
    %v138 = vcombine.high %v134, %v134
    %v139 = vcombine.high %v85, %v85
    %v141 = vunpack.c.l.s4 1966171168
    %v142 = vunpack.c.0.s8 %v141
    %v143 = vlaneseq
    %v144 = vshrl.u32 %v143, 7
    %v145 = vsub.s32 %v142, %v144
    %v146 = vrot.slane %v85, %v145
    %v148 = vunpack.c.l.s4 1966171168
    %v149 = vunpack.c.0.s8 %v148
    %v150 = vlaneseq
    %v151 = vshrl.u32 %v150, 7
    %v152 = vsub.s32 %v149, %v151
    %v153 = vrot.slane %v139, %v152
    %v154 = vcombine.high %v146, %v146
    %v155 = vcombine.high %v153, %v153
    %v157 = vunpack.c.l.s4 1966171168
    %v158 = vunpack.c.0.s8 %v157
    %v159 = vlaneseq
    %v160 = vshrl.u32 %v159, 7
    %v161 = vsub.s32 %v158, %v160
    %v162 = vrot.slane %v146, %v161
    %v164 = vunpack.c.l.s4 1966171168
    %v165 = vunpack.c.0.s8 %v164
    %v166 = vlaneseq
    %v167 = vshrl.u32 %v166, 7
    %v168 = vsub.s32 %v165, %v167
    %v169 = vrot.slane %v153, %v168
    %v171 = vunpack.c.l.s4 1966171168
    %v172 = vunpack.c.0.s8 %v171
    %v173 = vlaneseq
    %v174 = vshrl.u32 %v173, 7
    %v175 = vsub.s32 %v172, %v174
    %v176 = vrot.slane %v154, %v175
    %v178 = vunpack.c.l.s4 1966171168
    %v179 = vunpack.c.0.s8 %v178
    %v180 = vlaneseq
    %v181 = vshrl.u32 %v180, 7
    %v182 = vsub.s32 %v179, %v181
    %v183 = vrot.slane %v155, %v182
    %v184 = vcombine.high %v162, %v162
    %v185 = vcombine.high %v169, %v169
    %v186 = vcombine.high %v176, %v176
    %v187 = vcombine.high %v183, %v183
    %v190 = vcombine.low %v86, %v86
    %v192 = vunpack.c.l.s4 1966171168
    %v193 = vunpack.c.0.s8 %v192
    %v194 = vlaneseq
    %v195 = vshrl.u32 %v194, 7
    %v196 = vsub.s32 %v193, %v195
    %v197 = vrot.slane %v190, %v196
    %v199 = vunpack.c.l.s4 1966171168
    %v200 = vunpack.c.0.s8 %v199
    %v201 = vlaneseq
    %v202 = vshrl.u32 %v201, 7
    %v203 = vsub.s32 %v200, %v202
    %v204 = vrot.slane %v86, %v203
    %v205 = vcombine.high %v197, %v197
    %v206 = vcombine.high %v204, %v204
    %v208 = vunpack.c.l.s4 1966171168
    %v209 = vunpack.c.0.s8 %v208
    %v210 = vlaneseq
    %v211 = vshrl.u32 %v210, 7
    %v212 = vsub.s32 %v209, %v211
    %v213 = vrot.slane %v197, %v212
    %v215 = vunpack.c.l.s4 1966171168
    %v216 = vunpack.c.0.s8 %v215
    %v217 = vlaneseq
    %v218 = vshrl.u32 %v217, 7
    %v219 = vsub.s32 %v216, %v218
    %v220 = vrot.slane %v204, %v219
    %v222 = vunpack.c.l.s4 1966171168
    %v223 = vunpack.c.0.s8 %v222
    %v224 = vlaneseq
    %v225 = vshrl.u32 %v224, 7
    %v226 = vsub.s32 %v223, %v225
    %v227 = vrot.slane %v205, %v226
    %v229 = vunpack.c.l.s4 1966171168
    %v230 = vunpack.c.0.s8 %v229
    %v231 = vlaneseq
    %v232 = vshrl.u32 %v231, 7
    %v233 = vsub.s32 %v230, %v232
    %v234 = vrot.slane %v206, %v233
    %v235 = vcombine.high %v213, %v213
    %v236 = vcombine.high %v220, %v220
    %v237 = vcombine.high %v227, %v227
    %v238 = vcombine.high %v234, %v234
    %v239 = vcombine.low %v87, %v87
    %v241 = vunpack.c.l.s4 1966171168
    %v242 = vunpack.c.0.s8 %v241
    %v243 = vlaneseq
    %v244 = vshrl.u32 %v243, 7
    %v245 = vsub.s32 %v242, %v244
    %v246 = vrot.slane %v239, %v245
    %v248 = vunpack.c.l.s4 1966171168
    %v249 = vunpack.c.0.s8 %v248
    %v250 = vlaneseq
    %v251 = vshrl.u32 %v250, 7
    %v252 = vsub.s32 %v249, %v251
    %v253 = vrot.slane %v87, %v252
    %v254 = vcombine.high %v246, %v246
    %v255 = vcombine.high %v253, %v253
    %v257 = vunpack.c.l.s4 1966171168
    %v258 = vunpack.c.0.s8 %v257
    %v259 = vlaneseq
    %v260 = vshrl.u32 %v259, 7
    %v261 = vsub.s32 %v258, %v260
    %v262 = vrot.slane %v246, %v261
    %v264 = vunpack.c.l.s4 1966171168
    %v265 = vunpack.c.0.s8 %v264
    %v266 = vlaneseq
    %v267 = vshrl.u32 %v266, 7
    %v268 = vsub.s32 %v265, %v267
    %v269 = vrot.slane %v253, %v268
    %v271 = vunpack.c.l.s4 1966171168
    %v272 = vunpack.c.0.s8 %v271
    %v273 = vlaneseq
    %v274 = vshrl.u32 %v273, 7
    %v275 = vsub.s32 %v272, %v274
    %v276 = vrot.slane %v254, %v275
    %v278 = vunpack.c.l.s4 1966171168
    %v279 = vunpack.c.0.s8 %v278
    %v280 = vlaneseq
    %v281 = vshrl.u32 %v280, 7
    %v282 = vsub.s32 %v279, %v281
    %v283 = vrot.slane %v255, %v282
    %v284 = vcombine.high %v262, %v262
    %v285 = vcombine.high %v269, %v269
    %v286 = vcombine.high %v276, %v276
    %v287 = vcombine.high %v283, %v283
    %vm288 = vcmask 1040384
    %v291 = vsel %vm288, %v113, %v213
    %v295 = vsel %vm288, %v127, %v227
    %v299 = vsel %vm288, %v135, %v235
    %v303 = vsel %vm288, %v137, %v237
    %v307 = vsel %vm288, %v120, %v220
    %v311 = vsel %vm288, %v134, %v234
    %v315 = vsel %vm288, %v136, %v236
    %v319 = vsel %vm288, %v138, %v238
    %v323 = vsel %vm288, %v162, %v262
    %v327 = vsel %vm288, %v176, %v276
    %v331 = vsel %vm288, %v184, %v284
    %v335 = vsel %vm288, %v186, %v286
    %v339 = vsel %vm288, %v169, %v269
    %v343 = vsel %vm288, %v183, %v283
    %v347 = vsel %vm288, %v185, %v285
    %v351 = vsel %vm288, %v187, %v287
    %v353 = vld [vmem:[#allocation7] sm:$0xff]
    %v354 = vld [vmem:[#allocation7 + $0x8] sm:$0xff]
    %v355 = vld [vmem:[#allocation7 + $0x10] sm:$0xff]
    %v356 = vld [vmem:[#allocation7 + $0x18] sm:$0xff]
    %v357 = vld [vmem:[#allocation7 + $0x20] sm:$0xff]
    %v358 = vld [vmem:[#allocation7 + $0x28] sm:$0xff]
    %v359 = vld [vmem:[#allocation7 + $0x30] sm:$0xff]
    %v360 = vld [vmem:[#allocation7 + $0x38] sm:$0xff]
    %v361 = vld [vmem:[#allocation7 + $0x40] sm:$0xff]
    %v362 = vld [vmem:[#allocation7 + $0x48] sm:$0xff]
    %v363 = vld [vmem:[#allocation7 + $0x50] sm:$0xff]
    %v364 = vld [vmem:[#allocation7 + $0x58] sm:$0xff]
    %v365 = vld [vmem:[#allocation7 + $0x60] sm:$0xff]
    %v366 = vld [vmem:[#allocation7 + $0x68] sm:$0xff]
    %v367 = vld [vmem:[#allocation7 + $0x70] sm:$0xff]
    %v368 = vld [vmem:[#allocation7 + $0x78] sm:$0xff]
    %v369 = vld [vmem:[#allocation7 + $0x80] sm:$0xff]
    %v370 = vld [vmem:[#allocation7 + $0x88] sm:$0xff]
    %v371 = vld [vmem:[#allocation7 + $0x90] sm:$0xff]
    %v372 = vld [vmem:[#allocation7 + $0x98] sm:$0xff]
    %v373 = vld [vmem:[#allocation7 + $0xa0] sm:$0xff]
    %v374 = vld [vmem:[#allocation7 + $0xa8] sm:$0xff]
    %v375 = vld [vmem:[#allocation7 + $0xb0] sm:$0xff]
    %v376 = vld [vmem:[#allocation7 + $0xb8] sm:$0xff]
    %v377 = vld [vmem:[#allocation7 + $0xc0] sm:$0xff]
    %v378 = vld [vmem:[#allocation7 + $0xc8] sm:$0xff]
    %v379 = vld [vmem:[#allocation7 + $0xd0] sm:$0xff]
    %v380 = vld [vmem:[#allocation7 + $0xd8] sm:$0xff]
    %v381 = vld [vmem:[#allocation7 + $0xe0] sm:$0xff]
    %v382 = vld [vmem:[#allocation7 + $0xe8] sm:$0xff]
    %v383 = vld [vmem:[#allocation7 + $0xf0] sm:$0xff]
    %v384 = vld [vmem:[#allocation7 + $0xf8] sm:$0xff]
    %v385 = vld [vmem:[#allocation7 + $0x100] sm:$0xff]
    %v386 = vld [vmem:[#allocation7 + $0x108] sm:$0xff]
    %v387 = vld [vmem:[#allocation7 + $0x110] sm:$0xff]
    %v388 = vld [vmem:[#allocation7 + $0x118] sm:$0xff]
    %v389 = vld [vmem:[#allocation7 + $0x120] sm:$0xff]
    %v390 = vld [vmem:[#allocation7 + $0x128] sm:$0xff]
    %v391 = vld [vmem:[#allocation7 + $0x130] sm:$0xff]
    %v392 = vld [vmem:[#allocation7 + $0x138] sm:$0xff]
    %v393 = vld [vmem:[#allocation7 + $0x140] sm:$0xff]
    %v394 = vld [vmem:[#allocation7 + $0x148] sm:$0xff]
    %v395 = vld [vmem:[#allocation7 + $0x150] sm:$0xff]
    %v396 = vld [vmem:[#allocation7 + $0x158] sm:$0xff]
    %v397 = vld [vmem:[#allocation7 + $0x160] sm:$0xff]
    %v398 = vld [vmem:[#allocation7 + $0x168] sm:$0xff]
    %v399 = vld [vmem:[#allocation7 + $0x170] sm:$0xff]
    %v400 = vld [vmem:[#allocation7 + $0x178] sm:$0xff]
    %v401 = vld [vmem:[#allocation7 + $0x180] sm:$0xff]
    %v402 = vld [vmem:[#allocation7 + $0x188] sm:$0xff]
    %v403 = vld [vmem:[#allocation7 + $0x190] sm:$0xff]
    %v404 = vld [vmem:[#allocation7 + $0x198] sm:$0xff]
    %v405 = vld [vmem:[#allocation7 + $0x1a0] sm:$0xff]
    %v406 = vld [vmem:[#allocation7 + $0x1a8] sm:$0xff]
    %v407 = vld [vmem:[#allocation7 + $0x1b0] sm:$0xff]
    %v408 = vld [vmem:[#allocation7 + $0x1b8] sm:$0xff]
    %v409 = vld [vmem:[#allocation7 + $0x1c0] sm:$0xff]
    %v410 = vld [vmem:[#allocation7 + $0x1c8] sm:$0xff]
    %v411 = vld [vmem:[#allocation7 + $0x1d0] sm:$0xff]
    %v412 = vld [vmem:[#allocation7 + $0x1d8] sm:$0xff]
    %v413 = vld [vmem:[#allocation7 + $0x1e0] sm:$0xff]
    %v414 = vld [vmem:[#allocation7 + $0x1e8] sm:$0xff]
    %v415 = vld [vmem:[#allocation7 + $0x1f0] sm:$0xff]
    %v416 = vld [vmem:[#allocation7 + $0x1f8] sm:$0xff]
    %v417 = vld [vmem:[#allocation7 + $0x200] sm:$0xff]
    %v418 = vld [vmem:[#allocation7 + $0x208] sm:$0xff]
    %v419 = vld [vmem:[#allocation7 + $0x210] sm:$0xff]
    %v420 = vld [vmem:[#allocation7 + $0x218] sm:$0xff]
    %v421 = vld [vmem:[#allocation7 + $0x220] sm:$0xff]
    %v422 = vld [vmem:[#allocation7 + $0x228] sm:$0xff]
    %v423 = vld [vmem:[#allocation7 + $0x230] sm:$0xff]
    %v424 = vld [vmem:[#allocation7 + $0x238] sm:$0xff]
    %v425 = vld [vmem:[#allocation7 + $0x240] sm:$0xff]
    %v426 = vld [vmem:[#allocation7 + $0x248] sm:$0xff]
    %v427 = vld [vmem:[#allocation7 + $0x250] sm:$0xff]
    %v428 = vld [vmem:[#allocation7 + $0x258] sm:$0xff]
    %v429 = vld [vmem:[#allocation7 + $0x260] sm:$0xff]
    %v430 = vld [vmem:[#allocation7 + $0x268] sm:$0xff]
    %v431 = vld [vmem:[#allocation7 + $0x270] sm:$0xff]
    %v432 = vld [vmem:[#allocation7 + $0x278] sm:$0xff]
    %v433 = vld [vmem:[#allocation7 + $0x280] sm:$0xff]
    %v434 = vld [vmem:[#allocation7 + $0x288] sm:$0xff]
    %v435 = vld [vmem:[#allocation7 + $0x290] sm:$0xff]
    %v436 = vld [vmem:[#allocation7 + $0x298] sm:$0xff]
    %v437 = vld [vmem:[#allocation7 + $0x2a0] sm:$0xff]
    %v438 = vld [vmem:[#allocation7 + $0x2a8] sm:$0xff]
    %v439 = vld [vmem:[#allocation7 + $0x2b0] sm:$0xff]
    %v440 = vld [vmem:[#allocation7 + $0x2b8] sm:$0xff]
    %v441 = vld [vmem:[#allocation7 + $0x2c0] sm:$0xff]
    %v442 = vld [vmem:[#allocation7 + $0x2c8] sm:$0xff]
    %v443 = vld [vmem:[#allocation7 + $0x2d0] sm:$0xff]
    %v444 = vld [vmem:[#allocation7 + $0x2d8] sm:$0xff]
    %v445 = vld [vmem:[#allocation7 + $0x2e0] sm:$0xff]
    %v446 = vld [vmem:[#allocation7 + $0x2e8] sm:$0xff]
    %v447 = vld [vmem:[#allocation7 + $0x2f0] sm:$0xff]
    %v448 = vld [vmem:[#allocation7 + $0x2f8] sm:$0xff]
    %v449 = vld [vmem:[#allocation7 + $0x300] sm:$0xff]
    %v450 = vld [vmem:[#allocation7 + $0x308] sm:$0xff]
    %v451 = vld [vmem:[#allocation7 + $0x310] sm:$0xff]
    %v452 = vld [vmem:[#allocation7 + $0x318] sm:$0xff]
    %v453 = vld [vmem:[#allocation7 + $0x320] sm:$0xff]
    %v454 = vld [vmem:[#allocation7 + $0x328] sm:$0xff]
    %v455 = vld [vmem:[#allocation7 + $0x330] sm:$0xff]
    %v456 = vld [vmem:[#allocation7 + $0x338] sm:$0xff]
    %v457 = vld [vmem:[#allocation7 + $0x340] sm:$0xff]
    %v458 = vld [vmem:[#allocation7 + $0x348] sm:$0xff]
    %v459 = vld [vmem:[#allocation7 + $0x350] sm:$0xff]
    %v460 = vld [vmem:[#allocation7 + $0x358] sm:$0xff]
    %v461 = vld [vmem:[#allocation7 + $0x360] sm:$0xff]
    %v462 = vld [vmem:[#allocation7 + $0x368] sm:$0xff]
    %v463 = vld [vmem:[#allocation7 + $0x370] sm:$0xff]
    %v464 = vld [vmem:[#allocation7 + $0x378] sm:$0xff]
    %v465 = vld [vmem:[#allocation7 + $0x380] sm:$0xff]
    %v466 = vld [vmem:[#allocation7 + $0x388] sm:$0xff]
    %v467 = vld [vmem:[#allocation7 + $0x390] sm:$0xff]
    %v468 = vld [vmem:[#allocation7 + $0x398] sm:$0xff]
    %v469 = vld [vmem:[#allocation7 + $0x3a0] sm:$0xff]
    %v470 = vld [vmem:[#allocation7 + $0x3a8] sm:$0xff]
    %v471 = vld [vmem:[#allocation7 + $0x3b0] sm:$0xff]
    %v472 = vld [vmem:[#allocation7 + $0x3b8] sm:$0xff]
    %v473 = vld [vmem:[#allocation7 + $0x3c0] sm:$0xff]
    %v474 = vld [vmem:[#allocation7 + $0x3c8] sm:$0xff]
    %v475 = vld [vmem:[#allocation7 + $0x3d0] sm:$0xff]
    %v476 = vld [vmem:[#allocation7 + $0x3d8] sm:$0xff]
    %v477 = vld [vmem:[#allocation7 + $0x3e0] sm:$0xff]
    %v478 = vld [vmem:[#allocation7 + $0x3e8] sm:$0xff]
    %v479 = vld [vmem:[#allocation7 + $0x3f0] sm:$0xff]
    %v480 = vld [vmem:[#allocation7 + $0x3f8] sm:$0xff]
    %v481 = vld [vmem:[#allocation7 + $0x400] sm:$0xff]
    %v482 = vld [vmem:[#allocation7 + $0x408] sm:$0xff]
    %v483 = vld [vmem:[#allocation7 + $0x410] sm:$0xff]
    %v484 = vld [vmem:[#allocation7 + $0x418] sm:$0xff]
    %v485 = vld [vmem:[#allocation7 + $0x420] sm:$0xff]
    %v486 = vld [vmem:[#allocation7 + $0x428] sm:$0xff]
    %v487 = vld [vmem:[#allocation7 + $0x430] sm:$0xff]
    %v488 = vld [vmem:[#allocation7 + $0x438] sm:$0xff]
    %v489 = vld [vmem:[#allocation7 + $0x440] sm:$0xff]
    %v490 = vld [vmem:[#allocation7 + $0x448] sm:$0xff]
    %v491 = vld [vmem:[#allocation7 + $0x450] sm:$0xff]
    %v492 = vld [vmem:[#allocation7 + $0x458] sm:$0xff]
    %v493 = vld [vmem:[#allocation7 + $0x460] sm:$0xff]
    %v494 = vld [vmem:[#allocation7 + $0x468] sm:$0xff]
    %v495 = vld [vmem:[#allocation7 + $0x470] sm:$0xff]
    %v496 = vld [vmem:[#allocation7 + $0x478] sm:$0xff]
    %v497 = vld [vmem:[#allocation7 + $0x480] sm:$0xff]
    %v498 = vld [vmem:[#allocation7 + $0x488] sm:$0xff]
    %v499 = vld [vmem:[#allocation7 + $0x490] sm:$0xff]
    %v500 = vld [vmem:[#allocation7 + $0x498] sm:$0xff]
    %v501 = vld [vmem:[#allocation7 + $0x4a0] sm:$0xff]
    %v502 = vld [vmem:[#allocation7 + $0x4a8] sm:$0xff]
    %v503 = vld [vmem:[#allocation7 + $0x4b0] sm:$0xff]
    %v504 = vld [vmem:[#allocation7 + $0x4b8] sm:$0xff]
    %v505 = vld [vmem:[#allocation7 + $0x4c0] sm:$0xff]
    %v506 = vld [vmem:[#allocation7 + $0x4c8] sm:$0xff]
    %v507 = vld [vmem:[#allocation7 + $0x4d0] sm:$0xff]
    %v508 = vld [vmem:[#allocation7 + $0x4d8] sm:$0xff]
    %v509 = vld [vmem:[#allocation7 + $0x4e0] sm:$0xff]
    %v510 = vld [vmem:[#allocation7 + $0x4e8] sm:$0xff]
    %v511 = vld [vmem:[#allocation7 + $0x4f0] sm:$0xff]
    %v512 = vld [vmem:[#allocation7 + $0x4f8] sm:$0xff]
    %v513 = vld [vmem:[#allocation7 + $0x500] sm:$0xff]
    %v514 = vld [vmem:[#allocation7 + $0x508] sm:$0xff]
    %v515 = vld [vmem:[#allocation7 + $0x510] sm:$0xff]
    %v516 = vld [vmem:[#allocation7 + $0x518] sm:$0xff]
    %v517 = vld [vmem:[#allocation7 + $0x520] sm:$0xff]
    %v518 = vld [vmem:[#allocation7 + $0x528] sm:$0xff]
    %v519 = vld [vmem:[#allocation7 + $0x530] sm:$0xff]
    %v520 = vld [vmem:[#allocation7 + $0x538] sm:$0xff]
    %v521 = vld [vmem:[#allocation7 + $0x540] sm:$0xff]
    %v522 = vld [vmem:[#allocation7 + $0x548] sm:$0xff]
    %v523 = vld [vmem:[#allocation7 + $0x550] sm:$0xff]
    %v524 = vld [vmem:[#allocation7 + $0x558] sm:$0xff]
    %v525 = vld [vmem:[#allocation7 + $0x560] sm:$0xff]
    %v526 = vld [vmem:[#allocation7 + $0x568] sm:$0xff]
    %v527 = vld [vmem:[#allocation7 + $0x570] sm:$0xff]
    %v528 = vld [vmem:[#allocation7 + $0x578] sm:$0xff]
    %v529 = vld [vmem:[#allocation7 + $0x580] sm:$0xff]
    %v530 = vld [vmem:[#allocation7 + $0x588] sm:$0xff]
    %v531 = vld [vmem:[#allocation7 + $0x590] sm:$0xff]
    %v532 = vld [vmem:[#allocation7 + $0x598] sm:$0xff]
    %v533 = vld [vmem:[#allocation7 + $0x5a0] sm:$0xff]
    %v534 = vld [vmem:[#allocation7 + $0x5a8] sm:$0xff]
    %v535 = vld [vmem:[#allocation7 + $0x5b0] sm:$0xff]
    %v536 = vld [vmem:[#allocation7 + $0x5b8] sm:$0xff]
    %v537 = vld [vmem:[#allocation7 + $0x5c0] sm:$0xff]
    %v538 = vld [vmem:[#allocation7 + $0x5c8] sm:$0xff]
    %v539 = vld [vmem:[#allocation7 + $0x5d0] sm:$0xff]
    %v540 = vld [vmem:[#allocation7 + $0x5d8] sm:$0xff]
    %v541 = vld [vmem:[#allocation7 + $0x5e0] sm:$0xff]
    %v542 = vld [vmem:[#allocation7 + $0x5e8] sm:$0xff]
    %v543 = vld [vmem:[#allocation7 + $0x5f0] sm:$0xff]
    %v544 = vld [vmem:[#allocation7 + $0x5f8] sm:$0xff]
    %v545 = vld [vmem:[#allocation7 + $0x600] sm:$0xff]
    %v546 = vld [vmem:[#allocation7 + $0x608] sm:$0xff]
    %v547 = vld [vmem:[#allocation7 + $0x610] sm:$0xff]
    %v548 = vld [vmem:[#allocation7 + $0x618] sm:$0xff]
    %v549 = vld [vmem:[#allocation7 + $0x620] sm:$0xff]
    %v550 = vld [vmem:[#allocation7 + $0x628] sm:$0xff]
    %v551 = vld [vmem:[#allocation7 + $0x630] sm:$0xff]
    %v552 = vld [vmem:[#allocation7 + $0x638] sm:$0xff]
    %v553 = vld [vmem:[#allocation7 + $0x640] sm:$0xff]
    %v554 = vld [vmem:[#allocation7 + $0x648] sm:$0xff]
    %v555 = vld [vmem:[#allocation7 + $0x650] sm:$0xff]
    %v556 = vld [vmem:[#allocation7 + $0x658] sm:$0xff]
    %v557 = vld [vmem:[#allocation7 + $0x660] sm:$0xff]
    %v558 = vld [vmem:[#allocation7 + $0x668] sm:$0xff]
    %v559 = vld [vmem:[#allocation7 + $0x670] sm:$0xff]
    %v560 = vld [vmem:[#allocation7 + $0x678] sm:$0xff]
    %v561 = vld [vmem:[#allocation7 + $0x680] sm:$0xff]
    %v562 = vld [vmem:[#allocation7 + $0x688] sm:$0xff]
    %v563 = vld [vmem:[#allocation7 + $0x690] sm:$0xff]
    %v564 = vld [vmem:[#allocation7 + $0x698] sm:$0xff]
    %v565 = vld [vmem:[#allocation7 + $0x6a0] sm:$0xff]
    %v566 = vld [vmem:[#allocation7 + $0x6a8] sm:$0xff]
    %v567 = vld [vmem:[#allocation7 + $0x6b0] sm:$0xff]
    %v568 = vld [vmem:[#allocation7 + $0x6b8] sm:$0xff]
    %v569 = vld [vmem:[#allocation7 + $0x6c0] sm:$0xff]
    %v570 = vld [vmem:[#allocation7 + $0x6c8] sm:$0xff]
    %v571 = vld [vmem:[#allocation7 + $0x6d0] sm:$0xff]
    %v572 = vld [vmem:[#allocation7 + $0x6d8] sm:$0xff]
    %v573 = vld [vmem:[#allocation7 + $0x6e0] sm:$0xff]
    %v574 = vld [vmem:[#allocation7 + $0x6e8] sm:$0xff]
    %v575 = vld [vmem:[#allocation7 + $0x6f0] sm:$0xff]
    %v576 = vld [vmem:[#allocation7 + $0x6f8] sm:$0xff]
    %v577 = vld [vmem:[#allocation7 + $0x700] sm:$0xff]
    %v578 = vld [vmem:[#allocation7 + $0x708] sm:$0xff]
    %v579 = vld [vmem:[#allocation7 + $0x710] sm:$0xff]
    %v580 = vld [vmem:[#allocation7 + $0x718] sm:$0xff]
    %v581 = vld [vmem:[#allocation7 + $0x720] sm:$0xff]
    %v582 = vld [vmem:[#allocation7 + $0x728] sm:$0xff]
    %v583 = vld [vmem:[#allocation7 + $0x730] sm:$0xff]
    %v584 = vld [vmem:[#allocation7 + $0x738] sm:$0xff]
    %v585 = vld [vmem:[#allocation7 + $0x740] sm:$0xff]
    %v586 = vld [vmem:[#allocation7 + $0x748] sm:$0xff]
    %v587 = vld [vmem:[#allocation7 + $0x750] sm:$0xff]
    %v588 = vld [vmem:[#allocation7 + $0x758] sm:$0xff]
    %v589 = vld [vmem:[#allocation7 + $0x760] sm:$0xff]
    %v590 = vld [vmem:[#allocation7 + $0x768] sm:$0xff]
    %v591 = vld [vmem:[#allocation7 + $0x770] sm:$0xff]
    %v592 = vld [vmem:[#allocation7 + $0x778] sm:$0xff]
    %v593 = vld [vmem:[#allocation7 + $0x780] sm:$0xff]
    %v594 = vld [vmem:[#allocation7 + $0x788] sm:$0xff]
    %v595 = vld [vmem:[#allocation7 + $0x790] sm:$0xff]
    %v596 = vld [vmem:[#allocation7 + $0x798] sm:$0xff]
    %v597 = vld [vmem:[#allocation7 + $0x7a0] sm:$0xff]
    %v598 = vld [vmem:[#allocation7 + $0x7a8] sm:$0xff]
    %v599 = vld [vmem:[#allocation7 + $0x7b0] sm:$0xff]
    %v600 = vld [vmem:[#allocation7 + $0x7b8] sm:$0xff]
    %v601 = vld [vmem:[#allocation7 + $0x7c0] sm:$0xff]
    %v602 = vld [vmem:[#allocation7 + $0x7c8] sm:$0xff]
    %v603 = vld [vmem:[#allocation7 + $0x7d0] sm:$0xff]
    %v604 = vld [vmem:[#allocation7 + $0x7d8] sm:$0xff]
    %v605 = vld [vmem:[#allocation7 + $0x7e0] sm:$0xff]
    %v606 = vld [vmem:[#allocation7 + $0x7e8] sm:$0xff]
    %v607 = vld [vmem:[#allocation7 + $0x7f0] sm:$0xff]
    %v608 = vld [vmem:[#allocation7 + $0x7f8] sm:$0xff]
    %v609 = vld [vmem:[#allocation7 + $0x800] sm:$0xff]
    %v610 = vld [vmem:[#allocation7 + $0x808] sm:$0xff]
    %v611 = vld [vmem:[#allocation7 + $0x810] sm:$0xff]
    %v612 = vld [vmem:[#allocation7 + $0x818] sm:$0xff]
    %v613 = vld [vmem:[#allocation7 + $0x820] sm:$0xff]
    %v614 = vld [vmem:[#allocation7 + $0x828] sm:$0xff]
    %v615 = vld [vmem:[#allocation7 + $0x830] sm:$0xff]
    %v616 = vld [vmem:[#allocation7 + $0x838] sm:$0xff]
    %v617 = vld [vmem:[#allocation7 + $0x840] sm:$0xff]
    %v618 = vld [vmem:[#allocation7 + $0x848] sm:$0xff]
    %v619 = vld [vmem:[#allocation7 + $0x850] sm:$0xff]
    %v620 = vld [vmem:[#allocation7 + $0x858] sm:$0xff]
    %v621 = vld [vmem:[#allocation7 + $0x860] sm:$0xff]
    %v622 = vld [vmem:[#allocation7 + $0x868] sm:$0xff]
    %v623 = vld [vmem:[#allocation7 + $0x870] sm:$0xff]
    %v624 = vld [vmem:[#allocation7 + $0x878] sm:$0xff]
    %v625 = vld [vmem:[#allocation7 + $0x880] sm:$0xff]
    %v626 = vld [vmem:[#allocation7 + $0x888] sm:$0xff]
    %v627 = vld [vmem:[#allocation7 + $0x890] sm:$0xff]
    %v628 = vld [vmem:[#allocation7 + $0x898] sm:$0xff]
    %v629 = vld [vmem:[#allocation7 + $0x8a0] sm:$0xff]
    %v630 = vld [vmem:[#allocation7 + $0x8a8] sm:$0xff]
    %v631 = vld [vmem:[#allocation7 + $0x8b0] sm:$0xff]
    %v632 = vld [vmem:[#allocation7 + $0x8b8] sm:$0xff]
    %v633 = vld [vmem:[#allocation7 + $0x8c0] sm:$0xff]
    %v634 = vld [vmem:[#allocation7 + $0x8c8] sm:$0xff]
    %v635 = vld [vmem:[#allocation7 + $0x8d0] sm:$0xff]
    %v636 = vld [vmem:[#allocation7 + $0x8d8] sm:$0xff]
    %v637 = vld [vmem:[#allocation7 + $0x8e0] sm:$0xff]
    %v638 = vld [vmem:[#allocation7 + $0x8e8] sm:$0xff]
    %v639 = vld [vmem:[#allocation7 + $0x8f0] sm:$0xff]
    %v640 = vld [vmem:[#allocation7 + $0x8f8] sm:$0xff]
    %v641 = vld [vmem:[#allocation7 + $0x900] sm:$0xff]
    %v642 = vld [vmem:[#allocation7 + $0x908] sm:$0xff]
    %v643 = vld [vmem:[#allocation7 + $0x910] sm:$0xff]
    %v644 = vld [vmem:[#allocation7 + $0x918] sm:$0xff]
    %v645 = vld [vmem:[#allocation7 + $0x920] sm:$0xff]
    %v646 = vld [vmem:[#allocation7 + $0x928] sm:$0xff]
    %v647 = vld [vmem:[#allocation7 + $0x930] sm:$0xff]
    %v648 = vld [vmem:[#allocation7 + $0x938] sm:$0xff]
    %v649 = vld [vmem:[#allocation7 + $0x940] sm:$0xff]
    %v650 = vld [vmem:[#allocation7 + $0x948] sm:$0xff]
    %v651 = vld [vmem:[#allocation7 + $0x950] sm:$0xff]
    %v652 = vld [vmem:[#allocation7 + $0x958] sm:$0xff]
    %v653 = vld [vmem:[#allocation7 + $0x960] sm:$0xff]
    %v654 = vld [vmem:[#allocation7 + $0x968] sm:$0xff]
    %v655 = vld [vmem:[#allocation7 + $0x970] sm:$0xff]
    %v656 = vld [vmem:[#allocation7 + $0x978] sm:$0xff]
    %v657 = vld [vmem:[#allocation7 + $0x980] sm:$0xff]
    %v658 = vld [vmem:[#allocation7 + $0x988] sm:$0xff]
    %v659 = vld [vmem:[#allocation7 + $0x990] sm:$0xff]
    %v660 = vld [vmem:[#allocation7 + $0x998] sm:$0xff]
    %v661 = vld [vmem:[#allocation7 + $0x9a0] sm:$0xff]
    %v662 = vld [vmem:[#allocation7 + $0x9a8] sm:$0xff]
    %v663 = vld [vmem:[#allocation7 + $0x9b0] sm:$0xff]
    %v664 = vld [vmem:[#allocation7 + $0x9b8] sm:$0xff]
    %v665 = vld [vmem:[#allocation7 + $0x9c0] sm:$0xff]
    %v666 = vld [vmem:[#allocation7 + $0x9c8] sm:$0xff]
    %v667 = vld [vmem:[#allocation7 + $0x9d0] sm:$0xff]
    %v668 = vld [vmem:[#allocation7 + $0x9d8] sm:$0xff]
    %v669 = vld [vmem:[#allocation7 + $0x9e0] sm:$0xff]
    %v670 = vld [vmem:[#allocation7 + $0x9e8] sm:$0xff]
    %v671 = vld [vmem:[#allocation7 + $0x9f0] sm:$0xff]
    %v672 = vld [vmem:[#allocation7 + $0x9f8] sm:$0xff]
    %v673 = vld [vmem:[#allocation7 + $0xa00] sm:$0xff]
    %v674 = vld [vmem:[#allocation7 + $0xa08] sm:$0xff]
    %v675 = vld [vmem:[#allocation7 + $0xa10] sm:$0xff]
    %v676 = vld [vmem:[#allocation7 + $0xa18] sm:$0xff]
    %v677 = vld [vmem:[#allocation7 + $0xa20] sm:$0xff]
    %v678 = vld [vmem:[#allocation7 + $0xa28] sm:$0xff]
    %v679 = vld [vmem:[#allocation7 + $0xa30] sm:$0xff]
    %v680 = vld [vmem:[#allocation7 + $0xa38] sm:$0xff]
    %v681 = vld [vmem:[#allocation7 + $0xa40] sm:$0xff]
    %v682 = vld [vmem:[#allocation7 + $0xa48] sm:$0xff]
    %v683 = vld [vmem:[#allocation7 + $0xa50] sm:$0xff]
    %v684 = vld [vmem:[#allocation7 + $0xa58] sm:$0xff]
    %v685 = vld [vmem:[#allocation7 + $0xa60] sm:$0xff]
    %v686 = vld [vmem:[#allocation7 + $0xa68] sm:$0xff]
    %v687 = vld [vmem:[#allocation7 + $0xa70] sm:$0xff]
    %v688 = vld [vmem:[#allocation7 + $0xa78] sm:$0xff]
    %v689 = vld [vmem:[#allocation7 + $0xa80] sm:$0xff]
    %v690 = vld [vmem:[#allocation7 + $0xa88] sm:$0xff]
    %v691 = vld [vmem:[#allocation7 + $0xa90] sm:$0xff]
    %v692 = vld [vmem:[#allocation7 + $0xa98] sm:$0xff]
    %v693 = vld [vmem:[#allocation7 + $0xaa0] sm:$0xff]
    %v694 = vld [vmem:[#allocation7 + $0xaa8] sm:$0xff]
    %v695 = vld [vmem:[#allocation7 + $0xab0] sm:$0xff]
    %v696 = vld [vmem:[#allocation7 + $0xab8] sm:$0xff]
    %v697 = vld [vmem:[#allocation7 + $0xac0] sm:$0xff]
    %v698 = vld [vmem:[#allocation7 + $0xac8] sm:$0xff]
    %v699 = vld [vmem:[#allocation7 + $0xad0] sm:$0xff]
    %v700 = vld [vmem:[#allocation7 + $0xad8] sm:$0xff]
    %v701 = vld [vmem:[#allocation7 + $0xae0] sm:$0xff]
    %v702 = vld [vmem:[#allocation7 + $0xae8] sm:$0xff]
    %v703 = vld [vmem:[#allocation7 + $0xaf0] sm:$0xff]
    %v704 = vld [vmem:[#allocation7 + $0xaf8] sm:$0xff]
    %v705 = vld [vmem:[#allocation7 + $0xb00] sm:$0xff]
    %v706 = vld [vmem:[#allocation7 + $0xb08] sm:$0xff]
    %v707 = vld [vmem:[#allocation7 + $0xb10] sm:$0xff]
    %v708 = vld [vmem:[#allocation7 + $0xb18] sm:$0xff]
    %v709 = vld [vmem:[#allocation7 + $0xb20] sm:$0xff]
    %v710 = vld [vmem:[#allocation7 + $0xb28] sm:$0xff]
    %v711 = vld [vmem:[#allocation7 + $0xb30] sm:$0xff]
    %v712 = vld [vmem:[#allocation7 + $0xb38] sm:$0xff]
    %v713 = vld [vmem:[#allocation7 + $0xb40] sm:$0xff]
    %v714 = vld [vmem:[#allocation7 + $0xb48] sm:$0xff]
    %v715 = vld [vmem:[#allocation7 + $0xb50] sm:$0xff]
    %v716 = vld [vmem:[#allocation7 + $0xb58] sm:$0xff]
    %v717 = vld [vmem:[#allocation7 + $0xb60] sm:$0xff]
    %v718 = vld [vmem:[#allocation7 + $0xb68] sm:$0xff]
    %v719 = vld [vmem:[#allocation7 + $0xb70] sm:$0xff]
    %v720 = vld [vmem:[#allocation7 + $0xb78] sm:$0xff]
    %v721 = vld [vmem:[#allocation7 + $0xb80] sm:$0xff]
    %v722 = vld [vmem:[#allocation7 + $0xb88] sm:$0xff]
    %v723 = vld [vmem:[#allocation7 + $0xb90] sm:$0xff]
    %v724 = vld [vmem:[#allocation7 + $0xb98] sm:$0xff]
    %v725 = vld [vmem:[#allocation7 + $0xba0] sm:$0xff]
    %v726 = vld [vmem:[#allocation7 + $0xba8] sm:$0xff]
    %v727 = vld [vmem:[#allocation7 + $0xbb0] sm:$0xff]
    %v728 = vld [vmem:[#allocation7 + $0xbb8] sm:$0xff]
    %v729 = vld [vmem:[#allocation7 + $0xbc0] sm:$0xff]
    %v730 = vld [vmem:[#allocation7 + $0xbc8] sm:$0xff]
    %v731 = vld [vmem:[#allocation7 + $0xbd0] sm:$0xff]
    %v732 = vld [vmem:[#allocation7 + $0xbd8] sm:$0xff]
    %v733 = vld [vmem:[#allocation7 + $0xbe0] sm:$0xff]
    %v734 = vld [vmem:[#allocation7 + $0xbe8] sm:$0xff]
    %v735 = vld [vmem:[#allocation7 + $0xbf0] sm:$0xff]
    %v736 = vld [vmem:[#allocation7 + $0xbf8] sm:$0xff]
    %v737 = vld [vmem:[#allocation7 + $0xc00] sm:$0xff]
    %v738 = vld [vmem:[#allocation7 + $0xc08] sm:$0xff]
    %v739 = vld [vmem:[#allocation7 + $0xc10] sm:$0xff]
    %v740 = vld [vmem:[#allocation7 + $0xc18] sm:$0xff]
    %v741 = vld [vmem:[#allocation7 + $0xc20] sm:$0xff]
    %v742 = vld [vmem:[#allocation7 + $0xc28] sm:$0xff]
    %v743 = vld [vmem:[#allocation7 + $0xc30] sm:$0xff]
    %v744 = vld [vmem:[#allocation7 + $0xc38] sm:$0xff]
    %v745 = vld [vmem:[#allocation7 + $0xc40] sm:$0xff]
    %v746 = vld [vmem:[#allocation7 + $0xc48] sm:$0xff]
    %v747 = vld [vmem:[#allocation7 + $0xc50] sm:$0xff]
    %v748 = vld [vmem:[#allocation7 + $0xc58] sm:$0xff]
    %v749 = vld [vmem:[#allocation7 + $0xc60] sm:$0xff]
    %v750 = vld [vmem:[#allocation7 + $0xc68] sm:$0xff]
    %v751 = vld [vmem:[#allocation7 + $0xc70] sm:$0xff]
    %v752 = vld [vmem:[#allocation7 + $0xc78] sm:$0xff]
    %v753 = vld [vmem:[#allocation7 + $0xc80] sm:$0xff]
    %v754 = vld [vmem:[#allocation7 + $0xc88] sm:$0xff]
    %v755 = vld [vmem:[#allocation7 + $0xc90] sm:$0xff]
    %v756 = vld [vmem:[#allocation7 + $0xc98] sm:$0xff]
    %v757 = vld [vmem:[#allocation7 + $0xca0] sm:$0xff]
    %v758 = vld [vmem:[#allocation7 + $0xca8] sm:$0xff]
    %v759 = vld [vmem:[#allocation7 + $0xcb0] sm:$0xff]
    %v760 = vld [vmem:[#allocation7 + $0xcb8] sm:$0xff]
    %v761 = vld [vmem:[#allocation7 + $0xcc0] sm:$0xff]
    %v762 = vld [vmem:[#allocation7 + $0xcc8] sm:$0xff]
    %v763 = vld [vmem:[#allocation7 + $0xcd0] sm:$0xff]
    %v764 = vld [vmem:[#allocation7 + $0xcd8] sm:$0xff]
    %v765 = vld [vmem:[#allocation7 + $0xce0] sm:$0xff]
    %v766 = vld [vmem:[#allocation7 + $0xce8] sm:$0xff]
    %v767 = vld [vmem:[#allocation7 + $0xcf0] sm:$0xff]
    %v768 = vld [vmem:[#allocation7 + $0xcf8] sm:$0xff]
    %v769 = vld [vmem:[#allocation7 + $0xd00] sm:$0xff]
    %v770 = vld [vmem:[#allocation7 + $0xd08] sm:$0xff]
    %v771 = vld [vmem:[#allocation7 + $0xd10] sm:$0xff]
    %v772 = vld [vmem:[#allocation7 + $0xd18] sm:$0xff]
    %v773 = vld [vmem:[#allocation7 + $0xd20] sm:$0xff]
    %v774 = vld [vmem:[#allocation7 + $0xd28] sm:$0xff]
    %v775 = vld [vmem:[#allocation7 + $0xd30] sm:$0xff]
    %v776 = vld [vmem:[#allocation7 + $0xd38] sm:$0xff]
    %v777 = vld [vmem:[#allocation7 + $0xd40] sm:$0xff]
    %v778 = vld [vmem:[#allocation7 + $0xd48] sm:$0xff]
    %v779 = vld [vmem:[#allocation7 + $0xd50] sm:$0xff]
    %v780 = vld [vmem:[#allocation7 + $0xd58] sm:$0xff]
    %v781 = vld [vmem:[#allocation7 + $0xd60] sm:$0xff]
    %v782 = vld [vmem:[#allocation7 + $0xd68] sm:$0xff]
    %v783 = vld [vmem:[#allocation7 + $0xd70] sm:$0xff]
    %v784 = vld [vmem:[#allocation7 + $0xd78] sm:$0xff]
    %v785 = vld [vmem:[#allocation7 + $0xd80] sm:$0xff]
    %v786 = vld [vmem:[#allocation7 + $0xd88] sm:$0xff]
    %v787 = vld [vmem:[#allocation7 + $0xd90] sm:$0xff]
    %v788 = vld [vmem:[#allocation7 + $0xd98] sm:$0xff]
    %v789 = vld [vmem:[#allocation7 + $0xda0] sm:$0xff]
    %v790 = vld [vmem:[#allocation7 + $0xda8] sm:$0xff]
    %v791 = vld [vmem:[#allocation7 + $0xdb0] sm:$0xff]
    %v792 = vld [vmem:[#allocation7 + $0xdb8] sm:$0xff]
    %v793 = vld [vmem:[#allocation7 + $0xdc0] sm:$0xff]
    %v794 = vld [vmem:[#allocation7 + $0xdc8] sm:$0xff]
    %v795 = vld [vmem:[#allocation7 + $0xdd0] sm:$0xff]
    %v796 = vld [vmem:[#allocation7 + $0xdd8] sm:$0xff]
    %v797 = vld [vmem:[#allocation7 + $0xde0] sm:$0xff]
    %v798 = vld [vmem:[#allocation7 + $0xde8] sm:$0xff]
    %v799 = vld [vmem:[#allocation7 + $0xdf0] sm:$0xff]
    %v800 = vld [vmem:[#allocation7 + $0xdf8] sm:$0xff]
    %v801 = vld [vmem:[#allocation7 + $0xe00] sm:$0xff]
    %v802 = vld [vmem:[#allocation7 + $0xe08] sm:$0xff]
    %v803 = vld [vmem:[#allocation7 + $0xe10] sm:$0xff]
    %v804 = vld [vmem:[#allocation7 + $0xe18] sm:$0xff]
    %v805 = vld [vmem:[#allocation7 + $0xe20] sm:$0xff]
    %v806 = vld [vmem:[#allocation7 + $0xe28] sm:$0xff]
    %v807 = vld [vmem:[#allocation7 + $0xe30] sm:$0xff]
    %v808 = vld [vmem:[#allocation7 + $0xe38] sm:$0xff]
    %v809 = vld [vmem:[#allocation7 + $0xe40] sm:$0xff]
    %v810 = vld [vmem:[#allocation7 + $0xe48] sm:$0xff]
    %v811 = vld [vmem:[#allocation7 + $0xe50] sm:$0xff]
    %v812 = vld [vmem:[#allocation7 + $0xe58] sm:$0xff]
    %v813 = vld [vmem:[#allocation7 + $0xe60] sm:$0xff]
    %v814 = vld [vmem:[#allocation7 + $0xe68] sm:$0xff]
    %v815 = vld [vmem:[#allocation7 + $0xe70] sm:$0xff]
    %v816 = vld [vmem:[#allocation7 + $0xe78] sm:$0xff]
    %v817 = vld [vmem:[#allocation7 + $0xe80] sm:$0xff]
    %v818 = vld [vmem:[#allocation7 + $0xe88] sm:$0xff]
    %v819 = vld [vmem:[#allocation7 + $0xe90] sm:$0xff]
    %v820 = vld [vmem:[#allocation7 + $0xe98] sm:$0xff]
    %v821 = vld [vmem:[#allocation7 + $0xea0] sm:$0xff]
    %v822 = vld [vmem:[#allocation7 + $0xea8] sm:$0xff]
    %v823 = vld [vmem:[#allocation7 + $0xeb0] sm:$0xff]
    %v824 = vld [vmem:[#allocation7 + $0xeb8] sm:$0xff]
    %v825 = vld [vmem:[#allocation7 + $0xec0] sm:$0xff]
    %v826 = vld [vmem:[#allocation7 + $0xec8] sm:$0xff]
    %v827 = vld [vmem:[#allocation7 + $0xed0] sm:$0xff]
    %v828 = vld [vmem:[#allocation7 + $0xed8] sm:$0xff]
    %v829 = vld [vmem:[#allocation7 + $0xee0] sm:$0xff]
    %v830 = vld [vmem:[#allocation7 + $0xee8] sm:$0xff]
    %v831 = vld [vmem:[#allocation7 + $0xef0] sm:$0xff]
    %v832 = vld [vmem:[#allocation7 + $0xef8] sm:$0xff]
    %v833 = vld [vmem:[#allocation7 + $0xf00] sm:$0xff]
    %v834 = vld [vmem:[#allocation7 + $0xf08] sm:$0xff]
    %v835 = vld [vmem:[#allocation7 + $0xf10] sm:$0xff]
    %v836 = vld [vmem:[#allocation7 + $0xf18] sm:$0xff]
    %v837 = vld [vmem:[#allocation7 + $0xf20] sm:$0xff]
    %v838 = vld [vmem:[#allocation7 + $0xf28] sm:$0xff]
    %v839 = vld [vmem:[#allocation7 + $0xf30] sm:$0xff]
    %v840 = vld [vmem:[#allocation7 + $0xf38] sm:$0xff]
    %v841 = vld [vmem:[#allocation7 + $0xf40] sm:$0xff]
    %v842 = vld [vmem:[#allocation7 + $0xf48] sm:$0xff]
    %v843 = vld [vmem:[#allocation7 + $0xf50] sm:$0xff]
    %v844 = vld [vmem:[#allocation7 + $0xf58] sm:$0xff]
    %v845 = vld [vmem:[#allocation7 + $0xf60] sm:$0xff]
    %v846 = vld [vmem:[#allocation7 + $0xf68] sm:$0xff]
    %v847 = vld [vmem:[#allocation7 + $0xf70] sm:$0xff]
    %v848 = vld [vmem:[#allocation7 + $0xf78] sm:$0xff]
    %v849 = vld [vmem:[#allocation7 + $0xf80] sm:$0xff]
    %v850 = vld [vmem:[#allocation7 + $0xf88] sm:$0xff]
    %v851 = vld [vmem:[#allocation7 + $0xf90] sm:$0xff]
    %v852 = vld [vmem:[#allocation7 + $0xf98] sm:$0xff]
    %v853 = vld [vmem:[#allocation7 + $0xfa0] sm:$0xff]
    %v854 = vld [vmem:[#allocation7 + $0xfa8] sm:$0xff]
    %v855 = vld [vmem:[#allocation7 + $0xfb0] sm:$0xff]
    %v856 = vld [vmem:[#allocation7 + $0xfb8] sm:$0xff]
    %v857 = vld [vmem:[#allocation7 + $0xfc0] sm:$0xff]
    %v858 = vld [vmem:[#allocation7 + $0xfc8] sm:$0xff]
    %v859 = vld [vmem:[#allocation7 + $0xfd0] sm:$0xff]
    %v860 = vld [vmem:[#allocation7 + $0xfd8] sm:$0xff]
    %v861 = vld [vmem:[#allocation7 + $0xfe0] sm:$0xff]
    %v862 = vld [vmem:[#allocation7 + $0xfe8] sm:$0xff]
    %v863 = vld [vmem:[#allocation7 + $0xff0] sm:$0xff]
    %v864 = vld [vmem:[#allocation7 + $0xff8] sm:$0xff]
    %v865 = vld [vmem:[#allocation8] sm:$0xf]
    %v867 = vlaneseq
    %v868 = vshrl.u32 %v867, 7
    %v869 = vsub.s32 0, %v868
    %v870 = vrot.slane %v865, %v869
    %v871 = vlaneseq
    %v872 = vshrl.u32 %v871, 7
    %v873 = vsub.s32 1, %v872
    %v874 = vrot.slane %v865, %v873
    %v875 = vlaneseq
    %v876 = vshrl.u32 %v875, 7
    %v877 = vsub.s32 2, %v876
    %v878 = vrot.slane %v865, %v877
    %v879 = vlaneseq
    %v880 = vshrl.u32 %v879, 7
    %v881 = vsub.s32 3, %v880
    %v882 = vrot.slane %v865, %v881
    %v1399 = vunpack.c.l.b16 %v353
    %v1400 = vunpack.c.h.b16 %v353
    %v1401 = vunpack.c.l.b16 %v354
    %v1402 = vunpack.c.h.b16 %v354
    %v1403 = vunpack.c.l.b16 %v355
    %v1404 = vunpack.c.h.b16 %v355
    %v1405 = vunpack.c.l.b16 %v356
    %v1406 = vunpack.c.h.b16 %v356
    %v1407 = vunpack.c.l.b16 %v357
    %v1408 = vunpack.c.h.b16 %v357
    %v1409 = vunpack.c.l.b16 %v358
    %v1410 = vunpack.c.h.b16 %v358
    %v1411 = vunpack.c.l.b16 %v359
    %v1412 = vunpack.c.h.b16 %v359
    %v1413 = vunpack.c.l.b16 %v360
    %v1414 = vunpack.c.h.b16 %v360
    %v1415 = vunpack.c.l.b16 %v361
    %v1416 = vunpack.c.h.b16 %v361
    %v1417 = vunpack.c.l.b16 %v362
    %v1418 = vunpack.c.h.b16 %v362
    %v1419 = vunpack.c.l.b16 %v363
    %v1420 = vunpack.c.h.b16 %v363
    %v1421 = vunpack.c.l.b16 %v364
    %v1422 = vunpack.c.h.b16 %v364
    %v1423 = vunpack.c.l.b16 %v365
    %v1424 = vunpack.c.h.b16 %v365
    %v1425 = vunpack.c.l.b16 %v366
    %v1426 = vunpack.c.h.b16 %v366
    %v1427 = vunpack.c.l.b16 %v367
    %v1428 = vunpack.c.h.b16 %v367
    %v1429 = vunpack.c.l.b16 %v368
    %v1430 = vunpack.c.h.b16 %v368
    %v1431 = vunpack.c.l.b16 %v369
    %v1432 = vunpack.c.h.b16 %v369
    %v1433 = vunpack.c.l.b16 %v370
    %v1434 = vunpack.c.h.b16 %v370
    %v1435 = vunpack.c.l.b16 %v371
    %v1436 = vunpack.c.h.b16 %v371
    %v1437 = vunpack.c.l.b16 %v372
    %v1438 = vunpack.c.h.b16 %v372
    %v1439 = vunpack.c.l.b16 %v373
    %v1440 = vunpack.c.h.b16 %v373
    %v1441 = vunpack.c.l.b16 %v374
    %v1442 = vunpack.c.h.b16 %v374
    %v1443 = vunpack.c.l.b16 %v375
    %v1444 = vunpack.c.h.b16 %v375
    %v1445 = vunpack.c.l.b16 %v376
    %v1446 = vunpack.c.h.b16 %v376
    %v1447 = vunpack.c.l.b16 %v377
    %v1448 = vunpack.c.h.b16 %v377
    %v1449 = vunpack.c.l.b16 %v378
    %v1450 = vunpack.c.h.b16 %v378
    %v1451 = vunpack.c.l.b16 %v379
    %v1452 = vunpack.c.h.b16 %v379
    %v1453 = vunpack.c.l.b16 %v380
    %v1454 = vunpack.c.h.b16 %v380
    %v1455 = vunpack.c.l.b16 %v381
    %v1456 = vunpack.c.h.b16 %v381
    %v1457 = vunpack.c.l.b16 %v382
    %v1458 = vunpack.c.h.b16 %v382
    %v1459 = vunpack.c.l.b16 %v383
    %v1460 = vunpack.c.h.b16 %v383
    %v1461 = vunpack.c.l.b16 %v384
    %v1462 = vunpack.c.h.b16 %v384
    %v1463 = vunpack.c.l.b16 %v385
    %v1464 = vunpack.c.h.b16 %v385
    %v1465 = vunpack.c.l.b16 %v386
    %v1466 = vunpack.c.h.b16 %v386
    %v1467 = vunpack.c.l.b16 %v387
    %v1468 = vunpack.c.h.b16 %v387
    %v1469 = vunpack.c.l.b16 %v388
    %v1470 = vunpack.c.h.b16 %v388
    %v1471 = vunpack.c.l.b16 %v389
    %v1472 = vunpack.c.h.b16 %v389
    %v1473 = vunpack.c.l.b16 %v390
    %v1474 = vunpack.c.h.b16 %v390
    %v1475 = vunpack.c.l.b16 %v391
    %v1476 = vunpack.c.h.b16 %v391
    %v1477 = vunpack.c.l.b16 %v392
    %v1478 = vunpack.c.h.b16 %v392
    %v1479 = vunpack.c.l.b16 %v393
    %v1480 = vunpack.c.h.b16 %v393
    %v1481 = vunpack.c.l.b16 %v394
    %v1482 = vunpack.c.h.b16 %v394
    %v1483 = vunpack.c.l.b16 %v395
    %v1484 = vunpack.c.h.b16 %v395
    %v1485 = vunpack.c.l.b16 %v396
    %v1486 = vunpack.c.h.b16 %v396
    %v1487 = vunpack.c.l.b16 %v397
    %v1488 = vunpack.c.h.b16 %v397
    %v1489 = vunpack.c.l.b16 %v398
    %v1490 = vunpack.c.h.b16 %v398
    %v1491 = vunpack.c.l.b16 %v399
    %v1492 = vunpack.c.h.b16 %v399
    %v1493 = vunpack.c.l.b16 %v400
    %v1494 = vunpack.c.h.b16 %v400
    %v1495 = vunpack.c.l.b16 %v401
    %v1496 = vunpack.c.h.b16 %v401
    %v1497 = vunpack.c.l.b16 %v402
    %v1498 = vunpack.c.h.b16 %v402
    %v1499 = vunpack.c.l.b16 %v403
    %v1500 = vunpack.c.h.b16 %v403
    %v1501 = vunpack.c.l.b16 %v404
    %v1502 = vunpack.c.h.b16 %v404
    %v1503 = vunpack.c.l.b16 %v405
    %v1504 = vunpack.c.h.b16 %v405
    %v1505 = vunpack.c.l.b16 %v406
    %v1506 = vunpack.c.h.b16 %v406
    %v1507 = vunpack.c.l.b16 %v407
    %v1508 = vunpack.c.h.b16 %v407
    %v1509 = vunpack.c.l.b16 %v408
    %v1510 = vunpack.c.h.b16 %v408
    %v1511 = vunpack.c.l.b16 %v409
    %v1512 = vunpack.c.h.b16 %v409
    %v1513 = vunpack.c.l.b16 %v410
    %v1514 = vunpack.c.h.b16 %v410
    %v1515 = vunpack.c.l.b16 %v411
    %v1516 = vunpack.c.h.b16 %v411
    %v1517 = vunpack.c.l.b16 %v412
    %v1518 = vunpack.c.h.b16 %v412
    %v1519 = vunpack.c.l.b16 %v413
    %v1520 = vunpack.c.h.b16 %v413
    %v1521 = vunpack.c.l.b16 %v414
    %v1522 = vunpack.c.h.b16 %v414
    %v1523 = vunpack.c.l.b16 %v415
    %v1524 = vunpack.c.h.b16 %v415
    %v1525 = vunpack.c.l.b16 %v416
    %v1526 = vunpack.c.h.b16 %v416
    %v1527 = vunpack.c.l.b16 %v417
    %v1528 = vunpack.c.h.b16 %v417
    %v1529 = vunpack.c.l.b16 %v418
    %v1530 = vunpack.c.h.b16 %v418
    %v1531 = vunpack.c.l.b16 %v419
    %v1532 = vunpack.c.h.b16 %v419
    %v1533 = vunpack.c.l.b16 %v420
    %v1534 = vunpack.c.h.b16 %v420
    %v1535 = vunpack.c.l.b16 %v421
    %v1536 = vunpack.c.h.b16 %v421
    %v1537 = vunpack.c.l.b16 %v422
    %v1538 = vunpack.c.h.b16 %v422
    %v1539 = vunpack.c.l.b16 %v423
    %v1540 = vunpack.c.h.b16 %v423
    %v1541 = vunpack.c.l.b16 %v424
    %v1542 = vunpack.c.h.b16 %v424
    %v1543 = vunpack.c.l.b16 %v425
    %v1544 = vunpack.c.h.b16 %v425
    %v1545 = vunpack.c.l.b16 %v426
    %v1546 = vunpack.c.h.b16 %v426
    %v1547 = vunpack.c.l.b16 %v427
    %v1548 = vunpack.c.h.b16 %v427
    %v1549 = vunpack.c.l.b16 %v428
    %v1550 = vunpack.c.h.b16 %v428
    %v1551 = vunpack.c.l.b16 %v429
    %v1552 = vunpack.c.h.b16 %v429
    %v1553 = vunpack.c.l.b16 %v430
    %v1554 = vunpack.c.h.b16 %v430
    %v1555 = vunpack.c.l.b16 %v431
    %v1556 = vunpack.c.h.b16 %v431
    %v1557 = vunpack.c.l.b16 %v432
    %v1558 = vunpack.c.h.b16 %v432
    %v1559 = vunpack.c.l.b16 %v433
    %v1560 = vunpack.c.h.b16 %v433
    %v1561 = vunpack.c.l.b16 %v434
    %v1562 = vunpack.c.h.b16 %v434
    %v1563 = vunpack.c.l.b16 %v435
    %v1564 = vunpack.c.h.b16 %v435
    %v1565 = vunpack.c.l.b16 %v436
    %v1566 = vunpack.c.h.b16 %v436
    %v1567 = vunpack.c.l.b16 %v437
    %v1568 = vunpack.c.h.b16 %v437
    %v1569 = vunpack.c.l.b16 %v438
    %v1570 = vunpack.c.h.b16 %v438
    %v1571 = vunpack.c.l.b16 %v439
    %v1572 = vunpack.c.h.b16 %v439
    %v1573 = vunpack.c.l.b16 %v440
    %v1574 = vunpack.c.h.b16 %v440
    %v1575 = vunpack.c.l.b16 %v441
    %v1576 = vunpack.c.h.b16 %v441
    %v1577 = vunpack.c.l.b16 %v442
    %v1578 = vunpack.c.h.b16 %v442
    %v1579 = vunpack.c.l.b16 %v443
    %v1580 = vunpack.c.h.b16 %v443
    %v1581 = vunpack.c.l.b16 %v444
    %v1582 = vunpack.c.h.b16 %v444
    %v1583 = vunpack.c.l.b16 %v445
    %v1584 = vunpack.c.h.b16 %v445
    %v1585 = vunpack.c.l.b16 %v446
    %v1586 = vunpack.c.h.b16 %v446
    %v1587 = vunpack.c.l.b16 %v447
    %v1588 = vunpack.c.h.b16 %v447
    %v1589 = vunpack.c.l.b16 %v448
    %v1590 = vunpack.c.h.b16 %v448
    %v1591 = vunpack.c.l.b16 %v449
    %v1592 = vunpack.c.h.b16 %v449
    %v1593 = vunpack.c.l.b16 %v450
    %v1594 = vunpack.c.h.b16 %v450
    %v1595 = vunpack.c.l.b16 %v451
    %v1596 = vunpack.c.h.b16 %v451
    %v1597 = vunpack.c.l.b16 %v452
    %v1598 = vunpack.c.h.b16 %v452
    %v1599 = vunpack.c.l.b16 %v453
    %v1600 = vunpack.c.h.b16 %v453
    %v1601 = vunpack.c.l.b16 %v454
    %v1602 = vunpack.c.h.b16 %v454
    %v1603 = vunpack.c.l.b16 %v455
    %v1604 = vunpack.c.h.b16 %v455
    %v1605 = vunpack.c.l.b16 %v456
    %v1606 = vunpack.c.h.b16 %v456
    %v1607 = vunpack.c.l.b16 %v457
    %v1608 = vunpack.c.h.b16 %v457
    %v1609 = vunpack.c.l.b16 %v458
    %v1610 = vunpack.c.h.b16 %v458
    %v1611 = vunpack.c.l.b16 %v459
    %v1612 = vunpack.c.h.b16 %v459
    %v1613 = vunpack.c.l.b16 %v460
    %v1614 = vunpack.c.h.b16 %v460
    %v1615 = vunpack.c.l.b16 %v461
    %v1616 = vunpack.c.h.b16 %v461
    %v1617 = vunpack.c.l.b16 %v462
    %v1618 = vunpack.c.h.b16 %v462
    %v1619 = vunpack.c.l.b16 %v463
    %v1620 = vunpack.c.h.b16 %v463
    %v1621 = vunpack.c.l.b16 %v464
    %v1622 = vunpack.c.h.b16 %v464
    %v1623 = vunpack.c.l.b16 %v465
    %v1624 = vunpack.c.h.b16 %v465
    %v1625 = vunpack.c.l.b16 %v466
    %v1626 = vunpack.c.h.b16 %v466
    %v1627 = vunpack.c.l.b16 %v467
    %v1628 = vunpack.c.h.b16 %v467
    %v1629 = vunpack.c.l.b16 %v468
    %v1630 = vunpack.c.h.b16 %v468
    %v1631 = vunpack.c.l.b16 %v469
    %v1632 = vunpack.c.h.b16 %v469
    %v1633 = vunpack.c.l.b16 %v470
    %v1634 = vunpack.c.h.b16 %v470
    %v1635 = vunpack.c.l.b16 %v471
    %v1636 = vunpack.c.h.b16 %v471
    %v1637 = vunpack.c.l.b16 %v472
    %v1638 = vunpack.c.h.b16 %v472
    %v1639 = vunpack.c.l.b16 %v473
    %v1640 = vunpack.c.h.b16 %v473
    %v1641 = vunpack.c.l.b16 %v474
    %v1642 = vunpack.c.h.b16 %v474
    %v1643 = vunpack.c.l.b16 %v475
    %v1644 = vunpack.c.h.b16 %v475
    %v1645 = vunpack.c.l.b16 %v476
    %v1646 = vunpack.c.h.b16 %v476
    %v1647 = vunpack.c.l.b16 %v477
    %v1648 = vunpack.c.h.b16 %v477
    %v1649 = vunpack.c.l.b16 %v478
    %v1650 = vunpack.c.h.b16 %v478
    %v1651 = vunpack.c.l.b16 %v479
    %v1652 = vunpack.c.h.b16 %v479
    %v1653 = vunpack.c.l.b16 %v480
    %v1654 = vunpack.c.h.b16 %v480
    %v1655 = vunpack.c.l.b16 %v481
    %v1656 = vunpack.c.h.b16 %v481
    %v1657 = vunpack.c.l.b16 %v482
    %v1658 = vunpack.c.h.b16 %v482
    %v1659 = vunpack.c.l.b16 %v483
    %v1660 = vunpack.c.h.b16 %v483
    %v1661 = vunpack.c.l.b16 %v484
    %v1662 = vunpack.c.h.b16 %v484
    %v1663 = vunpack.c.l.b16 %v485
    %v1664 = vunpack.c.h.b16 %v485
    %v1665 = vunpack.c.l.b16 %v486
    %v1666 = vunpack.c.h.b16 %v486
    %v1667 = vunpack.c.l.b16 %v487
    %v1668 = vunpack.c.h.b16 %v487
    %v1669 = vunpack.c.l.b16 %v488
    %v1670 = vunpack.c.h.b16 %v488
    %v1671 = vunpack.c.l.b16 %v489
    %v1672 = vunpack.c.h.b16 %v489
    %v1673 = vunpack.c.l.b16 %v490
    %v1674 = vunpack.c.h.b16 %v490
    %v1675 = vunpack.c.l.b16 %v491
    %v1676 = vunpack.c.h.b16 %v491
    %v1677 = vunpack.c.l.b16 %v492
    %v1678 = vunpack.c.h.b16 %v492
    %v1679 = vunpack.c.l.b16 %v493
    %v1680 = vunpack.c.h.b16 %v493
    %v1681 = vunpack.c.l.b16 %v494
    %v1682 = vunpack.c.h.b16 %v494
    %v1683 = vunpack.c.l.b16 %v495
    %v1684 = vunpack.c.h.b16 %v495
    %v1685 = vunpack.c.l.b16 %v496
    %v1686 = vunpack.c.h.b16 %v496
    %v1687 = vunpack.c.l.b16 %v497
    %v1688 = vunpack.c.h.b16 %v497
    %v1689 = vunpack.c.l.b16 %v498
    %v1690 = vunpack.c.h.b16 %v498
    %v1691 = vunpack.c.l.b16 %v499
    %v1692 = vunpack.c.h.b16 %v499
    %v1693 = vunpack.c.l.b16 %v500
    %v1694 = vunpack.c.h.b16 %v500
    %v1695 = vunpack.c.l.b16 %v501
    %v1696 = vunpack.c.h.b16 %v501
    %v1697 = vunpack.c.l.b16 %v502
    %v1698 = vunpack.c.h.b16 %v502
    %v1699 = vunpack.c.l.b16 %v503
    %v1700 = vunpack.c.h.b16 %v503
    %v1701 = vunpack.c.l.b16 %v504
    %v1702 = vunpack.c.h.b16 %v504
    %v1703 = vunpack.c.l.b16 %v505
    %v1704 = vunpack.c.h.b16 %v505
    %v1705 = vunpack.c.l.b16 %v506
    %v1706 = vunpack.c.h.b16 %v506
    %v1707 = vunpack.c.l.b16 %v507
    %v1708 = vunpack.c.h.b16 %v507
    %v1709 = vunpack.c.l.b16 %v508
    %v1710 = vunpack.c.h.b16 %v508
    %v1711 = vunpack.c.l.b16 %v509
    %v1712 = vunpack.c.h.b16 %v509
    %v1713 = vunpack.c.l.b16 %v510
    %v1714 = vunpack.c.h.b16 %v510
    %v1715 = vunpack.c.l.b16 %v511
    %v1716 = vunpack.c.h.b16 %v511
    %v1717 = vunpack.c.l.b16 %v512
    %v1718 = vunpack.c.h.b16 %v512
    %v1719 = vunpack.c.l.b16 %v513
    %v1720 = vunpack.c.h.b16 %v513
    %v1721 = vunpack.c.l.b16 %v514
    %v1722 = vunpack.c.h.b16 %v514
    %v1723 = vunpack.c.l.b16 %v515
    %v1724 = vunpack.c.h.b16 %v515
    %v1725 = vunpack.c.l.b16 %v516
    %v1726 = vunpack.c.h.b16 %v516
    %v1727 = vunpack.c.l.b16 %v517
    %v1728 = vunpack.c.h.b16 %v517
    %v1729 = vunpack.c.l.b16 %v518
    %v1730 = vunpack.c.h.b16 %v518
    %v1731 = vunpack.c.l.b16 %v519
    %v1732 = vunpack.c.h.b16 %v519
    %v1733 = vunpack.c.l.b16 %v520
    %v1734 = vunpack.c.h.b16 %v520
    %v1735 = vunpack.c.l.b16 %v521
    %v1736 = vunpack.c.h.b16 %v521
    %v1737 = vunpack.c.l.b16 %v522
    %v1738 = vunpack.c.h.b16 %v522
    %v1739 = vunpack.c.l.b16 %v523
    %v1740 = vunpack.c.h.b16 %v523
    %v1741 = vunpack.c.l.b16 %v524
    %v1742 = vunpack.c.h.b16 %v524
    %v1743 = vunpack.c.l.b16 %v525
    %v1744 = vunpack.c.h.b16 %v525
    %v1745 = vunpack.c.l.b16 %v526
    %v1746 = vunpack.c.h.b16 %v526
    %v1747 = vunpack.c.l.b16 %v527
    %v1748 = vunpack.c.h.b16 %v527
    %v1749 = vunpack.c.l.b16 %v528
    %v1750 = vunpack.c.h.b16 %v528
    %v1751 = vunpack.c.l.b16 %v529
    %v1752 = vunpack.c.h.b16 %v529
    %v1753 = vunpack.c.l.b16 %v530
    %v1754 = vunpack.c.h.b16 %v530
    %v1755 = vunpack.c.l.b16 %v531
    %v1756 = vunpack.c.h.b16 %v531
    %v1757 = vunpack.c.l.b16 %v532
    %v1758 = vunpack.c.h.b16 %v532
    %v1759 = vunpack.c.l.b16 %v533
    %v1760 = vunpack.c.h.b16 %v533
    %v1761 = vunpack.c.l.b16 %v534
    %v1762 = vunpack.c.h.b16 %v534
    %v1763 = vunpack.c.l.b16 %v535
    %v1764 = vunpack.c.h.b16 %v535
    %v1765 = vunpack.c.l.b16 %v536
    %v1766 = vunpack.c.h.b16 %v536
    %v1767 = vunpack.c.l.b16 %v537
    %v1768 = vunpack.c.h.b16 %v537
    %v1769 = vunpack.c.l.b16 %v538
    %v1770 = vunpack.c.h.b16 %v538
    %v1771 = vunpack.c.l.b16 %v539
    %v1772 = vunpack.c.h.b16 %v539
    %v1773 = vunpack.c.l.b16 %v540
    %v1774 = vunpack.c.h.b16 %v540
    %v1775 = vunpack.c.l.b16 %v541
    %v1776 = vunpack.c.h.b16 %v541
    %v1777 = vunpack.c.l.b16 %v542
    %v1778 = vunpack.c.h.b16 %v542
    %v1779 = vunpack.c.l.b16 %v543
    %v1780 = vunpack.c.h.b16 %v543
    %v1781 = vunpack.c.l.b16 %v544
    %v1782 = vunpack.c.h.b16 %v544
    %v1783 = vunpack.c.l.b16 %v545
    %v1784 = vunpack.c.h.b16 %v545
    %v1785 = vunpack.c.l.b16 %v546
    %v1786 = vunpack.c.h.b16 %v546
    %v1787 = vunpack.c.l.b16 %v547
    %v1788 = vunpack.c.h.b16 %v547
    %v1789 = vunpack.c.l.b16 %v548
    %v1790 = vunpack.c.h.b16 %v548
    %v1791 = vunpack.c.l.b16 %v549
    %v1792 = vunpack.c.h.b16 %v549
    %v1793 = vunpack.c.l.b16 %v550
    %v1794 = vunpack.c.h.b16 %v550
    %v1795 = vunpack.c.l.b16 %v551
    %v1796 = vunpack.c.h.b16 %v551
    %v1797 = vunpack.c.l.b16 %v552
    %v1798 = vunpack.c.h.b16 %v552
    %v1799 = vunpack.c.l.b16 %v553
    %v1800 = vunpack.c.h.b16 %v553
    %v1801 = vunpack.c.l.b16 %v554
    %v1802 = vunpack.c.h.b16 %v554
    %v1803 = vunpack.c.l.b16 %v555
    %v1804 = vunpack.c.h.b16 %v555
    %v1805 = vunpack.c.l.b16 %v556
    %v1806 = vunpack.c.h.b16 %v556
    %v1807 = vunpack.c.l.b16 %v557
    %v1808 = vunpack.c.h.b16 %v557
    %v1809 = vunpack.c.l.b16 %v558
    %v1810 = vunpack.c.h.b16 %v558
    %v1811 = vunpack.c.l.b16 %v559
    %v1812 = vunpack.c.h.b16 %v559
    %v1813 = vunpack.c.l.b16 %v560
    %v1814 = vunpack.c.h.b16 %v560
    %v1815 = vunpack.c.l.b16 %v561
    %v1816 = vunpack.c.h.b16 %v561
    %v1817 = vunpack.c.l.b16 %v562
    %v1818 = vunpack.c.h.b16 %v562
    %v1819 = vunpack.c.l.b16 %v563
    %v1820 = vunpack.c.h.b16 %v563
    %v1821 = vunpack.c.l.b16 %v564
    %v1822 = vunpack.c.h.b16 %v564
    %v1823 = vunpack.c.l.b16 %v565
    %v1824 = vunpack.c.h.b16 %v565
    %v1825 = vunpack.c.l.b16 %v566
    %v1826 = vunpack.c.h.b16 %v566
    %v1827 = vunpack.c.l.b16 %v567
    %v1828 = vunpack.c.h.b16 %v567
    %v1829 = vunpack.c.l.b16 %v568
    %v1830 = vunpack.c.h.b16 %v568
    %v1831 = vunpack.c.l.b16 %v569
    %v1832 = vunpack.c.h.b16 %v569
    %v1833 = vunpack.c.l.b16 %v570
    %v1834 = vunpack.c.h.b16 %v570
    %v1835 = vunpack.c.l.b16 %v571
    %v1836 = vunpack.c.h.b16 %v571
    %v1837 = vunpack.c.l.b16 %v572
    %v1838 = vunpack.c.h.b16 %v572
    %v1839 = vunpack.c.l.b16 %v573
    %v1840 = vunpack.c.h.b16 %v573
    %v1841 = vunpack.c.l.b16 %v574
    %v1842 = vunpack.c.h.b16 %v574
    %v1843 = vunpack.c.l.b16 %v575
    %v1844 = vunpack.c.h.b16 %v575
    %v1845 = vunpack.c.l.b16 %v576
    %v1846 = vunpack.c.h.b16 %v576
    %v1847 = vunpack.c.l.b16 %v577
    %v1848 = vunpack.c.h.b16 %v577
    %v1849 = vunpack.c.l.b16 %v578
    %v1850 = vunpack.c.h.b16 %v578
    %v1851 = vunpack.c.l.b16 %v579
    %v1852 = vunpack.c.h.b16 %v579
    %v1853 = vunpack.c.l.b16 %v580
    %v1854 = vunpack.c.h.b16 %v580
    %v1855 = vunpack.c.l.b16 %v581
    %v1856 = vunpack.c.h.b16 %v581
    %v1857 = vunpack.c.l.b16 %v582
    %v1858 = vunpack.c.h.b16 %v582
    %v1859 = vunpack.c.l.b16 %v583
    %v1860 = vunpack.c.h.b16 %v583
    %v1861 = vunpack.c.l.b16 %v584
    %v1862 = vunpack.c.h.b16 %v584
    %v1863 = vunpack.c.l.b16 %v585
    %v1864 = vunpack.c.h.b16 %v585
    %v1865 = vunpack.c.l.b16 %v586
    %v1866 = vunpack.c.h.b16 %v586
    %v1867 = vunpack.c.l.b16 %v587
    %v1868 = vunpack.c.h.b16 %v587
    %v1869 = vunpack.c.l.b16 %v588
    %v1870 = vunpack.c.h.b16 %v588
    %v1871 = vunpack.c.l.b16 %v589
    %v1872 = vunpack.c.h.b16 %v589
    %v1873 = vunpack.c.l.b16 %v590
    %v1874 = vunpack.c.h.b16 %v590
    %v1875 = vunpack.c.l.b16 %v591
    %v1876 = vunpack.c.h.b16 %v591
    %v1877 = vunpack.c.l.b16 %v592
    %v1878 = vunpack.c.h.b16 %v592
    %v1879 = vunpack.c.l.b16 %v593
    %v1880 = vunpack.c.h.b16 %v593
    %v1881 = vunpack.c.l.b16 %v594
    %v1882 = vunpack.c.h.b16 %v594
    %v1883 = vunpack.c.l.b16 %v595
    %v1884 = vunpack.c.h.b16 %v595
    %v1885 = vunpack.c.l.b16 %v596
    %v1886 = vunpack.c.h.b16 %v596
    %v1887 = vunpack.c.l.b16 %v597
    %v1888 = vunpack.c.h.b16 %v597
    %v1889 = vunpack.c.l.b16 %v598
    %v1890 = vunpack.c.h.b16 %v598
    %v1891 = vunpack.c.l.b16 %v599
    %v1892 = vunpack.c.h.b16 %v599
    %v1893 = vunpack.c.l.b16 %v600
    %v1894 = vunpack.c.h.b16 %v600
    %v1895 = vunpack.c.l.b16 %v601
    %v1896 = vunpack.c.h.b16 %v601
    %v1897 = vunpack.c.l.b16 %v602
    %v1898 = vunpack.c.h.b16 %v602
    %v1899 = vunpack.c.l.b16 %v603
    %v1900 = vunpack.c.h.b16 %v603
    %v1901 = vunpack.c.l.b16 %v604
    %v1902 = vunpack.c.h.b16 %v604
    %v1903 = vunpack.c.l.b16 %v605
    %v1904 = vunpack.c.h.b16 %v605
    %v1905 = vunpack.c.l.b16 %v606
    %v1906 = vunpack.c.h.b16 %v606
    %v1907 = vunpack.c.l.b16 %v607
    %v1908 = vunpack.c.h.b16 %v607
    %v1909 = vunpack.c.l.b16 %v608
    %v1910 = vunpack.c.h.b16 %v608
    %v1911 = vunpack.c.l.b16 %v609
    %v1912 = vunpack.c.h.b16 %v609
    %v1913 = vunpack.c.l.b16 %v610
    %v1914 = vunpack.c.h.b16 %v610
    %v1915 = vunpack.c.l.b16 %v611
    %v1916 = vunpack.c.h.b16 %v611
    %v1917 = vunpack.c.l.b16 %v612
    %v1918 = vunpack.c.h.b16 %v612
    %v1919 = vunpack.c.l.b16 %v613
    %v1920 = vunpack.c.h.b16 %v613
    %v1921 = vunpack.c.l.b16 %v614
    %v1922 = vunpack.c.h.b16 %v614
    %v1923 = vunpack.c.l.b16 %v615
    %v1924 = vunpack.c.h.b16 %v615
    %v1925 = vunpack.c.l.b16 %v616
    %v1926 = vunpack.c.h.b16 %v616
    %v1927 = vunpack.c.l.b16 %v617
    %v1928 = vunpack.c.h.b16 %v617
    %v1929 = vunpack.c.l.b16 %v618
    %v1930 = vunpack.c.h.b16 %v618
    %v1931 = vunpack.c.l.b16 %v619
    %v1932 = vunpack.c.h.b16 %v619
    %v1933 = vunpack.c.l.b16 %v620
    %v1934 = vunpack.c.h.b16 %v620
    %v1935 = vunpack.c.l.b16 %v621
    %v1936 = vunpack.c.h.b16 %v621
    %v1937 = vunpack.c.l.b16 %v622
    %v1938 = vunpack.c.h.b16 %v622
    %v1939 = vunpack.c.l.b16 %v623
    %v1940 = vunpack.c.h.b16 %v623
    %v1941 = vunpack.c.l.b16 %v624
    %v1942 = vunpack.c.h.b16 %v624
    %v1943 = vunpack.c.l.b16 %v625
    %v1944 = vunpack.c.h.b16 %v625
    %v1945 = vunpack.c.l.b16 %v626
    %v1946 = vunpack.c.h.b16 %v626
    %v1947 = vunpack.c.l.b16 %v627
    %v1948 = vunpack.c.h.b16 %v627
    %v1949 = vunpack.c.l.b16 %v628
    %v1950 = vunpack.c.h.b16 %v628
    %v1951 = vunpack.c.l.b16 %v629
    %v1952 = vunpack.c.h.b16 %v629
    %v1953 = vunpack.c.l.b16 %v630
    %v1954 = vunpack.c.h.b16 %v630
    %v1955 = vunpack.c.l.b16 %v631
    %v1956 = vunpack.c.h.b16 %v631
    %v1957 = vunpack.c.l.b16 %v632
    %v1958 = vunpack.c.h.b16 %v632
    %v1959 = vunpack.c.l.b16 %v633
    %v1960 = vunpack.c.h.b16 %v633
    %v1961 = vunpack.c.l.b16 %v634
    %v1962 = vunpack.c.h.b16 %v634
    %v1963 = vunpack.c.l.b16 %v635
    %v1964 = vunpack.c.h.b16 %v635
    %v1965 = vunpack.c.l.b16 %v636
    %v1966 = vunpack.c.h.b16 %v636
    %v1967 = vunpack.c.l.b16 %v637
    %v1968 = vunpack.c.h.b16 %v637
    %v1969 = vunpack.c.l.b16 %v638
    %v1970 = vunpack.c.h.b16 %v638
    %v1971 = vunpack.c.l.b16 %v639
    %v1972 = vunpack.c.h.b16 %v639
    %v1973 = vunpack.c.l.b16 %v640
    %v1974 = vunpack.c.h.b16 %v640
    %v1975 = vunpack.c.l.b16 %v641
    %v1976 = vunpack.c.h.b16 %v641
    %v1977 = vunpack.c.l.b16 %v642
    %v1978 = vunpack.c.h.b16 %v642
    %v1979 = vunpack.c.l.b16 %v643
    %v1980 = vunpack.c.h.b16 %v643
    %v1981 = vunpack.c.l.b16 %v644
    %v1982 = vunpack.c.h.b16 %v644
    %v1983 = vunpack.c.l.b16 %v645
    %v1984 = vunpack.c.h.b16 %v645
    %v1985 = vunpack.c.l.b16 %v646
    %v1986 = vunpack.c.h.b16 %v646
    %v1987 = vunpack.c.l.b16 %v647
    %v1988 = vunpack.c.h.b16 %v647
    %v1989 = vunpack.c.l.b16 %v648
    %v1990 = vunpack.c.h.b16 %v648
    %v1991 = vunpack.c.l.b16 %v649
    %v1992 = vunpack.c.h.b16 %v649
    %v1993 = vunpack.c.l.b16 %v650
    %v1994 = vunpack.c.h.b16 %v650
    %v1995 = vunpack.c.l.b16 %v651
    %v1996 = vunpack.c.h.b16 %v651
    %v1997 = vunpack.c.l.b16 %v652
    %v1998 = vunpack.c.h.b16 %v652
    %v1999 = vunpack.c.l.b16 %v653
    %v2000 = vunpack.c.h.b16 %v653
    %v2001 = vunpack.c.l.b16 %v654
    %v2002 = vunpack.c.h.b16 %v654
    %v2003 = vunpack.c.l.b16 %v655
    %v2004 = vunpack.c.h.b16 %v655
    %v2005 = vunpack.c.l.b16 %v656
    %v2006 = vunpack.c.h.b16 %v656
    %v2007 = vunpack.c.l.b16 %v657
    %v2008 = vunpack.c.h.b16 %v657
    %v2009 = vunpack.c.l.b16 %v658
    %v2010 = vunpack.c.h.b16 %v658
    %v2011 = vunpack.c.l.b16 %v659
    %v2012 = vunpack.c.h.b16 %v659
    %v2013 = vunpack.c.l.b16 %v660
    %v2014 = vunpack.c.h.b16 %v660
    %v2015 = vunpack.c.l.b16 %v661
    %v2016 = vunpack.c.h.b16 %v661
    %v2017 = vunpack.c.l.b16 %v662
    %v2018 = vunpack.c.h.b16 %v662
    %v2019 = vunpack.c.l.b16 %v663
    %v2020 = vunpack.c.h.b16 %v663
    %v2021 = vunpack.c.l.b16 %v664
    %v2022 = vunpack.c.h.b16 %v664
    %v2023 = vunpack.c.l.b16 %v665
    %v2024 = vunpack.c.h.b16 %v665
    %v2025 = vunpack.c.l.b16 %v666
    %v2026 = vunpack.c.h.b16 %v666
    %v2027 = vunpack.c.l.b16 %v667
    %v2028 = vunpack.c.h.b16 %v667
    %v2029 = vunpack.c.l.b16 %v668
    %v2030 = vunpack.c.h.b16 %v668
    %v2031 = vunpack.c.l.b16 %v669
    %v2032 = vunpack.c.h.b16 %v669
    %v2033 = vunpack.c.l.b16 %v670
    %v2034 = vunpack.c.h.b16 %v670
    %v2035 = vunpack.c.l.b16 %v671
    %v2036 = vunpack.c.h.b16 %v671
    %v2037 = vunpack.c.l.b16 %v672
    %v2038 = vunpack.c.h.b16 %v672
    %v2039 = vunpack.c.l.b16 %v673
    %v2040 = vunpack.c.h.b16 %v673
    %v2041 = vunpack.c.l.b16 %v674
    %v2042 = vunpack.c.h.b16 %v674
    %v2043 = vunpack.c.l.b16 %v675
    %v2044 = vunpack.c.h.b16 %v675
    %v2045 = vunpack.c.l.b16 %v676
    %v2046 = vunpack.c.h.b16 %v676
    %v2047 = vunpack.c.l.b16 %v677
    %v2048 = vunpack.c.h.b16 %v677
    %v2049 = vunpack.c.l.b16 %v678
    %v2050 = vunpack.c.h.b16 %v678
    %v2051 = vunpack.c.l.b16 %v679
    %v2052 = vunpack.c.h.b16 %v679
    %v2053 = vunpack.c.l.b16 %v680
    %v2054 = vunpack.c.h.b16 %v680
    %v2055 = vunpack.c.l.b16 %v681
    %v2056 = vunpack.c.h.b16 %v681
    %v2057 = vunpack.c.l.b16 %v682
    %v2058 = vunpack.c.h.b16 %v682
    %v2059 = vunpack.c.l.b16 %v683
    %v2060 = vunpack.c.h.b16 %v683
    %v2061 = vunpack.c.l.b16 %v684
    %v2062 = vunpack.c.h.b16 %v684
    %v2063 = vunpack.c.l.b16 %v685
    %v2064 = vunpack.c.h.b16 %v685
    %v2065 = vunpack.c.l.b16 %v686
    %v2066 = vunpack.c.h.b16 %v686
    %v2067 = vunpack.c.l.b16 %v687
    %v2068 = vunpack.c.h.b16 %v687
    %v2069 = vunpack.c.l.b16 %v688
    %v2070 = vunpack.c.h.b16 %v688
    %v2071 = vunpack.c.l.b16 %v689
    %v2072 = vunpack.c.h.b16 %v689
    %v2073 = vunpack.c.l.b16 %v690
    %v2074 = vunpack.c.h.b16 %v690
    %v2075 = vunpack.c.l.b16 %v691
    %v2076 = vunpack.c.h.b16 %v691
    %v2077 = vunpack.c.l.b16 %v692
    %v2078 = vunpack.c.h.b16 %v692
    %v2079 = vunpack.c.l.b16 %v693
    %v2080 = vunpack.c.h.b16 %v693
    %v2081 = vunpack.c.l.b16 %v694
    %v2082 = vunpack.c.h.b16 %v694
    %v2083 = vunpack.c.l.b16 %v695
    %v2084 = vunpack.c.h.b16 %v695
    %v2085 = vunpack.c.l.b16 %v696
    %v2086 = vunpack.c.h.b16 %v696
    %v2087 = vunpack.c.l.b16 %v697
    %v2088 = vunpack.c.h.b16 %v697
    %v2089 = vunpack.c.l.b16 %v698
    %v2090 = vunpack.c.h.b16 %v698
    %v2091 = vunpack.c.l.b16 %v699
    %v2092 = vunpack.c.h.b16 %v699
    %v2093 = vunpack.c.l.b16 %v700
    %v2094 = vunpack.c.h.b16 %v700
    %v2095 = vunpack.c.l.b16 %v701
    %v2096 = vunpack.c.h.b16 %v701
    %v2097 = vunpack.c.l.b16 %v702
    %v2098 = vunpack.c.h.b16 %v702
    %v2099 = vunpack.c.l.b16 %v703
    %v2100 = vunpack.c.h.b16 %v703
    %v2101 = vunpack.c.l.b16 %v704
    %v2102 = vunpack.c.h.b16 %v704
    %v2103 = vunpack.c.l.b16 %v705
    %v2104 = vunpack.c.h.b16 %v705
    %v2105 = vunpack.c.l.b16 %v706
    %v2106 = vunpack.c.h.b16 %v706
    %v2107 = vunpack.c.l.b16 %v707
    %v2108 = vunpack.c.h.b16 %v707
    %v2109 = vunpack.c.l.b16 %v708
    %v2110 = vunpack.c.h.b16 %v708
    %v2111 = vunpack.c.l.b16 %v709
    %v2112 = vunpack.c.h.b16 %v709
    %v2113 = vunpack.c.l.b16 %v710
    %v2114 = vunpack.c.h.b16 %v710
    %v2115 = vunpack.c.l.b16 %v711
    %v2116 = vunpack.c.h.b16 %v711
    %v2117 = vunpack.c.l.b16 %v712
    %v2118 = vunpack.c.h.b16 %v712
    %v2119 = vunpack.c.l.b16 %v713
    %v2120 = vunpack.c.h.b16 %v713
    %v2121 = vunpack.c.l.b16 %v714
    %v2122 = vunpack.c.h.b16 %v714
    %v2123 = vunpack.c.l.b16 %v715
    %v2124 = vunpack.c.h.b16 %v715
    %v2125 = vunpack.c.l.b16 %v716
    %v2126 = vunpack.c.h.b16 %v716
    %v2127 = vunpack.c.l.b16 %v717
    %v2128 = vunpack.c.h.b16 %v717
    %v2129 = vunpack.c.l.b16 %v718
    %v2130 = vunpack.c.h.b16 %v718
    %v2131 = vunpack.c.l.b16 %v719
    %v2132 = vunpack.c.h.b16 %v719
    %v2133 = vunpack.c.l.b16 %v720
    %v2134 = vunpack.c.h.b16 %v720
    %v2135 = vunpack.c.l.b16 %v721
    %v2136 = vunpack.c.h.b16 %v721
    %v2137 = vunpack.c.l.b16 %v722
    %v2138 = vunpack.c.h.b16 %v722
    %v2139 = vunpack.c.l.b16 %v723
    %v2140 = vunpack.c.h.b16 %v723
    %v2141 = vunpack.c.l.b16 %v724
    %v2142 = vunpack.c.h.b16 %v724
    %v2143 = vunpack.c.l.b16 %v725
    %v2144 = vunpack.c.h.b16 %v725
    %v2145 = vunpack.c.l.b16 %v726
    %v2146 = vunpack.c.h.b16 %v726
    %v2147 = vunpack.c.l.b16 %v727
    %v2148 = vunpack.c.h.b16 %v727
    %v2149 = vunpack.c.l.b16 %v728
    %v2150 = vunpack.c.h.b16 %v728
    %v2151 = vunpack.c.l.b16 %v729
    %v2152 = vunpack.c.h.b16 %v729
    %v2153 = vunpack.c.l.b16 %v730
    %v2154 = vunpack.c.h.b16 %v730
    %v2155 = vunpack.c.l.b16 %v731
    %v2156 = vunpack.c.h.b16 %v731
    %v2157 = vunpack.c.l.b16 %v732
    %v2158 = vunpack.c.h.b16 %v732
    %v2159 = vunpack.c.l.b16 %v733
    %v2160 = vunpack.c.h.b16 %v733
    %v2161 = vunpack.c.l.b16 %v734
    %v2162 = vunpack.c.h.b16 %v734
    %v2163 = vunpack.c.l.b16 %v735
    %v2164 = vunpack.c.h.b16 %v735
    %v2165 = vunpack.c.l.b16 %v736
    %v2166 = vunpack.c.h.b16 %v736
    %v2167 = vunpack.c.l.b16 %v737
    %v2168 = vunpack.c.h.b16 %v737
    %v2169 = vunpack.c.l.b16 %v738
    %v2170 = vunpack.c.h.b16 %v738
    %v2171 = vunpack.c.l.b16 %v739
    %v2172 = vunpack.c.h.b16 %v739
    %v2173 = vunpack.c.l.b16 %v740
    %v2174 = vunpack.c.h.b16 %v740
    %v2175 = vunpack.c.l.b16 %v741
    %v2176 = vunpack.c.h.b16 %v741
    %v2177 = vunpack.c.l.b16 %v742
    %v2178 = vunpack.c.h.b16 %v742
    %v2179 = vunpack.c.l.b16 %v743
    %v2180 = vunpack.c.h.b16 %v743
    %v2181 = vunpack.c.l.b16 %v744
    %v2182 = vunpack.c.h.b16 %v744
    %v2183 = vunpack.c.l.b16 %v745
    %v2184 = vunpack.c.h.b16 %v745
    %v2185 = vunpack.c.l.b16 %v746
    %v2186 = vunpack.c.h.b16 %v746
    %v2187 = vunpack.c.l.b16 %v747
    %v2188 = vunpack.c.h.b16 %v747
    %v2189 = vunpack.c.l.b16 %v748
    %v2190 = vunpack.c.h.b16 %v748
    %v2191 = vunpack.c.l.b16 %v749
    %v2192 = vunpack.c.h.b16 %v749
    %v2193 = vunpack.c.l.b16 %v750
    %v2194 = vunpack.c.h.b16 %v750
    %v2195 = vunpack.c.l.b16 %v751
    %v2196 = vunpack.c.h.b16 %v751
    %v2197 = vunpack.c.l.b16 %v752
    %v2198 = vunpack.c.h.b16 %v752
    %v2199 = vunpack.c.l.b16 %v753
    %v2200 = vunpack.c.h.b16 %v753
    %v2201 = vunpack.c.l.b16 %v754
    %v2202 = vunpack.c.h.b16 %v754
    %v2203 = vunpack.c.l.b16 %v755
    %v2204 = vunpack.c.h.b16 %v755
    %v2205 = vunpack.c.l.b16 %v756
    %v2206 = vunpack.c.h.b16 %v756
    %v2207 = vunpack.c.l.b16 %v757
    %v2208 = vunpack.c.h.b16 %v757
    %v2209 = vunpack.c.l.b16 %v758
    %v2210 = vunpack.c.h.b16 %v758
    %v2211 = vunpack.c.l.b16 %v759
    %v2212 = vunpack.c.h.b16 %v759
    %v2213 = vunpack.c.l.b16 %v760
    %v2214 = vunpack.c.h.b16 %v760
    %v2215 = vunpack.c.l.b16 %v761
    %v2216 = vunpack.c.h.b16 %v761
    %v2217 = vunpack.c.l.b16 %v762
    %v2218 = vunpack.c.h.b16 %v762
    %v2219 = vunpack.c.l.b16 %v763
    %v2220 = vunpack.c.h.b16 %v763
    %v2221 = vunpack.c.l.b16 %v764
    %v2222 = vunpack.c.h.b16 %v764
    %v2223 = vunpack.c.l.b16 %v765
    %v2224 = vunpack.c.h.b16 %v765
    %v2225 = vunpack.c.l.b16 %v766
    %v2226 = vunpack.c.h.b16 %v766
    %v2227 = vunpack.c.l.b16 %v767
    %v2228 = vunpack.c.h.b16 %v767
    %v2229 = vunpack.c.l.b16 %v768
    %v2230 = vunpack.c.h.b16 %v768
    %v2231 = vunpack.c.l.b16 %v769
    %v2232 = vunpack.c.h.b16 %v769
    %v2233 = vunpack.c.l.b16 %v770
    %v2234 = vunpack.c.h.b16 %v770
    %v2235 = vunpack.c.l.b16 %v771
    %v2236 = vunpack.c.h.b16 %v771
    %v2237 = vunpack.c.l.b16 %v772
    %v2238 = vunpack.c.h.b16 %v772
    %v2239 = vunpack.c.l.b16 %v773
    %v2240 = vunpack.c.h.b16 %v773
    %v2241 = vunpack.c.l.b16 %v774
    %v2242 = vunpack.c.h.b16 %v774
    %v2243 = vunpack.c.l.b16 %v775
    %v2244 = vunpack.c.h.b16 %v775
    %v2245 = vunpack.c.l.b16 %v776
    %v2246 = vunpack.c.h.b16 %v776
    %v2247 = vunpack.c.l.b16 %v777
    %v2248 = vunpack.c.h.b16 %v777
    %v2249 = vunpack.c.l.b16 %v778
    %v2250 = vunpack.c.h.b16 %v778
    %v2251 = vunpack.c.l.b16 %v779
    %v2252 = vunpack.c.h.b16 %v779
    %v2253 = vunpack.c.l.b16 %v780
    %v2254 = vunpack.c.h.b16 %v780
    %v2255 = vunpack.c.l.b16 %v781
    %v2256 = vunpack.c.h.b16 %v781
    %v2257 = vunpack.c.l.b16 %v782
    %v2258 = vunpack.c.h.b16 %v782
    %v2259 = vunpack.c.l.b16 %v783
    %v2260 = vunpack.c.h.b16 %v783
    %v2261 = vunpack.c.l.b16 %v784
    %v2262 = vunpack.c.h.b16 %v784
    %v2263 = vunpack.c.l.b16 %v785
    %v2264 = vunpack.c.h.b16 %v785
    %v2265 = vunpack.c.l.b16 %v786
    %v2266 = vunpack.c.h.b16 %v786
    %v2267 = vunpack.c.l.b16 %v787
    %v2268 = vunpack.c.h.b16 %v787
    %v2269 = vunpack.c.l.b16 %v788
    %v2270 = vunpack.c.h.b16 %v788
    %v2271 = vunpack.c.l.b16 %v789
    %v2272 = vunpack.c.h.b16 %v789
    %v2273 = vunpack.c.l.b16 %v790
    %v2274 = vunpack.c.h.b16 %v790
    %v2275 = vunpack.c.l.b16 %v791
    %v2276 = vunpack.c.h.b16 %v791
    %v2277 = vunpack.c.l.b16 %v792
    %v2278 = vunpack.c.h.b16 %v792
    %v2279 = vunpack.c.l.b16 %v793
    %v2280 = vunpack.c.h.b16 %v793
    %v2281 = vunpack.c.l.b16 %v794
    %v2282 = vunpack.c.h.b16 %v794
    %v2283 = vunpack.c.l.b16 %v795
    %v2284 = vunpack.c.h.b16 %v795
    %v2285 = vunpack.c.l.b16 %v796
    %v2286 = vunpack.c.h.b16 %v796
    %v2287 = vunpack.c.l.b16 %v797
    %v2288 = vunpack.c.h.b16 %v797
    %v2289 = vunpack.c.l.b16 %v798
    %v2290 = vunpack.c.h.b16 %v798
    %v2291 = vunpack.c.l.b16 %v799
    %v2292 = vunpack.c.h.b16 %v799
    %v2293 = vunpack.c.l.b16 %v800
    %v2294 = vunpack.c.h.b16 %v800
    %v2295 = vunpack.c.l.b16 %v801
    %v2296 = vunpack.c.h.b16 %v801
    %v2297 = vunpack.c.l.b16 %v802
    %v2298 = vunpack.c.h.b16 %v802
    %v2299 = vunpack.c.l.b16 %v803
    %v2300 = vunpack.c.h.b16 %v803
    %v2301 = vunpack.c.l.b16 %v804
    %v2302 = vunpack.c.h.b16 %v804
    %v2303 = vunpack.c.l.b16 %v805
    %v2304 = vunpack.c.h.b16 %v805
    %v2305 = vunpack.c.l.b16 %v806
    %v2306 = vunpack.c.h.b16 %v806
    %v2307 = vunpack.c.l.b16 %v807
    %v2308 = vunpack.c.h.b16 %v807
    %v2309 = vunpack.c.l.b16 %v808
    %v2310 = vunpack.c.h.b16 %v808
    %v2311 = vunpack.c.l.b16 %v809
    %v2312 = vunpack.c.h.b16 %v809
    %v2313 = vunpack.c.l.b16 %v810
    %v2314 = vunpack.c.h.b16 %v810
    %v2315 = vunpack.c.l.b16 %v811
    %v2316 = vunpack.c.h.b16 %v811
    %v2317 = vunpack.c.l.b16 %v812
    %v2318 = vunpack.c.h.b16 %v812
    %v2319 = vunpack.c.l.b16 %v813
    %v2320 = vunpack.c.h.b16 %v813
    %v2321 = vunpack.c.l.b16 %v814
    %v2322 = vunpack.c.h.b16 %v814
    %v2323 = vunpack.c.l.b16 %v815
    %v2324 = vunpack.c.h.b16 %v815
    %v2325 = vunpack.c.l.b16 %v816
    %v2326 = vunpack.c.h.b16 %v816
    %v2327 = vunpack.c.l.b16 %v817
    %v2328 = vunpack.c.h.b16 %v817
    %v2329 = vunpack.c.l.b16 %v818
    %v2330 = vunpack.c.h.b16 %v818
    %v2331 = vunpack.c.l.b16 %v819
    %v2332 = vunpack.c.h.b16 %v819
    %v2333 = vunpack.c.l.b16 %v820
    %v2334 = vunpack.c.h.b16 %v820
    %v2335 = vunpack.c.l.b16 %v821
    %v2336 = vunpack.c.h.b16 %v821
    %v2337 = vunpack.c.l.b16 %v822
    %v2338 = vunpack.c.h.b16 %v822
    %v2339 = vunpack.c.l.b16 %v823
    %v2340 = vunpack.c.h.b16 %v823
    %v2341 = vunpack.c.l.b16 %v824
    %v2342 = vunpack.c.h.b16 %v824
    %v2343 = vunpack.c.l.b16 %v825
    %v2344 = vunpack.c.h.b16 %v825
    %v2345 = vunpack.c.l.b16 %v826
    %v2346 = vunpack.c.h.b16 %v826
    %v2347 = vunpack.c.l.b16 %v827
    %v2348 = vunpack.c.h.b16 %v827
    %v2349 = vunpack.c.l.b16 %v828
    %v2350 = vunpack.c.h.b16 %v828
    %v2351 = vunpack.c.l.b16 %v829
    %v2352 = vunpack.c.h.b16 %v829
    %v2353 = vunpack.c.l.b16 %v830
    %v2354 = vunpack.c.h.b16 %v830
    %v2355 = vunpack.c.l.b16 %v831
    %v2356 = vunpack.c.h.b16 %v831
    %v2357 = vunpack.c.l.b16 %v832
    %v2358 = vunpack.c.h.b16 %v832
    %v2359 = vunpack.c.l.b16 %v833
    %v2360 = vunpack.c.h.b16 %v833
    %v2361 = vunpack.c.l.b16 %v834
    %v2362 = vunpack.c.h.b16 %v834
    %v2363 = vunpack.c.l.b16 %v835
    %v2364 = vunpack.c.h.b16 %v835
    %v2365 = vunpack.c.l.b16 %v836
    %v2366 = vunpack.c.h.b16 %v836
    %v2367 = vunpack.c.l.b16 %v837
    %v2368 = vunpack.c.h.b16 %v837
    %v2369 = vunpack.c.l.b16 %v838
    %v2370 = vunpack.c.h.b16 %v838
    %v2371 = vunpack.c.l.b16 %v839
    %v2372 = vunpack.c.h.b16 %v839
    %v2373 = vunpack.c.l.b16 %v840
    %v2374 = vunpack.c.h.b16 %v840
    %v2375 = vunpack.c.l.b16 %v841
    %v2376 = vunpack.c.h.b16 %v841
    %v2377 = vunpack.c.l.b16 %v842
    %v2378 = vunpack.c.h.b16 %v842
    %v2379 = vunpack.c.l.b16 %v843
    %v2380 = vunpack.c.h.b16 %v843
    %v2381 = vunpack.c.l.b16 %v844
    %v2382 = vunpack.c.h.b16 %v844
    %v2383 = vunpack.c.l.b16 %v845
    %v2384 = vunpack.c.h.b16 %v845
    %v2385 = vunpack.c.l.b16 %v846
    %v2386 = vunpack.c.h.b16 %v846
    %v2387 = vunpack.c.l.b16 %v847
    %v2388 = vunpack.c.h.b16 %v847
    %v2389 = vunpack.c.l.b16 %v848
    %v2390 = vunpack.c.h.b16 %v848
    %v2391 = vunpack.c.l.b16 %v849
    %v2392 = vunpack.c.h.b16 %v849
    %v2393 = vunpack.c.l.b16 %v850
    %v2394 = vunpack.c.h.b16 %v850
    %v2395 = vunpack.c.l.b16 %v851
    %v2396 = vunpack.c.h.b16 %v851
    %v2397 = vunpack.c.l.b16 %v852
    %v2398 = vunpack.c.h.b16 %v852
    %v2399 = vunpack.c.l.b16 %v853
    %v2400 = vunpack.c.h.b16 %v853
    %v2401 = vunpack.c.l.b16 %v854
    %v2402 = vunpack.c.h.b16 %v854
    %v2403 = vunpack.c.l.b16 %v855
    %v2404 = vunpack.c.h.b16 %v855
    %v2405 = vunpack.c.l.b16 %v856
    %v2406 = vunpack.c.h.b16 %v856
    %v2407 = vunpack.c.l.b16 %v857
    %v2408 = vunpack.c.h.b16 %v857
    %v2409 = vunpack.c.l.b16 %v858
    %v2410 = vunpack.c.h.b16 %v858
    %v2411 = vunpack.c.l.b16 %v859
    %v2412 = vunpack.c.h.b16 %v859
    %v2413 = vunpack.c.l.b16 %v860
    %v2414 = vunpack.c.h.b16 %v860
    %v2415 = vunpack.c.l.b16 %v861
    %v2416 = vunpack.c.h.b16 %v861
    %v2417 = vunpack.c.l.b16 %v862
    %v2418 = vunpack.c.h.b16 %v862
    %v2419 = vunpack.c.l.b16 %v863
    %v2420 = vunpack.c.h.b16 %v863
    %v2421 = vunpack.c.l.b16 %v864
    %v2422 = vunpack.c.h.b16 %v864
    %v2423 = vpack.c.b16 %v1403, %v1399
    %v2424 = vpack.c.b16 %v1404, %v1400
    %v2425 = vpack.c.b16 %v1405, %v1401
    %v2426 = vpack.c.b16 %v1406, %v1402
    %v2427 = vpack.c.b16 %v1411, %v1407
    %v2428 = vpack.c.b16 %v1412, %v1408
    %v2429 = vpack.c.b16 %v1413, %v1409
    %v2430 = vpack.c.b16 %v1414, %v1410
    %v2431 = vpack.c.b16 %v1419, %v1415
    %v2432 = vpack.c.b16 %v1420, %v1416
    %v2433 = vpack.c.b16 %v1421, %v1417
    %v2434 = vpack.c.b16 %v1422, %v1418
    %v2435 = vpack.c.b16 %v1427, %v1423
    %v2436 = vpack.c.b16 %v1428, %v1424
    %v2437 = vpack.c.b16 %v1429, %v1425
    %v2438 = vpack.c.b16 %v1430, %v1426
    %v2439 = vpack.c.b16 %v1435, %v1431
    %v2440 = vpack.c.b16 %v1436, %v1432
    %v2441 = vpack.c.b16 %v1437, %v1433
    %v2442 = vpack.c.b16 %v1438, %v1434
    %v2443 = vpack.c.b16 %v1443, %v1439
    %v2444 = vpack.c.b16 %v1444, %v1440
    %v2445 = vpack.c.b16 %v1445, %v1441
    %v2446 = vpack.c.b16 %v1446, %v1442
    %v2447 = vpack.c.b16 %v1451, %v1447
    %v2448 = vpack.c.b16 %v1452, %v1448
    %v2449 = vpack.c.b16 %v1453, %v1449
    %v2450 = vpack.c.b16 %v1454, %v1450
    %v2451 = vpack.c.b16 %v1459, %v1455
    %v2452 = vpack.c.b16 %v1460, %v1456
    %v2453 = vpack.c.b16 %v1461, %v1457
    %v2454 = vpack.c.b16 %v1462, %v1458
    %v2455 = vpack.c.b16 %v1467, %v1463
    %v2456 = vpack.c.b16 %v1468, %v1464
    %v2457 = vpack.c.b16 %v1469, %v1465
    %v2458 = vpack.c.b16 %v1470, %v1466
    %v2459 = vpack.c.b16 %v1475, %v1471
    %v2460 = vpack.c.b16 %v1476, %v1472
    %v2461 = vpack.c.b16 %v1477, %v1473
    %v2462 = vpack.c.b16 %v1478, %v1474
    %v2463 = vpack.c.b16 %v1483, %v1479
    %v2464 = vpack.c.b16 %v1484, %v1480
    %v2465 = vpack.c.b16 %v1485, %v1481
    %v2466 = vpack.c.b16 %v1486, %v1482
    %v2467 = vpack.c.b16 %v1491, %v1487
    %v2468 = vpack.c.b16 %v1492, %v1488
    %v2469 = vpack.c.b16 %v1493, %v1489
    %v2470 = vpack.c.b16 %v1494, %v1490
    %v2471 = vpack.c.b16 %v1499, %v1495
    %v2472 = vpack.c.b16 %v1500, %v1496
    %v2473 = vpack.c.b16 %v1501, %v1497
    %v2474 = vpack.c.b16 %v1502, %v1498
    %v2475 = vpack.c.b16 %v1507, %v1503
    %v2476 = vpack.c.b16 %v1508, %v1504
    %v2477 = vpack.c.b16 %v1509, %v1505
    %v2478 = vpack.c.b16 %v1510, %v1506
    %v2479 = vpack.c.b16 %v1515, %v1511
    %v2480 = vpack.c.b16 %v1516, %v1512
    %v2481 = vpack.c.b16 %v1517, %v1513
    %v2482 = vpack.c.b16 %v1518, %v1514
    %v2483 = vpack.c.b16 %v1523, %v1519
    %v2484 = vpack.c.b16 %v1524, %v1520
    %v2485 = vpack.c.b16 %v1525, %v1521
    %v2486 = vpack.c.b16 %v1526, %v1522
    %v2487 = vpack.c.b16 %v1531, %v1527
    %v2488 = vpack.c.b16 %v1532, %v1528
    %v2489 = vpack.c.b16 %v1533, %v1529
    %v2490 = vpack.c.b16 %v1534, %v1530
    %v2491 = vpack.c.b16 %v1539, %v1535
    %v2492 = vpack.c.b16 %v1540, %v1536
    %v2493 = vpack.c.b16 %v1541, %v1537
    %v2494 = vpack.c.b16 %v1542, %v1538
    %v2495 = vpack.c.b16 %v1547, %v1543
    %v2496 = vpack.c.b16 %v1548, %v1544
    %v2497 = vpack.c.b16 %v1549, %v1545
    %v2498 = vpack.c.b16 %v1550, %v1546
    %v2499 = vpack.c.b16 %v1555, %v1551
    %v2500 = vpack.c.b16 %v1556, %v1552
    %v2501 = vpack.c.b16 %v1557, %v1553
    %v2502 = vpack.c.b16 %v1558, %v1554
    %v2503 = vpack.c.b16 %v1563, %v1559
    %v2504 = vpack.c.b16 %v1564, %v1560
    %v2505 = vpack.c.b16 %v1565, %v1561
    %v2506 = vpack.c.b16 %v1566, %v1562
    %v2507 = vpack.c.b16 %v1571, %v1567
    %v2508 = vpack.c.b16 %v1572, %v1568
    %v2509 = vpack.c.b16 %v1573, %v1569
    %v2510 = vpack.c.b16 %v1574, %v1570
    %v2511 = vpack.c.b16 %v1579, %v1575
    %v2512 = vpack.c.b16 %v1580, %v1576
    %v2513 = vpack.c.b16 %v1581, %v1577
    %v2514 = vpack.c.b16 %v1582, %v1578
    %v2515 = vpack.c.b16 %v1587, %v1583
    %v2516 = vpack.c.b16 %v1588, %v1584
    %v2517 = vpack.c.b16 %v1589, %v1585
    %v2518 = vpack.c.b16 %v1590, %v1586
    %v2519 = vpack.c.b16 %v1595, %v1591
    %v2520 = vpack.c.b16 %v1596, %v1592
    %v2521 = vpack.c.b16 %v1597, %v1593
    %v2522 = vpack.c.b16 %v1598, %v1594
    %v2523 = vpack.c.b16 %v1603, %v1599
    %v2524 = vpack.c.b16 %v1604, %v1600
    %v2525 = vpack.c.b16 %v1605, %v1601
    %v2526 = vpack.c.b16 %v1606, %v1602
    %v2527 = vpack.c.b16 %v1611, %v1607
    %v2528 = vpack.c.b16 %v1612, %v1608
    %v2529 = vpack.c.b16 %v1613, %v1609
    %v2530 = vpack.c.b16 %v1614, %v1610
    %v2531 = vpack.c.b16 %v1619, %v1615
    %v2532 = vpack.c.b16 %v1620, %v1616
    %v2533 = vpack.c.b16 %v1621, %v1617
    %v2534 = vpack.c.b16 %v1622, %v1618
    %v2535 = vpack.c.b16 %v1627, %v1623
    %v2536 = vpack.c.b16 %v1628, %v1624
    %v2537 = vpack.c.b16 %v1629, %v1625
    %v2538 = vpack.c.b16 %v1630, %v1626
    %v2539 = vpack.c.b16 %v1635, %v1631
    %v2540 = vpack.c.b16 %v1636, %v1632
    %v2541 = vpack.c.b16 %v1637, %v1633
    %v2542 = vpack.c.b16 %v1638, %v1634
    %v2543 = vpack.c.b16 %v1643, %v1639
    %v2544 = vpack.c.b16 %v1644, %v1640
    %v2545 = vpack.c.b16 %v1645, %v1641
    %v2546 = vpack.c.b16 %v1646, %v1642
    %v2547 = vpack.c.b16 %v1651, %v1647
    %v2548 = vpack.c.b16 %v1652, %v1648
    %v2549 = vpack.c.b16 %v1653, %v1649
    %v2550 = vpack.c.b16 %v1654, %v1650
    %v2551 = vpack.c.b16 %v1659, %v1655
    %v2552 = vpack.c.b16 %v1660, %v1656
    %v2553 = vpack.c.b16 %v1661, %v1657
    %v2554 = vpack.c.b16 %v1662, %v1658
    %v2555 = vpack.c.b16 %v1667, %v1663
    %v2556 = vpack.c.b16 %v1668, %v1664
    %v2557 = vpack.c.b16 %v1669, %v1665
    %v2558 = vpack.c.b16 %v1670, %v1666
    %v2559 = vpack.c.b16 %v1675, %v1671
    %v2560 = vpack.c.b16 %v1676, %v1672
    %v2561 = vpack.c.b16 %v1677, %v1673
    %v2562 = vpack.c.b16 %v1678, %v1674
    %v2563 = vpack.c.b16 %v1683, %v1679
    %v2564 = vpack.c.b16 %v1684, %v1680
    %v2565 = vpack.c.b16 %v1685, %v1681
    %v2566 = vpack.c.b16 %v1686, %v1682
    %v2567 = vpack.c.b16 %v1691, %v1687
    %v2568 = vpack.c.b16 %v1692, %v1688
    %v2569 = vpack.c.b16 %v1693, %v1689
    %v2570 = vpack.c.b16 %v1694, %v1690
    %v2571 = vpack.c.b16 %v1699, %v1695
    %v2572 = vpack.c.b16 %v1700, %v1696
    %v2573 = vpack.c.b16 %v1701, %v1697
    %v2574 = vpack.c.b16 %v1702, %v1698
    %v2575 = vpack.c.b16 %v1707, %v1703
    %v2576 = vpack.c.b16 %v1708, %v1704
    %v2577 = vpack.c.b16 %v1709, %v1705
    %v2578 = vpack.c.b16 %v1710, %v1706
    %v2579 = vpack.c.b16 %v1715, %v1711
    %v2580 = vpack.c.b16 %v1716, %v1712
    %v2581 = vpack.c.b16 %v1717, %v1713
    %v2582 = vpack.c.b16 %v1718, %v1714
    %v2583 = vpack.c.b16 %v1723, %v1719
    %v2584 = vpack.c.b16 %v1724, %v1720
    %v2585 = vpack.c.b16 %v1725, %v1721
    %v2586 = vpack.c.b16 %v1726, %v1722
    %v2587 = vpack.c.b16 %v1731, %v1727
    %v2588 = vpack.c.b16 %v1732, %v1728
    %v2589 = vpack.c.b16 %v1733, %v1729
    %v2590 = vpack.c.b16 %v1734, %v1730
    %v2591 = vpack.c.b16 %v1739, %v1735
    %v2592 = vpack.c.b16 %v1740, %v1736
    %v2593 = vpack.c.b16 %v1741, %v1737
    %v2594 = vpack.c.b16 %v1742, %v1738
    %v2595 = vpack.c.b16 %v1747, %v1743
    %v2596 = vpack.c.b16 %v1748, %v1744
    %v2597 = vpack.c.b16 %v1749, %v1745
    %v2598 = vpack.c.b16 %v1750, %v1746
    %v2599 = vpack.c.b16 %v1755, %v1751
    %v2600 = vpack.c.b16 %v1756, %v1752
    %v2601 = vpack.c.b16 %v1757, %v1753
    %v2602 = vpack.c.b16 %v1758, %v1754
    %v2603 = vpack.c.b16 %v1763, %v1759
    %v2604 = vpack.c.b16 %v1764, %v1760
    %v2605 = vpack.c.b16 %v1765, %v1761
    %v2606 = vpack.c.b16 %v1766, %v1762
    %v2607 = vpack.c.b16 %v1771, %v1767
    %v2608 = vpack.c.b16 %v1772, %v1768
    %v2609 = vpack.c.b16 %v1773, %v1769
    %v2610 = vpack.c.b16 %v1774, %v1770
    %v2611 = vpack.c.b16 %v1779, %v1775
    %v2612 = vpack.c.b16 %v1780, %v1776
    %v2613 = vpack.c.b16 %v1781, %v1777
    %v2614 = vpack.c.b16 %v1782, %v1778
    %v2615 = vpack.c.b16 %v1787, %v1783
    %v2616 = vpack.c.b16 %v1788, %v1784
    %v2617 = vpack.c.b16 %v1789, %v1785
    %v2618 = vpack.c.b16 %v1790, %v1786
    %v2619 = vpack.c.b16 %v1795, %v1791
    %v2620 = vpack.c.b16 %v1796, %v1792
    %v2621 = vpack.c.b16 %v1797, %v1793
    %v2622 = vpack.c.b16 %v1798, %v1794
    %v2623 = vpack.c.b16 %v1803, %v1799
    %v2624 = vpack.c.b16 %v1804, %v1800
    %v2625 = vpack.c.b16 %v1805, %v1801
    %v2626 = vpack.c.b16 %v1806, %v1802
    %v2627 = vpack.c.b16 %v1811, %v1807
    %v2628 = vpack.c.b16 %v1812, %v1808
    %v2629 = vpack.c.b16 %v1813, %v1809
    %v2630 = vpack.c.b16 %v1814, %v1810
    %v2631 = vpack.c.b16 %v1819, %v1815
    %v2632 = vpack.c.b16 %v1820, %v1816
    %v2633 = vpack.c.b16 %v1821, %v1817
    %v2634 = vpack.c.b16 %v1822, %v1818
    %v2635 = vpack.c.b16 %v1827, %v1823
    %v2636 = vpack.c.b16 %v1828, %v1824
    %v2637 = vpack.c.b16 %v1829, %v1825
    %v2638 = vpack.c.b16 %v1830, %v1826
    %v2639 = vpack.c.b16 %v1835, %v1831
    %v2640 = vpack.c.b16 %v1836, %v1832
    %v2641 = vpack.c.b16 %v1837, %v1833
    %v2642 = vpack.c.b16 %v1838, %v1834
    %v2643 = vpack.c.b16 %v1843, %v1839
    %v2644 = vpack.c.b16 %v1844, %v1840
    %v2645 = vpack.c.b16 %v1845, %v1841
    %v2646 = vpack.c.b16 %v1846, %v1842
    %v2647 = vpack.c.b16 %v1851, %v1847
    %v2648 = vpack.c.b16 %v1852, %v1848
    %v2649 = vpack.c.b16 %v1853, %v1849
    %v2650 = vpack.c.b16 %v1854, %v1850
    %v2651 = vpack.c.b16 %v1859, %v1855
    %v2652 = vpack.c.b16 %v1860, %v1856
    %v2653 = vpack.c.b16 %v1861, %v1857
    %v2654 = vpack.c.b16 %v1862, %v1858
    %v2655 = vpack.c.b16 %v1867, %v1863
    %v2656 = vpack.c.b16 %v1868, %v1864
    %v2657 = vpack.c.b16 %v1869, %v1865
    %v2658 = vpack.c.b16 %v1870, %v1866
    %v2659 = vpack.c.b16 %v1875, %v1871
    %v2660 = vpack.c.b16 %v1876, %v1872
    %v2661 = vpack.c.b16 %v1877, %v1873
    %v2662 = vpack.c.b16 %v1878, %v1874
    %v2663 = vpack.c.b16 %v1883, %v1879
    %v2664 = vpack.c.b16 %v1884, %v1880
    %v2665 = vpack.c.b16 %v1885, %v1881
    %v2666 = vpack.c.b16 %v1886, %v1882
    %v2667 = vpack.c.b16 %v1891, %v1887
    %v2668 = vpack.c.b16 %v1892, %v1888
    %v2669 = vpack.c.b16 %v1893, %v1889
    %v2670 = vpack.c.b16 %v1894, %v1890
    %v2671 = vpack.c.b16 %v1899, %v1895
    %v2672 = vpack.c.b16 %v1900, %v1896
    %v2673 = vpack.c.b16 %v1901, %v1897
    %v2674 = vpack.c.b16 %v1902, %v1898
    %v2675 = vpack.c.b16 %v1907, %v1903
    %v2676 = vpack.c.b16 %v1908, %v1904
    %v2677 = vpack.c.b16 %v1909, %v1905
    %v2678 = vpack.c.b16 %v1910, %v1906
    %v2679 = vpack.c.b16 %v1915, %v1911
    %v2680 = vpack.c.b16 %v1916, %v1912
    %v2681 = vpack.c.b16 %v1917, %v1913
    %v2682 = vpack.c.b16 %v1918, %v1914
    %v2683 = vpack.c.b16 %v1923, %v1919
    %v2684 = vpack.c.b16 %v1924, %v1920
    %v2685 = vpack.c.b16 %v1925, %v1921
    %v2686 = vpack.c.b16 %v1926, %v1922
    %v2687 = vpack.c.b16 %v1931, %v1927
    %v2688 = vpack.c.b16 %v1932, %v1928
    %v2689 = vpack.c.b16 %v1933, %v1929
    %v2690 = vpack.c.b16 %v1934, %v1930
    %v2691 = vpack.c.b16 %v1939, %v1935
    %v2692 = vpack.c.b16 %v1940, %v1936
    %v2693 = vpack.c.b16 %v1941, %v1937
    %v2694 = vpack.c.b16 %v1942, %v1938
    %v2695 = vpack.c.b16 %v1947, %v1943
    %v2696 = vpack.c.b16 %v1948, %v1944
    %v2697 = vpack.c.b16 %v1949, %v1945
    %v2698 = vpack.c.b16 %v1950, %v1946
    %v2699 = vpack.c.b16 %v1955, %v1951
    %v2700 = vpack.c.b16 %v1956, %v1952
    %v2701 = vpack.c.b16 %v1957, %v1953
    %v2702 = vpack.c.b16 %v1958, %v1954
    %v2703 = vpack.c.b16 %v1963, %v1959
    %v2704 = vpack.c.b16 %v1964, %v1960
    %v2705 = vpack.c.b16 %v1965, %v1961
    %v2706 = vpack.c.b16 %v1966, %v1962
    %v2707 = vpack.c.b16 %v1971, %v1967
    %v2708 = vpack.c.b16 %v1972, %v1968
    %v2709 = vpack.c.b16 %v1973, %v1969
    %v2710 = vpack.c.b16 %v1974, %v1970
    %v2711 = vpack.c.b16 %v1979, %v1975
    %v2712 = vpack.c.b16 %v1980, %v1976
    %v2713 = vpack.c.b16 %v1981, %v1977
    %v2714 = vpack.c.b16 %v1982, %v1978
    %v2715 = vpack.c.b16 %v1987, %v1983
    %v2716 = vpack.c.b16 %v1988, %v1984
    %v2717 = vpack.c.b16 %v1989, %v1985
    %v2718 = vpack.c.b16 %v1990, %v1986
    %v2719 = vpack.c.b16 %v1995, %v1991
    %v2720 = vpack.c.b16 %v1996, %v1992
    %v2721 = vpack.c.b16 %v1997, %v1993
    %v2722 = vpack.c.b16 %v1998, %v1994
    %v2723 = vpack.c.b16 %v2003, %v1999
    %v2724 = vpack.c.b16 %v2004, %v2000
    %v2725 = vpack.c.b16 %v2005, %v2001
    %v2726 = vpack.c.b16 %v2006, %v2002
    %v2727 = vpack.c.b16 %v2011, %v2007
    %v2728 = vpack.c.b16 %v2012, %v2008
    %v2729 = vpack.c.b16 %v2013, %v2009
    %v2730 = vpack.c.b16 %v2014, %v2010
    %v2731 = vpack.c.b16 %v2019, %v2015
    %v2732 = vpack.c.b16 %v2020, %v2016
    %v2733 = vpack.c.b16 %v2021, %v2017
    %v2734 = vpack.c.b16 %v2022, %v2018
    %v2735 = vpack.c.b16 %v2027, %v2023
    %v2736 = vpack.c.b16 %v2028, %v2024
    %v2737 = vpack.c.b16 %v2029, %v2025
    %v2738 = vpack.c.b16 %v2030, %v2026
    %v2739 = vpack.c.b16 %v2035, %v2031
    %v2740 = vpack.c.b16 %v2036, %v2032
    %v2741 = vpack.c.b16 %v2037, %v2033
    %v2742 = vpack.c.b16 %v2038, %v2034
    %v2743 = vpack.c.b16 %v2043, %v2039
    %v2744 = vpack.c.b16 %v2044, %v2040
    %v2745 = vpack.c.b16 %v2045, %v2041
    %v2746 = vpack.c.b16 %v2046, %v2042
    %v2747 = vpack.c.b16 %v2051, %v2047
    %v2748 = vpack.c.b16 %v2052, %v2048
    %v2749 = vpack.c.b16 %v2053, %v2049
    %v2750 = vpack.c.b16 %v2054, %v2050
    %v2751 = vpack.c.b16 %v2059, %v2055
    %v2752 = vpack.c.b16 %v2060, %v2056
    %v2753 = vpack.c.b16 %v2061, %v2057
    %v2754 = vpack.c.b16 %v2062, %v2058
    %v2755 = vpack.c.b16 %v2067, %v2063
    %v2756 = vpack.c.b16 %v2068, %v2064
    %v2757 = vpack.c.b16 %v2069, %v2065
    %v2758 = vpack.c.b16 %v2070, %v2066
    %v2759 = vpack.c.b16 %v2075, %v2071
    %v2760 = vpack.c.b16 %v2076, %v2072
    %v2761 = vpack.c.b16 %v2077, %v2073
    %v2762 = vpack.c.b16 %v2078, %v2074
    %v2763 = vpack.c.b16 %v2083, %v2079
    %v2764 = vpack.c.b16 %v2084, %v2080
    %v2765 = vpack.c.b16 %v2085, %v2081
    %v2766 = vpack.c.b16 %v2086, %v2082
    %v2767 = vpack.c.b16 %v2091, %v2087
    %v2768 = vpack.c.b16 %v2092, %v2088
    %v2769 = vpack.c.b16 %v2093, %v2089
    %v2770 = vpack.c.b16 %v2094, %v2090
    %v2771 = vpack.c.b16 %v2099, %v2095
    %v2772 = vpack.c.b16 %v2100, %v2096
    %v2773 = vpack.c.b16 %v2101, %v2097
    %v2774 = vpack.c.b16 %v2102, %v2098
    %v2775 = vpack.c.b16 %v2107, %v2103
    %v2776 = vpack.c.b16 %v2108, %v2104
    %v2777 = vpack.c.b16 %v2109, %v2105
    %v2778 = vpack.c.b16 %v2110, %v2106
    %v2779 = vpack.c.b16 %v2115, %v2111
    %v2780 = vpack.c.b16 %v2116, %v2112
    %v2781 = vpack.c.b16 %v2117, %v2113
    %v2782 = vpack.c.b16 %v2118, %v2114
    %v2783 = vpack.c.b16 %v2123, %v2119
    %v2784 = vpack.c.b16 %v2124, %v2120
    %v2785 = vpack.c.b16 %v2125, %v2121
    %v2786 = vpack.c.b16 %v2126, %v2122
    %v2787 = vpack.c.b16 %v2131, %v2127
    %v2788 = vpack.c.b16 %v2132, %v2128
    %v2789 = vpack.c.b16 %v2133, %v2129
    %v2790 = vpack.c.b16 %v2134, %v2130
    %v2791 = vpack.c.b16 %v2139, %v2135
    %v2792 = vpack.c.b16 %v2140, %v2136
    %v2793 = vpack.c.b16 %v2141, %v2137
    %v2794 = vpack.c.b16 %v2142, %v2138
    %v2795 = vpack.c.b16 %v2147, %v2143
    %v2796 = vpack.c.b16 %v2148, %v2144
    %v2797 = vpack.c.b16 %v2149, %v2145
    %v2798 = vpack.c.b16 %v2150, %v2146
    %v2799 = vpack.c.b16 %v2155, %v2151
    %v2800 = vpack.c.b16 %v2156, %v2152
    %v2801 = vpack.c.b16 %v2157, %v2153
    %v2802 = vpack.c.b16 %v2158, %v2154
    %v2803 = vpack.c.b16 %v2163, %v2159
    %v2804 = vpack.c.b16 %v2164, %v2160
    %v2805 = vpack.c.b16 %v2165, %v2161
    %v2806 = vpack.c.b16 %v2166, %v2162
    %v2807 = vpack.c.b16 %v2171, %v2167
    %v2808 = vpack.c.b16 %v2172, %v2168
    %v2809 = vpack.c.b16 %v2173, %v2169
    %v2810 = vpack.c.b16 %v2174, %v2170
    %v2811 = vpack.c.b16 %v2179, %v2175
    %v2812 = vpack.c.b16 %v2180, %v2176
    %v2813 = vpack.c.b16 %v2181, %v2177
    %v2814 = vpack.c.b16 %v2182, %v2178
    %v2815 = vpack.c.b16 %v2187, %v2183
    %v2816 = vpack.c.b16 %v2188, %v2184
    %v2817 = vpack.c.b16 %v2189, %v2185
    %v2818 = vpack.c.b16 %v2190, %v2186
    %v2819 = vpack.c.b16 %v2195, %v2191
    %v2820 = vpack.c.b16 %v2196, %v2192
    %v2821 = vpack.c.b16 %v2197, %v2193
    %v2822 = vpack.c.b16 %v2198, %v2194
    %v2823 = vpack.c.b16 %v2203, %v2199
    %v2824 = vpack.c.b16 %v2204, %v2200
    %v2825 = vpack.c.b16 %v2205, %v2201
    %v2826 = vpack.c.b16 %v2206, %v2202
    %v2827 = vpack.c.b16 %v2211, %v2207
    %v2828 = vpack.c.b16 %v2212, %v2208
    %v2829 = vpack.c.b16 %v2213, %v2209
    %v2830 = vpack.c.b16 %v2214, %v2210
    %v2831 = vpack.c.b16 %v2219, %v2215
    %v2832 = vpack.c.b16 %v2220, %v2216
    %v2833 = vpack.c.b16 %v2221, %v2217
    %v2834 = vpack.c.b16 %v2222, %v2218
    %v2835 = vpack.c.b16 %v2227, %v2223
    %v2836 = vpack.c.b16 %v2228, %v2224
    %v2837 = vpack.c.b16 %v2229, %v2225
    %v2838 = vpack.c.b16 %v2230, %v2226
    %v2839 = vpack.c.b16 %v2235, %v2231
    %v2840 = vpack.c.b16 %v2236, %v2232
    %v2841 = vpack.c.b16 %v2237, %v2233
    %v2842 = vpack.c.b16 %v2238, %v2234
    %v2843 = vpack.c.b16 %v2243, %v2239
    %v2844 = vpack.c.b16 %v2244, %v2240
    %v2845 = vpack.c.b16 %v2245, %v2241
    %v2846 = vpack.c.b16 %v2246, %v2242
    %v2847 = vpack.c.b16 %v2251, %v2247
    %v2848 = vpack.c.b16 %v2252, %v2248
    %v2849 = vpack.c.b16 %v2253, %v2249
    %v2850 = vpack.c.b16 %v2254, %v2250
    %v2851 = vpack.c.b16 %v2259, %v2255
    %v2852 = vpack.c.b16 %v2260, %v2256
    %v2853 = vpack.c.b16 %v2261, %v2257
    %v2854 = vpack.c.b16 %v2262, %v2258
    %v2855 = vpack.c.b16 %v2267, %v2263
    %v2856 = vpack.c.b16 %v2268, %v2264
    %v2857 = vpack.c.b16 %v2269, %v2265
    %v2858 = vpack.c.b16 %v2270, %v2266
    %v2859 = vpack.c.b16 %v2275, %v2271
    %v2860 = vpack.c.b16 %v2276, %v2272
    %v2861 = vpack.c.b16 %v2277, %v2273
    %v2862 = vpack.c.b16 %v2278, %v2274
    %v2863 = vpack.c.b16 %v2283, %v2279
    %v2864 = vpack.c.b16 %v2284, %v2280
    %v2865 = vpack.c.b16 %v2285, %v2281
    %v2866 = vpack.c.b16 %v2286, %v2282
    %v2867 = vpack.c.b16 %v2291, %v2287
    %v2868 = vpack.c.b16 %v2292, %v2288
    %v2869 = vpack.c.b16 %v2293, %v2289
    %v2870 = vpack.c.b16 %v2294, %v2290
    %v2871 = vpack.c.b16 %v2299, %v2295
    %v2872 = vpack.c.b16 %v2300, %v2296
    %v2873 = vpack.c.b16 %v2301, %v2297
    %v2874 = vpack.c.b16 %v2302, %v2298
    %v2875 = vpack.c.b16 %v2307, %v2303
    %v2876 = vpack.c.b16 %v2308, %v2304
    %v2877 = vpack.c.b16 %v2309, %v2305
    %v2878 = vpack.c.b16 %v2310, %v2306
    %v2879 = vpack.c.b16 %v2315, %v2311
    %v2880 = vpack.c.b16 %v2316, %v2312
    %v2881 = vpack.c.b16 %v2317, %v2313
    %v2882 = vpack.c.b16 %v2318, %v2314
    %v2883 = vpack.c.b16 %v2323, %v2319
    %v2884 = vpack.c.b16 %v2324, %v2320
    %v2885 = vpack.c.b16 %v2325, %v2321
    %v2886 = vpack.c.b16 %v2326, %v2322
    %v2887 = vpack.c.b16 %v2331, %v2327
    %v2888 = vpack.c.b16 %v2332, %v2328
    %v2889 = vpack.c.b16 %v2333, %v2329
    %v2890 = vpack.c.b16 %v2334, %v2330
    %v2891 = vpack.c.b16 %v2339, %v2335
    %v2892 = vpack.c.b16 %v2340, %v2336
    %v2893 = vpack.c.b16 %v2341, %v2337
    %v2894 = vpack.c.b16 %v2342, %v2338
    %v2895 = vpack.c.b16 %v2347, %v2343
    %v2896 = vpack.c.b16 %v2348, %v2344
    %v2897 = vpack.c.b16 %v2349, %v2345
    %v2898 = vpack.c.b16 %v2350, %v2346
    %v2899 = vpack.c.b16 %v2355, %v2351
    %v2900 = vpack.c.b16 %v2356, %v2352
    %v2901 = vpack.c.b16 %v2357, %v2353
    %v2902 = vpack.c.b16 %v2358, %v2354
    %v2903 = vpack.c.b16 %v2363, %v2359
    %v2904 = vpack.c.b16 %v2364, %v2360
    %v2905 = vpack.c.b16 %v2365, %v2361
    %v2906 = vpack.c.b16 %v2366, %v2362
    %v2907 = vpack.c.b16 %v2371, %v2367
    %v2908 = vpack.c.b16 %v2372, %v2368
    %v2909 = vpack.c.b16 %v2373, %v2369
    %v2910 = vpack.c.b16 %v2374, %v2370
    %v2911 = vpack.c.b16 %v2379, %v2375
    %v2912 = vpack.c.b16 %v2380, %v2376
    %v2913 = vpack.c.b16 %v2381, %v2377
    %v2914 = vpack.c.b16 %v2382, %v2378
    %v2915 = vpack.c.b16 %v2387, %v2383
    %v2916 = vpack.c.b16 %v2388, %v2384
    %v2917 = vpack.c.b16 %v2389, %v2385
    %v2918 = vpack.c.b16 %v2390, %v2386
    %v2919 = vpack.c.b16 %v2395, %v2391
    %v2920 = vpack.c.b16 %v2396, %v2392
    %v2921 = vpack.c.b16 %v2397, %v2393
    %v2922 = vpack.c.b16 %v2398, %v2394
    %v2923 = vpack.c.b16 %v2403, %v2399
    %v2924 = vpack.c.b16 %v2404, %v2400
    %v2925 = vpack.c.b16 %v2405, %v2401
    %v2926 = vpack.c.b16 %v2406, %v2402
    %v2927 = vpack.c.b16 %v2411, %v2407
    %v2928 = vpack.c.b16 %v2412, %v2408
    %v2929 = vpack.c.b16 %v2413, %v2409
    %v2930 = vpack.c.b16 %v2414, %v2410
    %v2931 = vpack.c.b16 %v2419, %v2415
    %v2932 = vpack.c.b16 %v2420, %v2416
    %v2933 = vpack.c.b16 %v2421, %v2417
    %v2934 = vpack.c.b16 %v2422, %v2418
    %3447 = vmatprep.subr.bf16.mxu0 %v2452
    %3448 = vmatpush1.bf16.msra.mxu0 %v2451
    %3449 = vmatprep.subr.bf16.mxu0 %v2448
    %3450 = vmatpush1.bf16.msra.mxu0 %v2447
    %3451 = vmatprep.subr.bf16.mxu0 %v2444
    %3452 = vmatpush1.bf16.msra.mxu0 %v2443
    %3453 = vmatprep.subr.bf16.mxu0 %v2440
    %3454 = vmatpush1.bf16.msra.mxu0 %v2439
    %3455 = vmatprep.subr.bf16.mxu0 %v2436
    %3456 = vmatpush1.bf16.msra.mxu0 %v2435
    %3457 = vmatprep.subr.bf16.mxu0 %v2432
    %3458 = vmatpush1.bf16.msra.mxu0 %v2431
    %3459 = vmatprep.subr.bf16.mxu0 %v2428
    %3460 = vmatpush1.bf16.msra.mxu0 %v2427
    %3461 = vmatprep.subr.bf16.mxu0 %v2424
    %3462 = vmatpush1.bf16.msra.mxu0 %v2423
    %3463 = vmatprep.subr.bf16.mxu0 %v2484
    %3464 = vmatpush2.bf16.msra.mxu0 %v2483
    %3465 = vmatprep.subr.bf16.mxu0 %v2480
    %3466 = vmatpush2.bf16.msra.mxu0 %v2479
    %3467 = vmatprep.subr.bf16.mxu0 %v2476
    %3468 = vmatpush2.bf16.msra.mxu0 %v2475
    %3469 = vmatprep.subr.bf16.mxu0 %v2472
    %3470 = vmatpush2.bf16.msra.mxu0 %v2471
    %3471 = vmatprep.subr.bf16.mxu0 %v2468
    %3472 = vmatpush2.bf16.msra.mxu0 %v2467
    %3473 = vmatprep.subr.bf16.mxu0 %v2464
    %3474 = vmatpush2.bf16.msra.mxu0 %v2463
    %3475 = vmatprep.subr.bf16.mxu0 %v2460
    %3476 = vmatpush2.bf16.msra.mxu0 %v2459
    %3477 = vmatprep.subr.bf16.mxu0 %v2456
    %3478 = vmatpush2.bf16.msra.mxu0 %v2455
    %3479 = vmatprep.mubr.bf16.mxu0 %v295
    %3480 = vmatmul.mubr.bf16.gmra.mxu0 %v291
    %v3481 = vpop.f32.mrf.mxu0
    %v3482 = vadd.f32 %v870, %v3481
    %v3483 = vpop.f32.mrf.mxu0
    %v3484 = vadd.f32 %v874, %v3483
    %v3485 = vpop.f32.mrf.mxu0
    %v3486 = vpop.f32.mrf.mxu0
    %3487 = vdwg.mxu0
    %3488 = vmatprep.subr.bf16.mxu0 %v2516
    %3489 = vmatpush1.bf16.msra.mxu0 %v2515
    %3490 = vmatprep.subr.bf16.mxu0 %v2512
    %3491 = vmatpush1.bf16.msra.mxu0 %v2511
    %3492 = vmatprep.subr.bf16.mxu0 %v2508
    %3493 = vmatpush1.bf16.msra.mxu0 %v2507
    %3494 = vmatprep.subr.bf16.mxu0 %v2504
    %3495 = vmatpush1.bf16.msra.mxu0 %v2503
    %3496 = vmatprep.subr.bf16.mxu0 %v2500
    %3497 = vmatpush1.bf16.msra.mxu0 %v2499
    %3498 = vmatprep.subr.bf16.mxu0 %v2496
    %3499 = vmatpush1.bf16.msra.mxu0 %v2495
    %3500 = vmatprep.subr.bf16.mxu0 %v2492
    %3501 = vmatpush1.bf16.msra.mxu0 %v2491
    %3502 = vmatprep.subr.bf16.mxu0 %v2488
    %3503 = vmatpush1.bf16.msra.mxu0 %v2487
    %3504 = vmatprep.subr.bf16.mxu0 %v2548
    %3505 = vmatpush2.bf16.msra.mxu0 %v2547
    %3506 = vmatprep.subr.bf16.mxu0 %v2544
    %3507 = vmatpush2.bf16.msra.mxu0 %v2543
    %3508 = vmatprep.subr.bf16.mxu0 %v2540
    %3509 = vmatpush2.bf16.msra.mxu0 %v2539
    %3510 = vmatprep.subr.bf16.mxu0 %v2536
    %3511 = vmatpush2.bf16.msra.mxu0 %v2535
    %3512 = vmatprep.subr.bf16.mxu0 %v2532
    %3513 = vmatpush2.bf16.msra.mxu0 %v2531
    %3514 = vmatprep.subr.bf16.mxu0 %v2528
    %3515 = vmatpush2.bf16.msra.mxu0 %v2527
    %3516 = vmatprep.subr.bf16.mxu0 %v2524
    %3517 = vmatpush2.bf16.msra.mxu0 %v2523
    %3518 = vmatprep.subr.bf16.mxu0 %v2520
    %3519 = vmatpush2.bf16.msra.mxu0 %v2519
    %3520 = vmatprep.mubr.bf16.mxu0 %v303
    %3521 = vmatmul.mubr.bf16.gmra.mxu0 %v299
    %v3522 = vpop.f32.mrf.mxu0
    %v3523 = vadd.f32 %v3482, %v3522
    %v3524 = vpop.f32.mrf.mxu0
    %v3525 = vadd.f32 %v3484, %v3524
    %v3526 = vpop.f32.mrf.mxu0
    %v3527 = vpop.f32.mrf.mxu0
    %3528 = vdwg.mxu0
    %3529 = vmatprep.subr.bf16.mxu0 %v2580
    %3530 = vmatpush1.bf16.msra.mxu0 %v2579
    %3531 = vmatprep.subr.bf16.mxu0 %v2576
    %3532 = vmatpush1.bf16.msra.mxu0 %v2575
    %3533 = vmatprep.subr.bf16.mxu0 %v2572
    %3534 = vmatpush1.bf16.msra.mxu0 %v2571
    %3535 = vmatprep.subr.bf16.mxu0 %v2568
    %3536 = vmatpush1.bf16.msra.mxu0 %v2567
    %3537 = vmatprep.subr.bf16.mxu0 %v2564
    %3538 = vmatpush1.bf16.msra.mxu0 %v2563
    %3539 = vmatprep.subr.bf16.mxu0 %v2560
    %3540 = vmatpush1.bf16.msra.mxu0 %v2559
    %3541 = vmatprep.subr.bf16.mxu0 %v2556
    %3542 = vmatpush1.bf16.msra.mxu0 %v2555
    %3543 = vmatprep.subr.bf16.mxu0 %v2552
    %3544 = vmatpush1.bf16.msra.mxu0 %v2551
    %3545 = vmatprep.subr.bf16.mxu0 %v2612
    %3546 = vmatpush2.bf16.msra.mxu0 %v2611
    %3547 = vmatprep.subr.bf16.mxu0 %v2608
    %3548 = vmatpush2.bf16.msra.mxu0 %v2607
    %3549 = vmatprep.subr.bf16.mxu0 %v2604
    %3550 = vmatpush2.bf16.msra.mxu0 %v2603
    %3551 = vmatprep.subr.bf16.mxu0 %v2600
    %3552 = vmatpush2.bf16.msra.mxu0 %v2599
    %3553 = vmatprep.subr.bf16.mxu0 %v2596
    %3554 = vmatpush2.bf16.msra.mxu0 %v2595
    %3555 = vmatprep.subr.bf16.mxu0 %v2592
    %3556 = vmatpush2.bf16.msra.mxu0 %v2591
    %3557 = vmatprep.subr.bf16.mxu0 %v2588
    %3558 = vmatpush2.bf16.msra.mxu0 %v2587
    %3559 = vmatprep.subr.bf16.mxu0 %v2584
    %3560 = vmatpush2.bf16.msra.mxu0 %v2583
    %3561 = vmatprep.mubr.bf16.mxu0 %v311
    %3562 = vmatmul.mubr.bf16.gmra.mxu0 %v307
    %v3563 = vpop.f32.mrf.mxu0
    %v3564 = vadd.f32 %v3523, %v3563
    %v3565 = vpop.f32.mrf.mxu0
    %v3566 = vadd.f32 %v3525, %v3565
    %v3567 = vpop.f32.mrf.mxu0
    %v3568 = vpop.f32.mrf.mxu0
    %3569 = vdwg.mxu0
    %3570 = vmatprep.subr.bf16.mxu0 %v2644
    %3571 = vmatpush1.bf16.msra.mxu0 %v2643
    %3572 = vmatprep.subr.bf16.mxu0 %v2640
    %3573 = vmatpush1.bf16.msra.mxu0 %v2639
    %3574 = vmatprep.subr.bf16.mxu0 %v2636
    %3575 = vmatpush1.bf16.msra.mxu0 %v2635
    %3576 = vmatprep.subr.bf16.mxu0 %v2632
    %3577 = vmatpush1.bf16.msra.mxu0 %v2631
    %3578 = vmatprep.subr.bf16.mxu0 %v2628
    %3579 = vmatpush1.bf16.msra.mxu0 %v2627
    %3580 = vmatprep.subr.bf16.mxu0 %v2624
    %3581 = vmatpush1.bf16.msra.mxu0 %v2623
    %3582 = vmatprep.subr.bf16.mxu0 %v2620
    %3583 = vmatpush1.bf16.msra.mxu0 %v2619
    %3584 = vmatprep.subr.bf16.mxu0 %v2616
    %3585 = vmatpush1.bf16.msra.mxu0 %v2615
    %3586 = vmatprep.subr.bf16.mxu0 %v2676
    %3587 = vmatpush2.bf16.msra.mxu0 %v2675
    %3588 = vmatprep.subr.bf16.mxu0 %v2672
    %3589 = vmatpush2.bf16.msra.mxu0 %v2671
    %3590 = vmatprep.subr.bf16.mxu0 %v2668
    %3591 = vmatpush2.bf16.msra.mxu0 %v2667
    %3592 = vmatprep.subr.bf16.mxu0 %v2664
    %3593 = vmatpush2.bf16.msra.mxu0 %v2663
    %3594 = vmatprep.subr.bf16.mxu0 %v2660
    %3595 = vmatpush2.bf16.msra.mxu0 %v2659
    %3596 = vmatprep.subr.bf16.mxu0 %v2656
    %3597 = vmatpush2.bf16.msra.mxu0 %v2655
    %3598 = vmatprep.subr.bf16.mxu0 %v2652
    %3599 = vmatpush2.bf16.msra.mxu0 %v2651
    %3600 = vmatprep.subr.bf16.mxu0 %v2648
    %3601 = vmatpush2.bf16.msra.mxu0 %v2647
    %3602 = vmatprep.mubr.bf16.mxu0 %v319
    %3603 = vmatmul.mubr.bf16.gmra.mxu0 %v315
    %v3604 = vpop.f32.mrf.mxu0
    %v3605 = vadd.f32 %v3564, %v3604
    %v3606 = vpop.f32.mrf.mxu0
    %v3607 = vadd.f32 %v3566, %v3606
    %v3608 = vpop.f32.mrf.mxu0
    %v3609 = vpop.f32.mrf.mxu0
    %3610 = vdwg.mxu0
    %3611 = vmatprep.subr.bf16.mxu0 %v2708
    %3612 = vmatpush1.bf16.msra.mxu0 %v2707
    %3613 = vmatprep.subr.bf16.mxu0 %v2704
    %3614 = vmatpush1.bf16.msra.mxu0 %v2703
    %3615 = vmatprep.subr.bf16.mxu0 %v2700
    %3616 = vmatpush1.bf16.msra.mxu0 %v2699
    %3617 = vmatprep.subr.bf16.mxu0 %v2696
    %3618 = vmatpush1.bf16.msra.mxu0 %v2695
    %3619 = vmatprep.subr.bf16.mxu0 %v2692
    %3620 = vmatpush1.bf16.msra.mxu0 %v2691
    %3621 = vmatprep.subr.bf16.mxu0 %v2688
    %3622 = vmatpush1.bf16.msra.mxu0 %v2687
    %3623 = vmatprep.subr.bf16.mxu0 %v2684
    %3624 = vmatpush1.bf16.msra.mxu0 %v2683
    %3625 = vmatprep.subr.bf16.mxu0 %v2680
    %3626 = vmatpush1.bf16.msra.mxu0 %v2679
    %3627 = vmatprep.subr.bf16.mxu0 %v2740
    %3628 = vmatpush2.bf16.msra.mxu0 %v2739
    %3629 = vmatprep.subr.bf16.mxu0 %v2736
    %3630 = vmatpush2.bf16.msra.mxu0 %v2735
    %3631 = vmatprep.subr.bf16.mxu0 %v2732
    %3632 = vmatpush2.bf16.msra.mxu0 %v2731
    %3633 = vmatprep.subr.bf16.mxu0 %v2728
    %3634 = vmatpush2.bf16.msra.mxu0 %v2727
    %3635 = vmatprep.subr.bf16.mxu0 %v2724
    %3636 = vmatpush2.bf16.msra.mxu0 %v2723
    %3637 = vmatprep.subr.bf16.mxu0 %v2720
    %3638 = vmatpush2.bf16.msra.mxu0 %v2719
    %3639 = vmatprep.subr.bf16.mxu0 %v2716
    %3640 = vmatpush2.bf16.msra.mxu0 %v2715
    %3641 = vmatprep.subr.bf16.mxu0 %v2712
    %3642 = vmatpush2.bf16.msra.mxu0 %v2711
    %3643 = vmatprep.mubr.bf16.mxu0 %v327
    %3644 = vmatmul.mubr.bf16.gmra.mxu0 %v323
    %v3645 = vpop.f32.mrf.mxu0
    %v3646 = vadd.f32 %v3605, %v3645
    %v3647 = vpop.f32.mrf.mxu0
    %v3648 = vadd.f32 %v3607, %v3647
    %v3649 = vpop.f32.mrf.mxu0
    %v3650 = vpop.f32.mrf.mxu0
    %3651 = vdwg.mxu0
    %3652 = vmatprep.subr.bf16.mxu0 %v2772
    %3653 = vmatpush1.bf16.msra.mxu0 %v2771
    %3654 = vmatprep.subr.bf16.mxu0 %v2768
    %3655 = vmatpush1.bf16.msra.mxu0 %v2767
    %3656 = vmatprep.subr.bf16.mxu0 %v2764
    %3657 = vmatpush1.bf16.msra.mxu0 %v2763
    %3658 = vmatprep.subr.bf16.mxu0 %v2760
    %3659 = vmatpush1.bf16.msra.mxu0 %v2759
    %3660 = vmatprep.subr.bf16.mxu0 %v2756
    %3661 = vmatpush1.bf16.msra.mxu0 %v2755
    %3662 = vmatprep.subr.bf16.mxu0 %v2752
    %3663 = vmatpush1.bf16.msra.mxu0 %v2751
    %3664 = vmatprep.subr.bf16.mxu0 %v2748
    %3665 = vmatpush1.bf16.msra.mxu0 %v2747
    %3666 = vmatprep.subr.bf16.mxu0 %v2744
    %3667 = vmatpush1.bf16.msra.mxu0 %v2743
    %3668 = vmatprep.subr.bf16.mxu0 %v2804
    %3669 = vmatpush2.bf16.msra.mxu0 %v2803
    %3670 = vmatprep.subr.bf16.mxu0 %v2800
    %3671 = vmatpush2.bf16.msra.mxu0 %v2799
    %3672 = vmatprep.subr.bf16.mxu0 %v2796
    %3673 = vmatpush2.bf16.msra.mxu0 %v2795
    %3674 = vmatprep.subr.bf16.mxu0 %v2792
    %3675 = vmatpush2.bf16.msra.mxu0 %v2791
    %3676 = vmatprep.subr.bf16.mxu0 %v2788
    %3677 = vmatpush2.bf16.msra.mxu0 %v2787
    %3678 = vmatprep.subr.bf16.mxu0 %v2784
    %3679 = vmatpush2.bf16.msra.mxu0 %v2783
    %3680 = vmatprep.subr.bf16.mxu0 %v2780
    %3681 = vmatpush2.bf16.msra.mxu0 %v2779
    %3682 = vmatprep.subr.bf16.mxu0 %v2776
    %3683 = vmatpush2.bf16.msra.mxu0 %v2775
    %3684 = vmatprep.mubr.bf16.mxu0 %v335
    %3685 = vmatmul.mubr.bf16.gmra.mxu0 %v331
    %v3686 = vpop.f32.mrf.mxu0
    %v3687 = vadd.f32 %v3646, %v3686
    %v3688 = vpop.f32.mrf.mxu0
    %v3689 = vadd.f32 %v3648, %v3688
    %v3690 = vpop.f32.mrf.mxu0
    %v3691 = vpop.f32.mrf.mxu0
    %3692 = vdwg.mxu0
    %3693 = vmatprep.subr.bf16.mxu0 %v2836
    %3694 = vmatpush1.bf16.msra.mxu0 %v2835
    %3695 = vmatprep.subr.bf16.mxu0 %v2832
    %3696 = vmatpush1.bf16.msra.mxu0 %v2831
    %3697 = vmatprep.subr.bf16.mxu0 %v2828
    %3698 = vmatpush1.bf16.msra.mxu0 %v2827
    %3699 = vmatprep.subr.bf16.mxu0 %v2824
    %3700 = vmatpush1.bf16.msra.mxu0 %v2823
    %3701 = vmatprep.subr.bf16.mxu0 %v2820
    %3702 = vmatpush1.bf16.msra.mxu0 %v2819
    %3703 = vmatprep.subr.bf16.mxu0 %v2816
    %3704 = vmatpush1.bf16.msra.mxu0 %v2815
    %3705 = vmatprep.subr.bf16.mxu0 %v2812
    %3706 = vmatpush1.bf16.msra.mxu0 %v2811
    %3707 = vmatprep.subr.bf16.mxu0 %v2808
    %3708 = vmatpush1.bf16.msra.mxu0 %v2807
    %3709 = vmatprep.subr.bf16.mxu0 %v2868
    %3710 = vmatpush2.bf16.msra.mxu0 %v2867
    %3711 = vmatprep.subr.bf16.mxu0 %v2864
    %3712 = vmatpush2.bf16.msra.mxu0 %v2863
    %3713 = vmatprep.subr.bf16.mxu0 %v2860
    %3714 = vmatpush2.bf16.msra.mxu0 %v2859
    %3715 = vmatprep.subr.bf16.mxu0 %v2856
    %3716 = vmatpush2.bf16.msra.mxu0 %v2855
    %3717 = vmatprep.subr.bf16.mxu0 %v2852
    %3718 = vmatpush2.bf16.msra.mxu0 %v2851
    %3719 = vmatprep.subr.bf16.mxu0 %v2848
    %3720 = vmatpush2.bf16.msra.mxu0 %v2847
    %3721 = vmatprep.subr.bf16.mxu0 %v2844
    %3722 = vmatpush2.bf16.msra.mxu0 %v2843
    %3723 = vmatprep.subr.bf16.mxu0 %v2840
    %3724 = vmatpush2.bf16.msra.mxu0 %v2839
    %3725 = vmatprep.mubr.bf16.mxu0 %v343
    %3726 = vmatmul.mubr.bf16.gmra.mxu0 %v339
    %v3727 = vpop.f32.mrf.mxu0
    %v3728 = vadd.f32 %v3687, %v3727
    %v3729 = vpop.f32.mrf.mxu0
    %v3730 = vadd.f32 %v3689, %v3729
    %v3731 = vpop.f32.mrf.mxu0
    %v3732 = vpop.f32.mrf.mxu0
    %3733 = vdwg.mxu0
    %3734 = vmatprep.subr.bf16.mxu0 %v2900
    %3735 = vmatpush1.bf16.msra.mxu0 %v2899
    %3736 = vmatprep.subr.bf16.mxu0 %v2896
    %3737 = vmatpush1.bf16.msra.mxu0 %v2895
    %3738 = vmatprep.subr.bf16.mxu0 %v2892
    %3739 = vmatpush1.bf16.msra.mxu0 %v2891
    %3740 = vmatprep.subr.bf16.mxu0 %v2888
    %3741 = vmatpush1.bf16.msra.mxu0 %v2887
    %3742 = vmatprep.subr.bf16.mxu0 %v2884
    %3743 = vmatpush1.bf16.msra.mxu0 %v2883
    %3744 = vmatprep.subr.bf16.mxu0 %v2880
    %3745 = vmatpush1.bf16.msra.mxu0 %v2879
    %3746 = vmatprep.subr.bf16.mxu0 %v2876
    %3747 = vmatpush1.bf16.msra.mxu0 %v2875
    %3748 = vmatprep.subr.bf16.mxu0 %v2872
    %3749 = vmatpush1.bf16.msra.mxu0 %v2871
    %3750 = vmatprep.subr.bf16.mxu0 %v2932
    %3751 = vmatpush2.bf16.msra.mxu0 %v2931
    %3752 = vmatprep.subr.bf16.mxu0 %v2928
    %3753 = vmatpush2.bf16.msra.mxu0 %v2927
    %3754 = vmatprep.subr.bf16.mxu0 %v2924
    %3755 = vmatpush2.bf16.msra.mxu0 %v2923
    %3756 = vmatprep.subr.bf16.mxu0 %v2920
    %3757 = vmatpush2.bf16.msra.mxu0 %v2919
    %3758 = vmatprep.subr.bf16.mxu0 %v2916
    %3759 = vmatpush2.bf16.msra.mxu0 %v2915
    %3760 = vmatprep.subr.bf16.mxu0 %v2912
    %3761 = vmatpush2.bf16.msra.mxu0 %v2911
    %3762 = vmatprep.subr.bf16.mxu0 %v2908
    %3763 = vmatpush2.bf16.msra.mxu0 %v2907
    %3764 = vmatprep.subr.bf16.mxu0 %v2904
    %3765 = vmatpush2.bf16.msra.mxu0 %v2903
    %3766 = vmatprep.mubr.bf16.mxu0 %v351
    %3767 = vmatmul.mubr.bf16.gmra.mxu0 %v347
    %v3768 = vpop.f32.mrf.mxu0
    %v3769 = vadd.f32 %v3728, %v3768
    %v3770 = vpop.f32.mrf.mxu0
    %v3771 = vadd.f32 %v3730, %v3770
    %v3772 = vpop.f32.mrf.mxu0
    %v3773 = vpop.f32.mrf.mxu0
    %3774 = vdwg.mxu0
    %3775 = vmatprep.subr.bf16.mxu0 %v2454
    %3776 = vmatpush1.bf16.msra.mxu0 %v2453
    %3777 = vmatprep.subr.bf16.mxu0 %v2450
    %3778 = vmatpush1.bf16.msra.mxu0 %v2449
    %3779 = vmatprep.subr.bf16.mxu0 %v2446
    %3780 = vmatpush1.bf16.msra.mxu0 %v2445
    %3781 = vmatprep.subr.bf16.mxu0 %v2442
    %3782 = vmatpush1.bf16.msra.mxu0 %v2441
    %3783 = vmatprep.subr.bf16.mxu0 %v2438
    %3784 = vmatpush1.bf16.msra.mxu0 %v2437
    %3785 = vmatprep.subr.bf16.mxu0 %v2434
    %3786 = vmatpush1.bf16.msra.mxu0 %v2433
    %3787 = vmatprep.subr.bf16.mxu0 %v2430
    %3788 = vmatpush1.bf16.msra.mxu0 %v2429
    %3789 = vmatprep.subr.bf16.mxu0 %v2426
    %3790 = vmatpush1.bf16.msra.mxu0 %v2425
    %3791 = vmatprep.subr.bf16.mxu0 %v2486
    %3792 = vmatpush2.bf16.msra.mxu0 %v2485
    %3793 = vmatprep.subr.bf16.mxu0 %v2482
    %3794 = vmatpush2.bf16.msra.mxu0 %v2481
    %3795 = vmatprep.subr.bf16.mxu0 %v2478
    %3796 = vmatpush2.bf16.msra.mxu0 %v2477
    %3797 = vmatprep.subr.bf16.mxu0 %v2474
    %3798 = vmatpush2.bf16.msra.mxu0 %v2473
    %3799 = vmatprep.subr.bf16.mxu0 %v2470
    %3800 = vmatpush2.bf16.msra.mxu0 %v2469
    %3801 = vmatprep.subr.bf16.mxu0 %v2466
    %3802 = vmatpush2.bf16.msra.mxu0 %v2465
    %3803 = vmatprep.subr.bf16.mxu0 %v2462
    %3804 = vmatpush2.bf16.msra.mxu0 %v2461
    %3805 = vmatprep.subr.bf16.mxu0 %v2458
    %3806 = vmatpush2.bf16.msra.mxu0 %v2457
    %3807 = vmatprep.mubr.bf16.mxu0 %v295
    %3808 = vmatmul.mubr.bf16.gmra.mxu0 %v291
    %v3809 = vpop.f32.mrf.mxu0
    %v3810 = vadd.f32 %v878, %v3809
    %v3811 = vpop.f32.mrf.mxu0
    %v3812 = vadd.f32 %v882, %v3811
    %v3813 = vpop.f32.mrf.mxu0
    %v3814 = vpop.f32.mrf.mxu0
    %3815 = vdwg.mxu0
    %3816 = vmatprep.subr.bf16.mxu0 %v2518
    %3817 = vmatpush1.bf16.msra.mxu0 %v2517
    %3818 = vmatprep.subr.bf16.mxu0 %v2514
    %3819 = vmatpush1.bf16.msra.mxu0 %v2513
    %3820 = vmatprep.subr.bf16.mxu0 %v2510
    %3821 = vmatpush1.bf16.msra.mxu0 %v2509
    %3822 = vmatprep.subr.bf16.mxu0 %v2506
    %3823 = vmatpush1.bf16.msra.mxu0 %v2505
    %3824 = vmatprep.subr.bf16.mxu0 %v2502
    %3825 = vmatpush1.bf16.msra.mxu0 %v2501
    %3826 = vmatprep.subr.bf16.mxu0 %v2498
    %3827 = vmatpush1.bf16.msra.mxu0 %v2497
    %3828 = vmatprep.subr.bf16.mxu0 %v2494
    %3829 = vmatpush1.bf16.msra.mxu0 %v2493
    %3830 = vmatprep.subr.bf16.mxu0 %v2490
    %3831 = vmatpush1.bf16.msra.mxu0 %v2489
    %3832 = vmatprep.subr.bf16.mxu0 %v2550
    %3833 = vmatpush2.bf16.msra.mxu0 %v2549
    %3834 = vmatprep.subr.bf16.mxu0 %v2546
    %3835 = vmatpush2.bf16.msra.mxu0 %v2545
    %3836 = vmatprep.subr.bf16.mxu0 %v2542
    %3837 = vmatpush2.bf16.msra.mxu0 %v2541
    %3838 = vmatprep.subr.bf16.mxu0 %v2538
    %3839 = vmatpush2.bf16.msra.mxu0 %v2537
    %3840 = vmatprep.subr.bf16.mxu0 %v2534
    %3841 = vmatpush2.bf16.msra.mxu0 %v2533
    %3842 = vmatprep.subr.bf16.mxu0 %v2530
    %3843 = vmatpush2.bf16.msra.mxu0 %v2529
    %3844 = vmatprep.subr.bf16.mxu0 %v2526
    %3845 = vmatpush2.bf16.msra.mxu0 %v2525
    %3846 = vmatprep.subr.bf16.mxu0 %v2522
    %3847 = vmatpush2.bf16.msra.mxu0 %v2521
    %3848 = vmatprep.mubr.bf16.mxu0 %v303
    %3849 = vmatmul.mubr.bf16.gmra.mxu0 %v299
    %v3850 = vpop.f32.mrf.mxu0
    %v3851 = vadd.f32 %v3810, %v3850
    %v3852 = vpop.f32.mrf.mxu0
    %v3853 = vadd.f32 %v3812, %v3852
    %v3854 = vpop.f32.mrf.mxu0
    %v3855 = vpop.f32.mrf.mxu0
    %3856 = vdwg.mxu0
    %3857 = vmatprep.subr.bf16.mxu0 %v2582
    %3858 = vmatpush1.bf16.msra.mxu0 %v2581
    %3859 = vmatprep.subr.bf16.mxu0 %v2578
    %3860 = vmatpush1.bf16.msra.mxu0 %v2577
    %3861 = vmatprep.subr.bf16.mxu0 %v2574
    %3862 = vmatpush1.bf16.msra.mxu0 %v2573
    %3863 = vmatprep.subr.bf16.mxu0 %v2570
    %3864 = vmatpush1.bf16.msra.mxu0 %v2569
    %3865 = vmatprep.subr.bf16.mxu0 %v2566
    %3866 = vmatpush1.bf16.msra.mxu0 %v2565
    %3867 = vmatprep.subr.bf16.mxu0 %v2562
    %3868 = vmatpush1.bf16.msra.mxu0 %v2561
    %3869 = vmatprep.subr.bf16.mxu0 %v2558
    %3870 = vmatpush1.bf16.msra.mxu0 %v2557
    %3871 = vmatprep.subr.bf16.mxu0 %v2554
    %3872 = vmatpush1.bf16.msra.mxu0 %v2553
    %3873 = vmatprep.subr.bf16.mxu0 %v2614
    %3874 = vmatpush2.bf16.msra.mxu0 %v2613
    %3875 = vmatprep.subr.bf16.mxu0 %v2610
    %3876 = vmatpush2.bf16.msra.mxu0 %v2609
    %3877 = vmatprep.subr.bf16.mxu0 %v2606
    %3878 = vmatpush2.bf16.msra.mxu0 %v2605
    %3879 = vmatprep.subr.bf16.mxu0 %v2602
    %3880 = vmatpush2.bf16.msra.mxu0 %v2601
    %3881 = vmatprep.subr.bf16.mxu0 %v2598
    %3882 = vmatpush2.bf16.msra.mxu0 %v2597
    %3883 = vmatprep.subr.bf16.mxu0 %v2594
    %3884 = vmatpush2.bf16.msra.mxu0 %v2593
    %3885 = vmatprep.subr.bf16.mxu0 %v2590
    %3886 = vmatpush2.bf16.msra.mxu0 %v2589
    %3887 = vmatprep.subr.bf16.mxu0 %v2586
    %3888 = vmatpush2.bf16.msra.mxu0 %v2585
    %3889 = vmatprep.mubr.bf16.mxu0 %v311
    %3890 = vmatmul.mubr.bf16.gmra.mxu0 %v307
    %v3891 = vpop.f32.mrf.mxu0
    %v3892 = vadd.f32 %v3851, %v3891
    %v3893 = vpop.f32.mrf.mxu0
    %v3894 = vadd.f32 %v3853, %v3893
    %v3895 = vpop.f32.mrf.mxu0
    %v3896 = vpop.f32.mrf.mxu0
    %3897 = vdwg.mxu0
    %3898 = vmatprep.subr.bf16.mxu0 %v2646
    %3899 = vmatpush1.bf16.msra.mxu0 %v2645
    %3900 = vmatprep.subr.bf16.mxu0 %v2642
    %3901 = vmatpush1.bf16.msra.mxu0 %v2641
    %3902 = vmatprep.subr.bf16.mxu0 %v2638
    %3903 = vmatpush1.bf16.msra.mxu0 %v2637
    %3904 = vmatprep.subr.bf16.mxu0 %v2634
    %3905 = vmatpush1.bf16.msra.mxu0 %v2633
    %3906 = vmatprep.subr.bf16.mxu0 %v2630
    %3907 = vmatpush1.bf16.msra.mxu0 %v2629
    %3908 = vmatprep.subr.bf16.mxu0 %v2626
    %3909 = vmatpush1.bf16.msra.mxu0 %v2625
    %3910 = vmatprep.subr.bf16.mxu0 %v2622
    %3911 = vmatpush1.bf16.msra.mxu0 %v2621
    %3912 = vmatprep.subr.bf16.mxu0 %v2618
    %3913 = vmatpush1.bf16.msra.mxu0 %v2617
    %3914 = vmatprep.subr.bf16.mxu0 %v2678
    %3915 = vmatpush2.bf16.msra.mxu0 %v2677
    %3916 = vmatprep.subr.bf16.mxu0 %v2674
    %3917 = vmatpush2.bf16.msra.mxu0 %v2673
    %3918 = vmatprep.subr.bf16.mxu0 %v2670
    %3919 = vmatpush2.bf16.msra.mxu0 %v2669
    %3920 = vmatprep.subr.bf16.mxu0 %v2666
    %3921 = vmatpush2.bf16.msra.mxu0 %v2665
    %3922 = vmatprep.subr.bf16.mxu0 %v2662
    %3923 = vmatpush2.bf16.msra.mxu0 %v2661
    %3924 = vmatprep.subr.bf16.mxu0 %v2658
    %3925 = vmatpush2.bf16.msra.mxu0 %v2657
    %3926 = vmatprep.subr.bf16.mxu0 %v2654
    %3927 = vmatpush2.bf16.msra.mxu0 %v2653
    %3928 = vmatprep.subr.bf16.mxu0 %v2650
    %3929 = vmatpush2.bf16.msra.mxu0 %v2649
    %3930 = vmatprep.mubr.bf16.mxu0 %v319
    %3931 = vmatmul.mubr.bf16.gmra.mxu0 %v315
    %v3932 = vpop.f32.mrf.mxu0
    %v3933 = vadd.f32 %v3892, %v3932
    %v3934 = vpop.f32.mrf.mxu0
    %v3935 = vadd.f32 %v3894, %v3934
    %v3936 = vpop.f32.mrf.mxu0
    %v3937 = vpop.f32.mrf.mxu0
    %3938 = vdwg.mxu0
    %3939 = vmatprep.subr.bf16.mxu0 %v2710
    %3940 = vmatpush1.bf16.msra.mxu0 %v2709
    %3941 = vmatprep.subr.bf16.mxu0 %v2706
    %3942 = vmatpush1.bf16.msra.mxu0 %v2705
    %3943 = vmatprep.subr.bf16.mxu0 %v2702
    %3944 = vmatpush1.bf16.msra.mxu0 %v2701
    %3945 = vmatprep.subr.bf16.mxu0 %v2698
    %3946 = vmatpush1.bf16.msra.mxu0 %v2697
    %3947 = vmatprep.subr.bf16.mxu0 %v2694
    %3948 = vmatpush1.bf16.msra.mxu0 %v2693
    %3949 = vmatprep.subr.bf16.mxu0 %v2690
    %3950 = vmatpush1.bf16.msra.mxu0 %v2689
    %3951 = vmatprep.subr.bf16.mxu0 %v2686
    %3952 = vmatpush1.bf16.msra.mxu0 %v2685
    %3953 = vmatprep.subr.bf16.mxu0 %v2682
    %3954 = vmatpush1.bf16.msra.mxu0 %v2681
    %3955 = vmatprep.subr.bf16.mxu0 %v2742
    %3956 = vmatpush2.bf16.msra.mxu0 %v2741
    %3957 = vmatprep.subr.bf16.mxu0 %v2738
    %3958 = vmatpush2.bf16.msra.mxu0 %v2737
    %3959 = vmatprep.subr.bf16.mxu0 %v2734
    %3960 = vmatpush2.bf16.msra.mxu0 %v2733
    %3961 = vmatprep.subr.bf16.mxu0 %v2730
    %3962 = vmatpush2.bf16.msra.mxu0 %v2729
    %3963 = vmatprep.subr.bf16.mxu0 %v2726
    %3964 = vmatpush2.bf16.msra.mxu0 %v2725
    %3965 = vmatprep.subr.bf16.mxu0 %v2722
    %3966 = vmatpush2.bf16.msra.mxu0 %v2721
    %3967 = vmatprep.subr.bf16.mxu0 %v2718
    %3968 = vmatpush2.bf16.msra.mxu0 %v2717
    %3969 = vmatprep.subr.bf16.mxu0 %v2714
    %3970 = vmatpush2.bf16.msra.mxu0 %v2713
    %3971 = vmatprep.mubr.bf16.mxu0 %v327
    %3972 = vmatmul.mubr.bf16.gmra.mxu0 %v323
    %v3973 = vpop.f32.mrf.mxu0
    %v3974 = vadd.f32 %v3933, %v3973
    %v3975 = vpop.f32.mrf.mxu0
    %v3976 = vadd.f32 %v3935, %v3975
    %v3977 = vpop.f32.mrf.mxu0
    %v3978 = vpop.f32.mrf.mxu0
    %3979 = vdwg.mxu0
    %3980 = vmatprep.subr.bf16.mxu0 %v2774
    %3981 = vmatpush1.bf16.msra.mxu0 %v2773
    %3982 = vmatprep.subr.bf16.mxu0 %v2770
    %3983 = vmatpush1.bf16.msra.mxu0 %v2769
    %3984 = vmatprep.subr.bf16.mxu0 %v2766
    %3985 = vmatpush1.bf16.msra.mxu0 %v2765
    %3986 = vmatprep.subr.bf16.mxu0 %v2762
    %3987 = vmatpush1.bf16.msra.mxu0 %v2761
    %3988 = vmatprep.subr.bf16.mxu0 %v2758
    %3989 = vmatpush1.bf16.msra.mxu0 %v2757
    %3990 = vmatprep.subr.bf16.mxu0 %v2754
    %3991 = vmatpush1.bf16.msra.mxu0 %v2753
    %3992 = vmatprep.subr.bf16.mxu0 %v2750
    %3993 = vmatpush1.bf16.msra.mxu0 %v2749
    %3994 = vmatprep.subr.bf16.mxu0 %v2746
    %3995 = vmatpush1.bf16.msra.mxu0 %v2745
    %3996 = vmatprep.subr.bf16.mxu0 %v2806
    %3997 = vmatpush2.bf16.msra.mxu0 %v2805
    %3998 = vmatprep.subr.bf16.mxu0 %v2802
    %3999 = vmatpush2.bf16.msra.mxu0 %v2801
    %4000 = vmatprep.subr.bf16.mxu0 %v2798
    %4001 = vmatpush2.bf16.msra.mxu0 %v2797
    %4002 = vmatprep.subr.bf16.mxu0 %v2794
    %4003 = vmatpush2.bf16.msra.mxu0 %v2793
    %4004 = vmatprep.subr.bf16.mxu0 %v2790
    %4005 = vmatpush2.bf16.msra.mxu0 %v2789
    %4006 = vmatprep.subr.bf16.mxu0 %v2786
    %4007 = vmatpush2.bf16.msra.mxu0 %v2785
    %4008 = vmatprep.subr.bf16.mxu0 %v2782
    %4009 = vmatpush2.bf16.msra.mxu0 %v2781
    %4010 = vmatprep.subr.bf16.mxu0 %v2778
    %4011 = vmatpush2.bf16.msra.mxu0 %v2777
    %4012 = vmatprep.mubr.bf16.mxu0 %v335
    %4013 = vmatmul.mubr.bf16.gmra.mxu0 %v331
    %v4014 = vpop.f32.mrf.mxu0
    %v4015 = vadd.f32 %v3974, %v4014
    %v4016 = vpop.f32.mrf.mxu0
    %v4017 = vadd.f32 %v3976, %v4016
    %v4018 = vpop.f32.mrf.mxu0
    %v4019 = vpop.f32.mrf.mxu0
    %4020 = vdwg.mxu0
    %4021 = vmatprep.subr.bf16.mxu0 %v2838
    %4022 = vmatpush1.bf16.msra.mxu0 %v2837
    %4023 = vmatprep.subr.bf16.mxu0 %v2834
    %4024 = vmatpush1.bf16.msra.mxu0 %v2833
    %4025 = vmatprep.subr.bf16.mxu0 %v2830
    %4026 = vmatpush1.bf16.msra.mxu0 %v2829
    %4027 = vmatprep.subr.bf16.mxu0 %v2826
    %4028 = vmatpush1.bf16.msra.mxu0 %v2825
    %4029 = vmatprep.subr.bf16.mxu0 %v2822
    %4030 = vmatpush1.bf16.msra.mxu0 %v2821
    %4031 = vmatprep.subr.bf16.mxu0 %v2818
    %4032 = vmatpush1.bf16.msra.mxu0 %v2817
    %4033 = vmatprep.subr.bf16.mxu0 %v2814
    %4034 = vmatpush1.bf16.msra.mxu0 %v2813
    %4035 = vmatprep.subr.bf16.mxu0 %v2810
    %4036 = vmatpush1.bf16.msra.mxu0 %v2809
    %4037 = vmatprep.subr.bf16.mxu0 %v2870
    %4038 = vmatpush2.bf16.msra.mxu0 %v2869
    %4039 = vmatprep.subr.bf16.mxu0 %v2866
    %4040 = vmatpush2.bf16.msra.mxu0 %v2865
    %4041 = vmatprep.subr.bf16.mxu0 %v2862
    %4042 = vmatpush2.bf16.msra.mxu0 %v2861
    %4043 = vmatprep.subr.bf16.mxu0 %v2858
    %4044 = vmatpush2.bf16.msra.mxu0 %v2857
    %4045 = vmatprep.subr.bf16.mxu0 %v2854
    %4046 = vmatpush2.bf16.msra.mxu0 %v2853
    %4047 = vmatprep.subr.bf16.mxu0 %v2850
    %4048 = vmatpush2.bf16.msra.mxu0 %v2849
    %4049 = vmatprep.subr.bf16.mxu0 %v2846
    %4050 = vmatpush2.bf16.msra.mxu0 %v2845
    %4051 = vmatprep.subr.bf16.mxu0 %v2842
    %4052 = vmatpush2.bf16.msra.mxu0 %v2841
    %4053 = vmatprep.mubr.bf16.mxu0 %v343
    %4054 = vmatmul.mubr.bf16.gmra.mxu0 %v339
    %v4055 = vpop.f32.mrf.mxu0
    %v4056 = vadd.f32 %v4015, %v4055
    %v4057 = vpop.f32.mrf.mxu0
    %v4058 = vadd.f32 %v4017, %v4057
    %v4059 = vpop.f32.mrf.mxu0
    %v4060 = vpop.f32.mrf.mxu0
    %4061 = vdwg.mxu0
    %4062 = vmatprep.subr.bf16.mxu0 %v2902
    %4063 = vmatpush1.bf16.msra.mxu0 %v2901
    %4064 = vmatprep.subr.bf16.mxu0 %v2898
    %4065 = vmatpush1.bf16.msra.mxu0 %v2897
    %4066 = vmatprep.subr.bf16.mxu0 %v2894
    %4067 = vmatpush1.bf16.msra.mxu0 %v2893
    %4068 = vmatprep.subr.bf16.mxu0 %v2890
    %4069 = vmatpush1.bf16.msra.mxu0 %v2889
    %4070 = vmatprep.subr.bf16.mxu0 %v2886
    %4071 = vmatpush1.bf16.msra.mxu0 %v2885
    %4072 = vmatprep.subr.bf16.mxu0 %v2882
    %4073 = vmatpush1.bf16.msra.mxu0 %v2881
    %4074 = vmatprep.subr.bf16.mxu0 %v2878
    %4075 = vmatpush1.bf16.msra.mxu0 %v2877
    %4076 = vmatprep.subr.bf16.mxu0 %v2874
    %4077 = vmatpush1.bf16.msra.mxu0 %v2873
    %4078 = vmatprep.subr.bf16.mxu0 %v2934
    %4079 = vmatpush2.bf16.msra.mxu0 %v2933
    %4080 = vmatprep.subr.bf16.mxu0 %v2930
    %4081 = vmatpush2.bf16.msra.mxu0 %v2929
    %4082 = vmatprep.subr.bf16.mxu0 %v2926
    %4083 = vmatpush2.bf16.msra.mxu0 %v2925
    %4084 = vmatprep.subr.bf16.mxu0 %v2922
    %4085 = vmatpush2.bf16.msra.mxu0 %v2921
    %4086 = vmatprep.subr.bf16.mxu0 %v2918
    %4087 = vmatpush2.bf16.msra.mxu0 %v2917
    %4088 = vmatprep.subr.bf16.mxu0 %v2914
    %4089 = vmatpush2.bf16.msra.mxu0 %v2913
    %4090 = vmatprep.subr.bf16.mxu0 %v2910
    %4091 = vmatpush2.bf16.msra.mxu0 %v2909
    %4092 = vmatprep.subr.bf16.mxu0 %v2906
    %4093 = vmatpush2.bf16.msra.mxu0 %v2905
    %4094 = vmatprep.mubr.bf16.mxu0 %v351
    %4095 = vmatmul.mubr.bf16.gmra.mxu0 %v347
    %v4096 = vpop.f32.mrf.mxu0
    %v4097 = vadd.f32 %v4056, %v4096
    %v4098 = vpop.f32.mrf.mxu0
    %v4099 = vadd.f32 %v4058, %v4098
    %v4100 = vpop.f32.mrf.mxu0
    %v4101 = vpop.f32.mrf.mxu0
    %4102 = vdwg.mxu0
    %v4103 = vxor.u32 %v3769, 2147483648
    %v4104 = vxor.u32 %v3771, 2147483648
    %v4105 = vxor.u32 %v4097, 2147483648
    %v4106 = vxor.u32 %v4099, 2147483648
    %v4107 = vmul.f32 %v4103, 1.442695
    %v4108 = vpow.pop %v4107
    %v4109 = vmul.f32 %v4104, 1.442695
    %v4110 = vpow.pop %v4109
    %v4111 = vmul.f32 %v4105, 1.442695
    %v4112 = vpow.pop %v4111
    %v4113 = vmul.f32 %v4106, 1.442695
    %v4114 = vpow.pop %v4113
    %v4115 = vadd.f32 %v4108, 1.0
    %v4116 = vadd.f32 %v4110, 1.0
    %v4117 = vadd.f32 %v4112, 1.0
    %v4118 = vadd.f32 %v4114, 1.0
    %v4119 = vrcp.pop %v4115
    %v4120 = vmul.f32 1.0, %v4119
    %v4121 = vrcp.pop %v4116
    %v4122 = vmul.f32 1.0, %v4121
    %v4123 = vrcp.pop %v4117
    %v4124 = vmul.f32 1.0, %v4123
    %v4125 = vrcp.pop %v4118
    %v4126 = vmul.f32 1.0, %v4125
    %v4131 = vrot.slane %v4120, 2
    %v4132 = vrot.slane %v4122, 2
    %v4133 = vrot.slane %v4124, 2
    %v4134 = vrot.slane %v4126, 2
    %v4139 = vsub.f32 %v4120, %v4131
    %v4140 = vsub.f32 %v4122, %v4132
    %v4141 = vsub.f32 %v4124, %v4133
    %v4142 = vsub.f32 %v4126, %v4134
    %v4143 = vand.u32 2147483647, %v4139
    %v4144 = vand.u32 2147483647, %v4140
    %v4145 = vand.u32 2147483647, %v4141
    %v4146 = vand.u32 2147483647, %v4142
    %v4147 = vld [vmem:[#allocation10] sm:$0xf]
    %v4149 = vlaneseq
    %v4150 = vshrl.u32 %v4149, 7
    %v4151 = vsub.s32 0, %v4150
    %v4152 = vrot.slane %v4147, %v4151
    %v4153 = vlaneseq
    %v4154 = vshrl.u32 %v4153, 7
    %v4155 = vsub.s32 1, %v4154
    %v4156 = vrot.slane %v4147, %v4155
    %v4157 = vlaneseq
    %v4158 = vshrl.u32 %v4157, 7
    %v4159 = vsub.s32 2, %v4158
    %v4160 = vrot.slane %v4147, %v4159
    %v4161 = vlaneseq
    %v4162 = vshrl.u32 %v4161, 7
    %v4163 = vsub.s32 3, %v4162
    %v4164 = vrot.slane %v4147, %v4163
    %v4169 = vmul.f32 %v4143, %v4152
    %v4170 = vmul.f32 %v4144, %v4156
    %v4171 = vmul.f32 %v4145, %v4160
    %v4172 = vmul.f32 %v4146, %v4164
    %vm4173 = vcmask 1041408
    %v4174 = vsel %vm4173, %v4169, 0.0
    %v4175 = vsel %vm4173, %v4170, 0.0
    %v4176 = vadd.f32 %v4174, %v4175
    %v4177 = vsel %vm4173, %v4171, 0.0
    %v4178 = vadd.f32 %v4176, %v4177
    %v4179 = vsel %vm4173, %v4172, 0.0
    %v4180 = vadd.f32 %v4178, %v4179
    %4181 = vadd.xlane.f32.xlu0 %v4180
    %v4182 = vpop.xlane.xlu0 %4181
    %s4183 = sld [smem:[#allocation2]]
    %v4184 = vstv %s4183
    %v4185 = vadd.f32 %v4182, %v4184
    %v4186 = vxor.u32 %v4185, 2147483648
    %v4187 = vmul.f32 %v4186, 1.442695
    %v4188 = vpow.pop %v4187
    %v4189 = vadd.f32 %v4188, 1.0
    %v4190 = vrcp.pop %v4189
    %v4191 = vmul.f32 1.0, %v4190
    %vm4192 = vcmask 1024
    %4193 = vst.msk [vmem:[%s6] sm:$0x3] %vm4192, %v4191
    // Predicated region
    $region46: #{tpu_custom_call.1} parent=1 // pred_check
      _
    $region47: #{tpu_custom_call.1} parent=1 // pred_check_branch
      %4195 = sbr.rel (0) target = $region49
    $region48: #{tpu_custom_call.1} parent=1 // pred_region
      _
    $region49: #{tpu_custom_call.1} parent=1 // pred_fallthru
      _
    // Predicated region
    $region50: #{tpu_custom_call.1} parent=1 // pred_check
      _
    $region51: #{tpu_custom_call.1} parent=1 // pred_check_branch
      %4197 = sbr.rel (0) target = $region53
    $region52: #{tpu_custom_call.1} parent=1 // pred_region
      _
    $region53: #{tpu_custom_call.1} parent=1 // pred_fallthru
      _
    %4198 = vsyncpa [#allocation4], 1
    %4199 = vsyncpa [#allocation6], 1
    %4200 = vsyncpa [#allocation9], 1

</llo_original>
